<compile_context>
chip_gen: v5e
topology: v5e:2x2
jax: 0.10.0
libtpu: 0.0.40
codegen_flags: <defaults>
</compile_context>

<pallas_src>
import functools

import jax
import jax.numpy as jnp
from jax import lax
from jax.experimental import pallas as pl
from jax.experimental.pallas import tpu as pltpu

EPS = 1e-5
REF_PREC = lax.Precision.HIGHEST  # pure-JAX reference only


# --------------------------------------------------------------------------
# VMEM planning helpers.
# --------------------------------------------------------------------------
def _vmem_capacity_bytes():
    try:
        cap = getattr(pltpu.get_tpu_info(), "vmem_capacity_bytes", None)
        if cap:
            return int(cap)
    except Exception:
        pass
    return 64 * 1024 * 1024  # conservative fallback (v7x physical VMEM)


def _pick_strip(H, bytes_per_row, budget, max_rows=256):
    """Largest divisor of H (<= max_rows) whose per-strip bytes fit `budget`."""
    cap = max(1, min(max_rows, budget // max(1, bytes_per_row)))
    th = 1
    for d in range(1, min(cap, H) + 1):
        if H % d == 0:
            th = d
    return th


def _conv_plan(H, W, in_bytes_per_px, Cout, out_itemsize):
    """Pick a row-strip height and a VMEM limit from the real chip capacity."""
    cap = _vmem_capacity_bytes()
    per_row = W * (2 * in_bytes_per_px          # double-buffered body blocks
                   + 3 * in_bytes_per_px        # bf16 ky-packed slab (upper bound)
                   + 2 * Cout * out_itemsize    # double-buffered output block
                   + 2 * Cout * 4               # f32 acc scratch + kx partial
                   ) + 2 * Cout * 4             # acc's 2 extra columns
    TH = _pick_strip(H, per_row, max(per_row, int(0.4 * cap)), max_rows=256)
    vmem_limit = int(min(cap - (2 << 20),
                         max(32 << 20, TH * per_row + (8 << 20))))
    return TH, vmem_limit


# --------------------------------------------------------------------------
# Kernel 1: ConvTranspose2d(kernel=2, stride=2) as two tiled matmuls.
#   up[n, 2i+di, 2j+dj, co] = sum_ci x[n,i,j,ci] * W[ci,co,di,dj] + b[co]
# The kernel writes out[n, i, di, j, dj*Co+co]; the wrapper's reshape to
# (N, 2H, 2W, Co) preserves element order, so it is free (no HBM transpose).
# The weight is pre-split per di so each dot's output is already lane-aligned
# with its destination slice.
# --------------------------------------------------------------------------
def _upsample2x2_kernel(x_ref, w0_ref, w1_ref, b_ref, o_ref):
    _, TU, Wu, Cin = x_ref.shape
    two_co = w0_ref.shape[-1]
    x = x_ref[...].reshape(TU * Wu, Cin).astype(jnp.bfloat16)
    b = b_ref[...]
    y0 = jnp.dot(x, w0_ref[...], preferred_element_type=jnp.float32) + b
    y1 = jnp.dot(x, w1_ref[...], preferred_element_type=jnp.float32) + b
    o_ref[0, :, 0, :, :] = y0.reshape(TU, Wu, two_co).astype(o_ref.dtype)
    o_ref[0, :, 1, :, :] = y1.reshape(TU, Wu, two_co).astype(o_ref.dtype)


def upsample2x2_transpose(x, w_t, b_t, out_dtype=jnp.bfloat16):
    """x: (N,Hu,Wu,Cin); w_t: (Cin,Co,2,2) (PyTorch layout); b_t: (Co,)."""
    N, Hu, Wu, Cin = x.shape
    Co = w_t.shape[1]
    # (Cin,Co,di,dj) -> (di, Cin, dj, Co); columns inside each half = dj*Co+co
    w_r = jnp.transpose(w_t, (2, 0, 3, 1))
    w0 = w_r[0].reshape(Cin, 2 * Co).astype(jnp.bfloat16)
    w1 = w_r[1].reshape(Cin, 2 * Co).astype(jnp.bfloat16)
    b_vec = jnp.tile(b_t, 2).reshape(1, 2 * Co).astype(jnp.float32)

    cap = _vmem_capacity_bytes()
    obytes = jnp.dtype(out_dtype).itemsize
    per_row = Wu * (2 * Cin * x.dtype.itemsize   # double-buffered input block
                    + Cin * 2                     # bf16 cast copy
                    + 2 * 4 * Co * obytes         # double-buffered output block
                    + 2 * 2 * Co * 4 * 2)         # two f32 dot results
    TU = _pick_strip(Hu, per_row, max(per_row, int(0.4 * cap)), max_rows=128)
    vmem_limit = int(min(cap - (2 << 20),
                         max(32 << 20, TU * per_row + (8 << 20))))

    out = pl.pallas_call(
        _upsample2x2_kernel,
        out_shape=jax.ShapeDtypeStruct((N, Hu, 2, Wu, 2 * Co), out_dtype),
        grid=(N, Hu // TU),
        in_specs=[
            pl.BlockSpec((1, TU, Wu, Cin), lambda n, t: (n, t, 0, 0)),
            pl.BlockSpec((Cin, 2 * Co), lambda n, t: (0, 0)),
            pl.BlockSpec((Cin, 2 * Co), lambda n, t: (0, 0)),
            pl.BlockSpec((1, 2 * Co), lambda n, t: (0, 0)),
        ],
        out_specs=pl.BlockSpec((1, TU, 2, Wu, 2 * Co),
                               lambda n, t: (n, t, 0, 0, 0)),
        compiler_params=pltpu.CompilerParams(
            dimension_semantics=("parallel", "parallel"),
            vmem_limit_bytes=vmem_limit),
    )(x, w0, w1, b_vec)
    # Pixel shuffle: element-order-preserving reshape (free, no HBM transpose).
    return out.reshape(N, 2 * Hu, 2 * Wu, Co)


# --------------------------------------------------------------------------
# Kernels 2 & 3: 3x3 "SAME" conv fused with folded BatchNorm + ReLU.
#
# Grid = (N, H/TH) row strips.  The body strip and the 1-row top/bottom halos
# are three BlockSpec inputs over the *same* array, so every HBM transfer is
# auto double-buffered by Pallas.  The zero border (PyTorch padding=1) is
# realized by masking halo rows at the image edges and by where the kx taps
# land in the (TH, W+2, Cout) accumulator scratch.
# --------------------------------------------------------------------------
def _ky_slab(body_ref, top_ref, bot_ref, h, nh, TH):
    """ky-packed (TH, W, 3*C) bf16 slab of input rows [r0-1, r0+TH]."""
    bf = jnp.bfloat16
    keep_top = jnp.where(h > 0, 1.0, 0.0).astype(bf)
    keep_bot = jnp.where(h < nh - 1, 1.0, 0.0).astype(bf)
    top = top_ref[0, 0].astype(bf) * keep_top            # (W, C), zero at h==0
    bot = bot_ref[0, 0].astype(bf) * keep_bot            # (W, C), zero at h==nh-1
    # Cast per-ky slice (no persistent full-strip f32->bf16 copy).
    ky0 = jnp.concatenate([top[None], body_ref[0, :TH - 1].astype(bf)], axis=0)
    ky1 = body_ref[0].astype(bf)
    ky2 = jnp.concatenate([body_ref[0, 1:].astype(bf), bot[None]], axis=0)
    return jnp.concatenate([ky0, ky1, ky2], axis=-1)      # (TH, W, 3C)


def _accumulate_conv(slab2d, w_ref, acc_ref, TH, W, Cout):
    """3 kx taps: dot vs (3C_total, Cout) weights, shift-accumulate into acc."""
    acc_ref[...] = jnp.zeros_like(acc_ref)
    for kx in range(3):
        c = jnp.dot(slab2d, w_ref[kx],
                    preferred_element_type=jnp.float32).reshape(TH, W, Cout)
        off = 2 - kx                      # y[i, j] = sum_kx c_kx[i, j + kx - 1]
        acc_ref[:, off:off + W, :] += c
    return acc_ref[:, 1:W + 1, :]


def _finish_bn_relu(acc, sc_ref, sh_ref, o_ref, TH, W, Cout):
    z = acc * sc_ref[...].reshape(1, 1, Cout) + sh_ref[...].reshape(1, 1, Cout)
    o_ref[...] = jnp.maximum(z, 0.0).astype(o_ref.dtype).reshape(1, TH, W, Cout)


def _conv3x3_bn_relu_kernel(x_ref, xt_ref, xb_ref, w_ref, sc_ref, sh_ref,
                            o_ref, acc_ref):
    h = pl.program_id(1)
    nh = pl.num_programs(1)
    _, TH, W, Cout = o_ref.shape
    C = x_ref.shape[-1]
    slab = _ky_slab(x_ref, xt_ref, xb_ref, h, nh, TH).reshape(TH * W, 3 * C)
    acc = _accumulate_conv(slab, w_ref, acc_ref, TH, W, Cout)
    _finish_bn_relu(acc, sc_ref, sh_ref, o_ref, TH, W, Cout)


def _conv3x3_concat_bn_relu_kernel(a_ref, at_ref, ab_ref, b_ref, bt_ref, bb_ref,
                                   w_ref, sc_ref, sh_ref, o_ref, acc_ref):
    h = pl.program_id(1)
    nh = pl.num_programs(1)
    _, TH, W, Cout = o_ref.shape
    Ca = a_ref.shape[-1]
    Cb = b_ref.shape[-1]
    sa = _ky_slab(a_ref, at_ref, ab_ref, h, nh, TH)
    sb = _ky_slab(b_ref, bt_ref, bb_ref, h, nh, TH)
    slab = jnp.concatenate([sa, sb], axis=-1).reshape(TH * W, 3 * (Ca + Cb))
    acc = _accumulate_conv(slab, w_ref, acc_ref, TH, W, Cout)
    _finish_bn_relu(acc, sc_ref, sh_ref, o_ref, TH, W, Cout)


def _strip_specs(H, W, C, TH):
    """Body + 1-row top/bottom halo BlockSpecs (all auto-pipelined)."""
    body = pl.BlockSpec((1, TH, W, C), lambda n, h: (n, h, 0, 0))
    top = pl.BlockSpec((1, 1, W, C),
                       lambda n, h: (n, jnp.maximum(h * TH - 1, 0), 0, 0))
    bot = pl.BlockSpec((1, 1, W, C),
                       lambda n, h: (n, jnp.minimum((h + 1) * TH, H - 1), 0, 0))
    return [body, top, bot]


def _pack_w3x3(w):
    """HWIO (3,3,C,Cout) -> (kx, ky*C + ci, Cout) bf16 for ky-packed slabs."""
    C, Cout = w.shape[2], w.shape[3]
    return jnp.transpose(w, (1, 0, 2, 3)).reshape(3, 3 * C, Cout).astype(jnp.bfloat16)


def conv3x3_bn_relu(x, w, scale, shift, out_dtype=jnp.float32):
    """3x3 SAME conv + folded BN + ReLU.  x: (N,H,W,C) NHWC, w: HWIO."""
    N, H, W, C = x.shape
    Cout = w.shape[-1]
    TH, vmem_limit = _conv_plan(H, W, C * x.dtype.itemsize, Cout,
                                jnp.dtype(out_dtype).itemsize)
    return pl.pallas_call(
        _conv3x3_bn_relu_kernel,
        out_shape=jax.ShapeDtypeStruct((N, H, W, Cout), out_dtype),
        grid=(N, H // TH),
        in_specs=_strip_specs(H, W, C, TH) + [
            pl.BlockSpec((3, 3 * C, Cout), lambda n, h: (0, 0, 0)),
            pl.BlockSpec((1, Cout), lambda n, h: (0, 0)),
            pl.BlockSpec((1, Cout), lambda n, h: (0, 0)),
        ],
        out_specs=pl.BlockSpec((1, TH, W, Cout), lambda n, h: (n, h, 0, 0)),
        scratch_shapes=[pltpu.VMEM((TH, W + 2, Cout), jnp.float32)],
        compiler_params=pltpu.CompilerParams(
            dimension_semantics=("parallel", "parallel"),
            vmem_limit_bytes=vmem_limit),
    )(x, x, x, _pack_w3x3(w),
      scale.reshape(1, Cout).astype(jnp.float32),
      shift.reshape(1, Cout).astype(jnp.float32))


def conv3x3_bn_relu_concat(xa, xb, wa, wb, scale, shift, out_dtype=jnp.bfloat16):
    """3x3 SAME conv over concat([xa, xb], channel) + folded BN + ReLU."""
    N, H, W, Ca = xa.shape
    Cb = xb.shape[-1]
    Cout = wa.shape[-1]
    TH, vmem_limit = _conv_plan(
        H, W, Ca * xa.dtype.itemsize + Cb * xb.dtype.itemsize, Cout,
        jnp.dtype(out_dtype).itemsize)
    w_packed = jnp.concatenate([_pack_w3x3(wa), _pack_w3x3(wb)], axis=1)
    return pl.pallas_call(
        _conv3x3_concat_bn_relu_kernel,
        out_shape=jax.ShapeDtypeStruct((N, H, W, Cout), out_dtype),
        grid=(N, H // TH),
        in_specs=(_strip_specs(H, W, Ca, TH) + _strip_specs(H, W, Cb, TH) + [
            pl.BlockSpec((3, 3 * (Ca + Cb), Cout), lambda n, h: (0, 0, 0)),
            pl.BlockSpec((1, Cout), lambda n, h: (0, 0)),
            pl.BlockSpec((1, Cout), lambda n, h: (0, 0)),
        ]),
        out_specs=pl.BlockSpec((1, TH, W, Cout), lambda n, h: (n, h, 0, 0)),
        scratch_shapes=[pltpu.VMEM((TH, W + 2, Cout), jnp.float32)],
        compiler_params=pltpu.CompilerParams(
            dimension_semantics=("parallel", "parallel"),
            vmem_limit_bytes=vmem_limit),
    )(xa, xa, xa, xb, xb, xb, w_packed,
      scale.reshape(1, Cout).astype(jnp.float32),
      shift.reshape(1, Cout).astype(jnp.float32))


# --------------------------------------------------------------------------
# UpConv module (forward only); parameters are synthetic / deterministic.
# --------------------------------------------------------------------------
def init_params(key, in_channels, out_channels):
    Ci, Co = in_channels, out_channels
    ks = jax.random.split(key, 14)
    return {
        # ConvTranspose2d(Ci, Co, k=2, s=2): weight (Ci, Co, 2, 2)
        "up_w": 0.1 * jax.random.normal(ks[0], (Ci, Co, 2, 2), jnp.float32),
        "up_b": 0.1 * jax.random.normal(ks[1], (Co,), jnp.float32),
        # conv1: Conv2d(2*Co, Co, 3, padding=1) stored as HWIO (3,3,2*Co,Co)
        "w1": 0.1 * jax.random.normal(ks[2], (3, 3, 2 * Co, Co), jnp.float32),
        "b1": 0.1 * jax.random.normal(ks[3], (Co,), jnp.float32),
        # conv2: Conv2d(Co, Co, 3, padding=1) as HWIO
        "w2": 0.1 * jax.random.normal(ks[4], (3, 3, Co, Co), jnp.float32),
        "b2": 0.1 * jax.random.normal(ks[5], (Co,), jnp.float32),
        # BatchNorm2d params + running stats (inference mode)
        "bn1_gamma": 1.0 + 0.1 * jax.random.normal(ks[6], (Co,), jnp.float32),
        "bn1_beta": 0.1 * jax.random.normal(ks[7], (Co,), jnp.float32),
        "bn1_mean": 0.1 * jax.random.normal(ks[8], (Co,), jnp.float32),
        "bn1_var": jnp.abs(1.0 + 0.1 * jax.random.normal(ks[9], (Co,), jnp.float32)),
        "bn2_gamma": 1.0 + 0.1 * jax.random.normal(ks[10], (Co,), jnp.float32),
        "bn2_beta": 0.1 * jax.random.normal(ks[11], (Co,), jnp.float32),
        "bn2_mean": 0.1 * jax.random.normal(ks[12], (Co,), jnp.float32),
        "bn2_var": jnp.abs(1.0 + 0.1 * jax.random.normal(ks[13], (Co,), jnp.float32)),
    }


def upconv_forward(params, from_down_nchw, from_up_nchw, merge_mode="concat"):
    # NCHW (PyTorch) -> NHWC (kernel layout)
    from_down = jnp.transpose(from_down_nchw, (0, 2, 3, 1))
    from_up = jnp.transpose(from_up_nchw, (0, 2, 3, 1))

    # bf16 `up`: largest intermediate, re-read by conv1 -> half the HBM traffic.
    up = upsample2x2_transpose(from_up, params["up_w"], params["up_b"],
                               out_dtype=jnp.bfloat16)

    Co = params["b1"].shape[0]
    # Fold conv bias + inference BatchNorm into per-channel scale/shift.
    s1 = params["bn1_gamma"] / jnp.sqrt(params["bn1_var"] + EPS)
    sh1 = params["bn1_beta"] + (params["b1"] - params["bn1_mean"]) * s1
    s2 = params["bn2_gamma"] / jnp.sqrt(params["bn2_var"] + EPS)
    sh2 = params["bn2_beta"] + (params["b2"] - params["bn2_mean"]) * s2

    if merge_mode == "concat":
        # torch.cat((from_up, from_down), 1): first Co input channels of conv1
        # act on `up`, the remaining Co on `from_down`.
        wa = params["w1"][:, :, :Co, :]
        wb = params["w1"][:, :, Co:, :]
        y1 = conv3x3_bn_relu_concat(up, from_down, wa, wb, s1, sh1,
                                    out_dtype=jnp.bfloat16)
    else:
        y1 = conv3x3_bn_relu(up.astype(jnp.float32) + from_down,
                             params["w1"], s1, sh1, out_dtype=jnp.bfloat16)

    y2 = conv3x3_bn_relu(y1, params["w2"], s2, sh2, out_dtype=jnp.float32)
    return jnp.transpose(y2, (0, 3, 1, 2))  # NHWC -> NCHW


# --------------------------------------------------------------------------
# Pure-JAX reference (lax conv) for correctness sanity check.
# --------------------------------------------------------------------------
def reference_forward(params, from_down_nchw, from_up_nchw, merge_mode="concat"):
    fd = jnp.transpose(from_down_nchw, (0, 2, 3, 1))
    fu = jnp.transpose(from_up_nchw, (0, 2, 3, 1))
    N, H, W, _ = fu.shape
    Co = params["up_b"].shape[0]
    t = jnp.einsum("nhwc,codx->nhwdxo", fu, params["up_w"], precision=REF_PREC)
    up = jnp.transpose(t, (0, 1, 3, 2, 4, 5)).reshape(N, 2 * H, 2 * W, Co)
    up = up + params["up_b"]
    x = jnp.concatenate([up, fd], axis=-1) if merge_mode == "concat" else up + fd

    def conv3(x, w, b):
        return lax.conv_general_dilated(
            x, w, (1, 1), "SAME",
            dimension_numbers=("NHWC", "HWIO", "NHWC"), precision=REF_PREC) + b

    def bn(x, g, bta, m, v):
        return (x - m) / jnp.sqrt(v + EPS) * g + bta

    y = jax.nn.relu(bn(conv3(x, params["w1"], params["b1"]),
                       params["bn1_gamma"], params["bn1_beta"],
                       params["bn1_mean"], params["bn1_var"]))
    y = jax.nn.relu(bn(conv3(y, params["w2"], params["b2"]),
                       params["bn2_gamma"], params["bn2_beta"],
                       params["bn2_mean"], params["bn2_var"]))
    return jnp.transpose(y, (0, 3, 1, 2))


if __name__ == "__main__":
    in_channels, out_channels = 8, 4
    N, H, W = 2, 8, 8  # from_up spatial; from_down is 2x spatial

    key = jax.random.PRNGKey(0)
    k1, k2, k3 = jax.random.split(key, 3)
    from_up = jax.random.normal(k1, (N, in_channels, H, W), jnp.float32)
    from_down = jax.random.normal(k2, (N, out_channels, 2 * H, 2 * W), jnp.float32)
    params = init_params(k3, in_channels, out_channels)

    fwd = jax.jit(functools.partial(upconv_forward, params))
    out = jax.block_until_ready(fwd(from_down, from_up))

    ref = reference_forward(params, from_down, from_up)
    assert out.shape == (N, out_channels, 2 * H, 2 * W), out.shape
    max_err = float(jnp.max(jnp.abs(out - ref)))
    # Kernels use bf16 MXU inputs and bf16 `up`/`y1` intermediates with f32
    # accumulation; the reference is full f32 HIGHEST, so allow bf16 tolerance.
    assert jnp.allclose(out, ref, atol=3e-2, rtol=3e-2), max_err

    print("KERNEL_OK")
</pallas_src>

<mosaic_0001>
module attributes {stable_mosaic.version = 11 : i64} {
  func.func @_upsample2x2_kernel(%arg0: i32, %arg1: i32, %arg2: memref<1x8x8x8xf32, #tpu.memory_space<vmem>>, %arg3: memref<8x8xbf16, #tpu.memory_space<vmem>>, %arg4: memref<8x8xbf16, #tpu.memory_space<vmem>>, %arg5: memref<1x8xf32, #tpu.memory_space<vmem>>, %arg6: memref<1x8x2x8x8xbf16, #tpu.memory_space<vmem>>) attributes {dimension_semantics = [#tpu.dimension_semantics<parallel>, #tpu.dimension_semantics<parallel>], iteration_bounds = array<i64: 2, 1>, scalar_prefetch = 0 : i64, scratch_operands = 0 : i64, tpu.core_type = #tpu.core_type<tc>, window_params = [{transform_indices = @transform_0, window_bounds = array<i64: 1, 8, 8, 8>}, {pipeline_mode = #tpu.pipeline_mode<synchronous>, transform_indices = @transform_1, window_bounds = array<i64: 8, 8>}, {pipeline_mode = #tpu.pipeline_mode<synchronous>, transform_indices = @transform_2, window_bounds = array<i64: 8, 8>}, {pipeline_mode = #tpu.pipeline_mode<synchronous>, transform_indices = @transform_3, window_bounds = array<i64: 1, 8>}, {transform_indices = @transform_4, window_bounds = array<i64: 1, 8, 2, 8, 8>}]} {
    %c0 = arith.constant 0 : index
    %c0_0 = arith.constant 0 : index
    %c0_1 = arith.constant 0 : index
    %c0_2 = arith.constant 0 : index
    %0 = vector.load %arg2[%c0, %c0_0, %c0_1, %c0_2] : memref<1x8x8x8xf32, #tpu.memory_space<vmem>>, vector<1x8x8x8xf32>
    %1 = vector.shape_cast %0 : vector<1x8x8x8xf32> to vector<64x8xf32>
    %2 = arith.truncf %1 : vector<64x8xf32> to vector<64x8xbf16>
    %c0_3 = arith.constant 0 : index
    %c0_4 = arith.constant 0 : index
    %3 = vector.load %arg5[%c0_3, %c0_4] : memref<1x8xf32, #tpu.memory_space<vmem>>, vector<1x8xf32>
    %c0_5 = arith.constant 0 : index
    %c0_6 = arith.constant 0 : index
    %4 = vector.load %arg3[%c0_5, %c0_6] : memref<8x8xbf16, #tpu.memory_space<vmem>>, vector<8x8xbf16>
    %cst = arith.constant dense<0.000000e+00> : vector<64x8xf32>
    %5 = tpu.matmul %2, %4, %cst {dimension_numbers = #tpu.dot_dimension_numbers<[1], [0], [0], [1], [0, 0, 1, 1], [], []>} : vector<64x8xbf16>, vector<8x8xbf16>, vector<64x8xf32> -> vector<64x8xf32>
    %6 = vector.broadcast %3 : vector<1x8xf32> to vector<64x8xf32>
    %7 = arith.addf %5, %6 : vector<64x8xf32>
    %c0_7 = arith.constant 0 : index
    %c0_8 = arith.constant 0 : index
    %8 = vector.load %arg4[%c0_7, %c0_8] : memref<8x8xbf16, #tpu.memory_space<vmem>>, vector<8x8xbf16>
    %cst_9 = arith.constant dense<0.000000e+00> : vector<64x8xf32>
    %9 = tpu.matmul %2, %8, %cst_9 {dimension_numbers = #tpu.dot_dimension_numbers<[1], [0], [0], [1], [0, 0, 1, 1], [], []>} : vector<64x8xbf16>, vector<8x8xbf16>, vector<64x8xf32> -> vector<64x8xf32>
    %10 = vector.broadcast %3 : vector<1x8xf32> to vector<64x8xf32>
    %11 = arith.addf %9, %10 : vector<64x8xf32>
    %12 = vector.shape_cast %7 : vector<64x8xf32> to vector<8x8x8xf32>
    %13 = arith.truncf %12 : vector<8x8x8xf32> to vector<8x8x8xbf16>
    %c0_10 = arith.constant 0 : index
    %c0_11 = arith.constant 0 : index
    %c0_12 = arith.constant 0 : index
    %c0_13 = arith.constant 0 : index
    %c0_14 = arith.constant 0 : index
    %14 = vector.load %arg6[%c0_10, %c0_11, %c0_12, %c0_13, %c0_14] : memref<1x8x2x8x8xbf16, #tpu.memory_space<vmem>>, vector<1x8x1x8x8xbf16>
    %15 = vector.shape_cast %14 : vector<1x8x1x8x8xbf16> to vector<8x8x8xbf16>
    %16 = vector.shape_cast %13 : vector<8x8x8xbf16> to vector<1x8x1x8x8xbf16>
    tpu.vector_store %arg6[%c0_10, %c0_11, %c0_12, %c0_13, %c0_14], %16 {strides = array<i32>} : memref<1x8x2x8x8xbf16, #tpu.memory_space<vmem>>, vector<1x8x1x8x8xbf16>,
    %17 = vector.shape_cast %11 : vector<64x8xf32> to vector<8x8x8xf32>
    %18 = arith.truncf %17 : vector<8x8x8xf32> to vector<8x8x8xbf16>
    %c0_15 = arith.constant 0 : index
    %c0_16 = arith.constant 0 : index
    %c1 = arith.constant 1 : index
    %c0_17 = arith.constant 0 : index
    %c0_18 = arith.constant 0 : index
    %19 = vector.load %arg6[%c0_15, %c0_16, %c1, %c0_17, %c0_18] : memref<1x8x2x8x8xbf16, #tpu.memory_space<vmem>>, vector<1x8x1x8x8xbf16>
    %20 = vector.shape_cast %19 : vector<1x8x1x8x8xbf16> to vector<8x8x8xbf16>
    %21 = vector.shape_cast %18 : vector<8x8x8xbf16> to vector<1x8x1x8x8xbf16>
    tpu.vector_store %arg6[%c0_15, %c0_16, %c1, %c0_17, %c0_18], %21 {strides = array<i32>} : memref<1x8x2x8x8xbf16, #tpu.memory_space<vmem>>, vector<1x8x1x8x8xbf16>,
    return
  }
  func.func @transform_0(%arg0: i32, %arg1: i32) -> (i32, i32, i32, i32) {
    %c0_i32 = arith.constant 0 : i32
    %c0_i32_0 = arith.constant 0 : i32
    %c0_i32_1 = arith.constant 0 : i32
    return %arg0, %arg1, %c0_i32, %c0_i32_0 : i32, i32, i32, i32
  }
  func.func @transform_1(%arg0: i32, %arg1: i32) -> (i32, i32) {
    %c0_i32 = arith.constant 0 : i32
    %c0_i32_0 = arith.constant 0 : i32
    %c0_i32_1 = arith.constant 0 : i32
    return %c0_i32, %c0_i32_0 : i32, i32
  }
  func.func @transform_2(%arg0: i32, %arg1: i32) -> (i32, i32) {
    %c0_i32 = arith.constant 0 : i32
    %c0_i32_0 = arith.constant 0 : i32
    %c0_i32_1 = arith.constant 0 : i32
    return %c0_i32, %c0_i32_0 : i32, i32
  }
  func.func @transform_3(%arg0: i32, %arg1: i32) -> (i32, i32) {
    %c0_i32 = arith.constant 0 : i32
    %c0_i32_0 = arith.constant 0 : i32
    %c0_i32_1 = arith.constant 0 : i32
    return %c0_i32, %c0_i32_0 : i32, i32
  }
  func.func @transform_4(%arg0: i32, %arg1: i32) -> (i32, i32, i32, i32, i32) {
    %c0_i32 = arith.constant 0 : i32
    %c0_i32_0 = arith.constant 0 : i32
    %c0_i32_1 = arith.constant 0 : i32
    %c0_i32_2 = arith.constant 0 : i32
    return %arg0, %arg1, %c0_i32, %c0_i32_0, %c0_i32_1 : i32, i32, i32, i32, i32
  }
}

module attributes {stable_mosaic.version = 11 : i64} {
  func.func @_conv3x3_concat_bn_relu_kernel(%arg0: i32, %arg1: i32, %arg2: memref<1x16x16x4xbf16, #tpu.memory_space<vmem>>, %arg3: memref<1x1x16x4xbf16, #tpu.memory_space<vmem>>, %arg4: memref<1x1x16x4xbf16, #tpu.memory_space<vmem>>, %arg5: memref<1x16x16x4xf32, #tpu.memory_space<vmem>>, %arg6: memref<1x1x16x4xf32, #tpu.memory_space<vmem>>, %arg7: memref<1x1x16x4xf32, #tpu.memory_space<vmem>>, %arg8: memref<3x24x4xbf16, #tpu.memory_space<vmem>>, %arg9: memref<1x4xf32, #tpu.memory_space<vmem>>, %arg10: memref<1x4xf32, #tpu.memory_space<vmem>>, %arg11: memref<1x16x16x4xbf16, #tpu.memory_space<vmem>>, %arg12: memref<16x18x4xf32, #tpu.memory_space<vmem>>) attributes {dimension_semantics = [#tpu.dimension_semantics<parallel>, #tpu.dimension_semantics<parallel>], iteration_bounds = array<i64: 2, 1>, scalar_prefetch = 0 : i64, scratch_operands = 1 : i64, tpu.core_type = #tpu.core_type<tc>, window_params = [{transform_indices = @transform_0, window_bounds = array<i64: 1, 16, 16, 4>}, {transform_indices = @transform_1, window_bounds = array<i64: 1, 1, 16, 4>}, {transform_indices = @transform_2, window_bounds = array<i64: 1, 1, 16, 4>}, {transform_indices = @transform_3, window_bounds = array<i64: 1, 16, 16, 4>}, {transform_indices = @transform_4, window_bounds = array<i64: 1, 1, 16, 4>}, {transform_indices = @transform_5, window_bounds = array<i64: 1, 1, 16, 4>}, {pipeline_mode = #tpu.pipeline_mode<synchronous>, transform_indices = @transform_6, window_bounds = array<i64: 3, 24, 4>}, {pipeline_mode = #tpu.pipeline_mode<synchronous>, transform_indices = @transform_7, window_bounds = array<i64: 1, 4>}, {pipeline_mode = #tpu.pipeline_mode<synchronous>, transform_indices = @transform_8, window_bounds = array<i64: 1, 4>}, {transform_indices = @transform_9, window_bounds = array<i64: 1, 16, 16, 4>}]} {
    %c0_i32 = arith.constant 0 : i32
    %0 = arith.cmpi sgt, %arg1, %c0_i32 : i32
    %cst = arith.constant 1.000000e+00 : f32
    %cst_0 = arith.constant 0.000000e+00 : f32
    %1 = arith.select %0, %cst, %cst_0 : f32
    %2 = arith.truncf %1 : f32 to bf16
    %c0_i32_1 = arith.constant 0 : i32
    %3 = arith.cmpi slt, %arg1, %c0_i32_1 : i32
    %cst_2 = arith.constant 1.000000e+00 : f32
    %cst_3 = arith.constant 0.000000e+00 : f32
    %4 = arith.select %3, %cst_2, %cst_3 : f32
    %5 = arith.truncf %4 : f32 to bf16
    %c0 = arith.constant 0 : index
    %c0_4 = arith.constant 0 : index
    %c0_5 = arith.constant 0 : index
    %c0_6 = arith.constant 0 : index
    %6 = vector.load %arg3[%c0, %c0_4, %c0_5, %c0_6] : memref<1x1x16x4xbf16, #tpu.memory_space<vmem>>, vector<1x1x16x4xbf16>
    %7 = vector.shape_cast %6 : vector<1x1x16x4xbf16> to vector<16x4xbf16>
    %8 = vector.broadcast %2 : bf16 to vector<16x4xbf16>
    %9 = arith.mulf %7, %8 : vector<16x4xbf16>
    %c0_7 = arith.constant 0 : index
    %c0_8 = arith.constant 0 : index
    %c0_9 = arith.constant 0 : index
    %c0_10 = arith.constant 0 : index
    %10 = vector.load %arg4[%c0_7, %c0_8, %c0_9, %c0_10] : memref<1x1x16x4xbf16, #tpu.memory_space<vmem>>, vector<1x1x16x4xbf16>
    %11 = vector.shape_cast %10 : vector<1x1x16x4xbf16> to vector<16x4xbf16>
    %12 = vector.broadcast %5 : bf16 to vector<16x4xbf16>
    %13 = arith.mulf %11, %12 : vector<16x4xbf16>
    %14 = vector.shape_cast %9 : vector<16x4xbf16> to vector<1x16x4xbf16>
    %c0_11 = arith.constant 0 : index
    %c0_12 = arith.constant 0 : index
    %c0_13 = arith.constant 0 : index
    %c0_14 = arith.constant 0 : index
    %15 = vector.load %arg2[%c0_11, %c0_12, %c0_13, %c0_14] : memref<1x16x16x4xbf16, #tpu.memory_space<vmem>>, vector<1x15x16x4xbf16>
    %16 = vector.shape_cast %15 : vector<1x15x16x4xbf16> to vector<15x16x4xbf16>
    %17 = tpu.concatenate %14, %16 in 0 : vector<1x16x4xbf16>, vector<15x16x4xbf16> -> vector<16x16x4xbf16>
    %c0_15 = arith.constant 0 : index
    %c0_16 = arith.constant 0 : index
    %c0_17 = arith.constant 0 : index
    %c0_18 = arith.constant 0 : index
    %18 = vector.load %arg2[%c0_15, %c0_16, %c0_17, %c0_18] : memref<1x16x16x4xbf16, #tpu.memory_space<vmem>>, vector<1x16x16x4xbf16>
    %19 = vector.shape_cast %18 : vector<1x16x16x4xbf16> to vector<16x16x4xbf16>
    %c0_19 = arith.constant 0 : index
    %c1 = arith.constant 1 : index
    %c0_20 = arith.constant 0 : index
    %c0_21 = arith.constant 0 : index
    %20 = vector.load %arg2[%c0_19, %c1, %c0_20, %c0_21] : memref<1x16x16x4xbf16, #tpu.memory_space<vmem>>, vector<1x15x16x4xbf16>
    %21 = vector.shape_cast %20 : vector<1x15x16x4xbf16> to vector<15x16x4xbf16>
    %22 = vector.shape_cast %13 : vector<16x4xbf16> to vector<1x16x4xbf16>
    %23 = tpu.concatenate %21, %22 in 0 : vector<15x16x4xbf16>, vector<1x16x4xbf16> -> vector<16x16x4xbf16>
    %24 = tpu.concatenate %17, %19, %23 in 2 : vector<16x16x4xbf16>, vector<16x16x4xbf16>, vector<16x16x4xbf16> -> vector<16x16x12xbf16>
    %c0_i32_22 = arith.constant 0 : i32
    %25 = arith.cmpi sgt, %arg1, %c0_i32_22 : i32
    %cst_23 = arith.constant 1.000000e+00 : f32
    %cst_24 = arith.constant 0.000000e+00 : f32
    %26 = arith.select %25, %cst_23, %cst_24 : f32
    %27 = arith.truncf %26 : f32 to bf16
    %c0_i32_25 = arith.constant 0 : i32
    %28 = arith.cmpi slt, %arg1, %c0_i32_25 : i32
    %cst_26 = arith.constant 1.000000e+00 : f32
    %cst_27 = arith.constant 0.000000e+00 : f32
    %29 = arith.select %28, %cst_26, %cst_27 : f32
    %30 = arith.truncf %29 : f32 to bf16
    %c0_28 = arith.constant 0 : index
    %c0_29 = arith.constant 0 : index
    %c0_30 = arith.constant 0 : index
    %c0_31 = arith.constant 0 : index
    %31 = vector.load %arg6[%c0_28, %c0_29, %c0_30, %c0_31] : memref<1x1x16x4xf32, #tpu.memory_space<vmem>>, vector<1x1x16x4xf32>
    %32 = vector.shape_cast %31 : vector<1x1x16x4xf32> to vector<16x4xf32>
    %33 = arith.truncf %32 : vector<16x4xf32> to vector<16x4xbf16>
    %34 = vector.broadcast %27 : bf16 to vector<16x4xbf16>
    %35 = arith.mulf %33, %34 : vector<16x4xbf16>
    %c0_32 = arith.constant 0 : index
    %c0_33 = arith.constant 0 : index
    %c0_34 = arith.constant 0 : index
    %c0_35 = arith.constant 0 : index
    %36 = vector.load %arg7[%c0_32, %c0_33, %c0_34, %c0_35] : memref<1x1x16x4xf32, #tpu.memory_space<vmem>>, vector<1x1x16x4xf32>
    %37 = vector.shape_cast %36 : vector<1x1x16x4xf32> to vector<16x4xf32>
    %38 = arith.truncf %37 : vector<16x4xf32> to vector<16x4xbf16>
    %39 = vector.broadcast %30 : bf16 to vector<16x4xbf16>
    %40 = arith.mulf %38, %39 : vector<16x4xbf16>
    %41 = vector.shape_cast %35 : vector<16x4xbf16> to vector<1x16x4xbf16>
    %c0_36 = arith.constant 0 : index
    %c0_37 = arith.constant 0 : index
    %c0_38 = arith.constant 0 : index
    %c0_39 = arith.constant 0 : index
    %42 = vector.load %arg5[%c0_36, %c0_37, %c0_38, %c0_39] : memref<1x16x16x4xf32, #tpu.memory_space<vmem>>, vector<1x15x16x4xf32>
    %43 = vector.shape_cast %42 : vector<1x15x16x4xf32> to vector<15x16x4xf32>
    %44 = arith.truncf %43 : vector<15x16x4xf32> to vector<15x16x4xbf16>
    %45 = tpu.concatenate %41, %44 in 0 : vector<1x16x4xbf16>, vector<15x16x4xbf16> -> vector<16x16x4xbf16>
    %c0_40 = arith.constant 0 : index
    %c0_41 = arith.constant 0 : index
    %c0_42 = arith.constant 0 : index
    %c0_43 = arith.constant 0 : index
    %46 = vector.load %arg5[%c0_40, %c0_41, %c0_42, %c0_43] : memref<1x16x16x4xf32, #tpu.memory_space<vmem>>, vector<1x16x16x4xf32>
    %47 = vector.shape_cast %46 : vector<1x16x16x4xf32> to vector<16x16x4xf32>
    %48 = arith.truncf %47 : vector<16x16x4xf32> to vector<16x16x4xbf16>
    %c0_44 = arith.constant 0 : index
    %c1_45 = arith.constant 1 : index
    %c0_46 = arith.constant 0 : index
    %c0_47 = arith.constant 0 : index
    %49 = vector.load %arg5[%c0_44, %c1_45, %c0_46, %c0_47] : memref<1x16x16x4xf32, #tpu.memory_space<vmem>>, vector<1x15x16x4xf32>
    %50 = vector.shape_cast %49 : vector<1x15x16x4xf32> to vector<15x16x4xf32>
    %51 = arith.truncf %50 : vector<15x16x4xf32> to vector<15x16x4xbf16>
    %52 = vector.shape_cast %40 : vector<16x4xbf16> to vector<1x16x4xbf16>
    %53 = tpu.concatenate %51, %52 in 0 : vector<15x16x4xbf16>, vector<1x16x4xbf16> -> vector<16x16x4xbf16>
    %54 = tpu.concatenate %45, %48, %53 in 2 : vector<16x16x4xbf16>, vector<16x16x4xbf16>, vector<16x16x4xbf16> -> vector<16x16x12xbf16>
    %55 = tpu.concatenate %24, %54 in 2 : vector<16x16x12xbf16>, vector<16x16x12xbf16> -> vector<16x16x24xbf16>
    %56 = vector.shape_cast %55 : vector<16x16x24xbf16> to vector<256x24xbf16>
    %cst_48 = arith.constant 0.000000e+00 : f32
    %57 = vector.broadcast %cst_48 : f32 to vector<16x18x4xf32>
    %c0_49 = arith.constant 0 : index
    %c0_50 = arith.constant 0 : index
    %c0_51 = arith.constant 0 : index
    %58 = vector.load %arg12[%c0_49, %c0_50, %c0_51] : memref<16x18x4xf32, #tpu.memory_space<vmem>>, vector<16x18x4xf32>
    tpu.vector_store %arg12[%c0_49, %c0_50, %c0_51], %57 {strides = array<i32>} : memref<16x18x4xf32, #tpu.memory_space<vmem>>, vector<16x18x4xf32>,
    %c0_52 = arith.constant 0 : index
    %c0_53 = arith.constant 0 : index
    %c0_54 = arith.constant 0 : index
    %59 = vector.load %arg8[%c0_52, %c0_53, %c0_54] : memref<3x24x4xbf16, #tpu.memory_space<vmem>>, vector<1x24x4xbf16>
    %60 = vector.shape_cast %59 : vector<1x24x4xbf16> to vector<24x4xbf16>
    %cst_55 = arith.constant dense<0.000000e+00> : vector<256x4xf32>
    %61 = tpu.matmul %56, %60, %cst_55 {dimension_numbers = #tpu.dot_dimension_numbers<[1], [0], [0], [1], [0, 0, 1, 1], [], []>} : vector<256x24xbf16>, vector<24x4xbf16>, vector<256x4xf32> -> vector<256x4xf32>
    %62 = vector.shape_cast %61 : vector<256x4xf32> to vector<16x16x4xf32>
    %c0_56 = arith.constant 0 : index
    %c2 = arith.constant 2 : index
    %c0_57 = arith.constant 0 : index
    %63 = vector.load %arg12[%c0_56, %c2, %c0_57] : memref<16x18x4xf32, #tpu.memory_space<vmem>>, vector<16x16x4xf32>
    %64 = arith.addf %63, %62 : vector<16x16x4xf32>
    %c0_58 = arith.constant 0 : index
    %c2_59 = arith.constant 2 : index
    %c0_60 = arith.constant 0 : index
    %65 = vector.load %arg12[%c0_58, %c2_59, %c0_60] : memref<16x18x4xf32, #tpu.memory_space<vmem>>, vector<16x16x4xf32>
    tpu.vector_store %arg12[%c0_58, %c2_59, %c0_60], %64 {strides = array<i32>} : memref<16x18x4xf32, #tpu.memory_space<vmem>>, vector<16x16x4xf32>,
    %c1_61 = arith.constant 1 : index
    %c0_62 = arith.constant 0 : index
    %c0_63 = arith.constant 0 : index
    %66 = vector.load %arg8[%c1_61, %c0_62, %c0_63] : memref<3x24x4xbf16, #tpu.memory_space<vmem>>, vector<1x24x4xbf16>
    %67 = vector.shape_cast %66 : vector<1x24x4xbf16> to vector<24x4xbf16>
    %cst_64 = arith.constant dense<0.000000e+00> : vector<256x4xf32>
    %68 = tpu.matmul %56, %67, %cst_64 {dimension_numbers = #tpu.dot_dimension_numbers<[1], [0], [0], [1], [0, 0, 1, 1], [], []>} : vector<256x24xbf16>, vector<24x4xbf16>, vector<256x4xf32> -> vector<256x4xf32>
    %69 = vector.shape_cast %68 : vector<256x4xf32> to vector<16x16x4xf32>
    %c0_65 = arith.constant 0 : index
    %c1_66 = arith.constant 1 : index
    %c0_67 = arith.constant 0 : index
    %70 = vector.load %arg12[%c0_65, %c1_66, %c0_67] : memref<16x18x4xf32, #tpu.memory_space<vmem>>, vector<16x16x4xf32>
    %71 = arith.addf %70, %69 : vector<16x16x4xf32>
    %c0_68 = arith.constant 0 : index
    %c1_69 = arith.constant 1 : index
    %c0_70 = arith.constant 0 : index
    %72 = vector.load %arg12[%c0_68, %c1_69, %c0_70] : memref<16x18x4xf32, #tpu.memory_space<vmem>>, vector<16x16x4xf32>
    tpu.vector_store %arg12[%c0_68, %c1_69, %c0_70], %71 {strides = array<i32>} : memref<16x18x4xf32, #tpu.memory_space<vmem>>, vector<16x16x4xf32>,
    %c2_71 = arith.constant 2 : index
    %c0_72 = arith.constant 0 : index
    %c0_73 = arith.constant 0 : index
    %73 = vector.load %arg8[%c2_71, %c0_72, %c0_73] : memref<3x24x4xbf16, #tpu.memory_space<vmem>>, vector<1x24x4xbf16>
    %74 = vector.shape_cast %73 : vector<1x24x4xbf16> to vector<24x4xbf16>
    %cst_74 = arith.constant dense<0.000000e+00> : vector<256x4xf32>
    %75 = tpu.matmul %56, %74, %cst_74 {dimension_numbers = #tpu.dot_dimension_numbers<[1], [0], [0], [1], [0, 0, 1, 1], [], []>} : vector<256x24xbf16>, vector<24x4xbf16>, vector<256x4xf32> -> vector<256x4xf32>
    %76 = vector.shape_cast %75 : vector<256x4xf32> to vector<16x16x4xf32>
    %c0_75 = arith.constant 0 : index
    %c0_76 = arith.constant 0 : index
    %c0_77 = arith.constant 0 : index
    %77 = vector.load %arg12[%c0_75, %c0_76, %c0_77] : memref<16x18x4xf32, #tpu.memory_space<vmem>>, vector<16x16x4xf32>
    %78 = arith.addf %77, %76 : vector<16x16x4xf32>
    %c0_78 = arith.constant 0 : index
    %c0_79 = arith.constant 0 : index
    %c0_80 = arith.constant 0 : index
    %79 = vector.load %arg12[%c0_78, %c0_79, %c0_80] : memref<16x18x4xf32, #tpu.memory_space<vmem>>, vector<16x16x4xf32>
    tpu.vector_store %arg12[%c0_78, %c0_79, %c0_80], %78 {strides = array<i32>} : memref<16x18x4xf32, #tpu.memory_space<vmem>>, vector<16x16x4xf32>,
    %c0_81 = arith.constant 0 : index
    %c1_82 = arith.constant 1 : index
    %c0_83 = arith.constant 0 : index
    %80 = vector.load %arg12[%c0_81, %c1_82, %c0_83] : memref<16x18x4xf32, #tpu.memory_space<vmem>>, vector<16x16x4xf32>
    %c0_84 = arith.constant 0 : index
    %c0_85 = arith.constant 0 : index
    %81 = vector.load %arg9[%c0_84, %c0_85] : memref<1x4xf32, #tpu.memory_space<vmem>>, vector<1x4xf32>
    %82 = vector.shape_cast %81 : vector<1x4xf32> to vector<1x1x4xf32>
    %83 = vector.broadcast %82 : vector<1x1x4xf32> to vector<16x16x4xf32>
    %84 = arith.mulf %80, %83 : vector<16x16x4xf32>
    %c0_86 = arith.constant 0 : index
    %c0_87 = arith.constant 0 : index
    %85 = vector.load %arg10[%c0_86, %c0_87] : memref<1x4xf32, #tpu.memory_space<vmem>>, vector<1x4xf32>
    %86 = vector.shape_cast %85 : vector<1x4xf32> to vector<1x1x4xf32>
    %87 = vector.broadcast %86 : vector<1x1x4xf32> to vector<16x16x4xf32>
    %88 = arith.addf %84, %87 : vector<16x16x4xf32>
    %cst_88 = arith.constant 0.000000e+00 : f32
    %89 = vector.broadcast %cst_88 : f32 to vector<16x16x4xf32>
    %90 = arith.maximumf %88, %89 : vector<16x16x4xf32>
    %91 = arith.truncf %90 : vector<16x16x4xf32> to vector<16x16x4xbf16>
    %92 = vector.shape_cast %91 : vector<16x16x4xbf16> to vector<1x16x16x4xbf16>
    %c0_89 = arith.constant 0 : index
    %c0_90 = arith.constant 0 : index
    %c0_91 = arith.constant 0 : index
    %c0_92 = arith.constant 0 : index
    %93 = vector.load %arg11[%c0_89, %c0_90, %c0_91, %c0_92] : memref<1x16x16x4xbf16, #tpu.memory_space<vmem>>, vector<1x16x16x4xbf16>
    tpu.vector_store %arg11[%c0_89, %c0_90, %c0_91, %c0_92], %92 {strides = array<i32>} : memref<1x16x16x4xbf16, #tpu.memory_space<vmem>>, vector<1x16x16x4xbf16>,
    return
  }
  func.func @transform_0(%arg0: i32, %arg1: i32) -> (i32, i32, i32, i32) {
    %c0_i32 = arith.constant 0 : i32
    %c0_i32_0 = arith.constant 0 : i32
    %c0_i32_1 = arith.constant 0 : i32
    return %arg0, %arg1, %c0_i32, %c0_i32_0 : i32, i32, i32, i32
  }
  func.func @transform_1(%arg0: i32, %arg1: i32) -> (i32, i32, i32, i32) {
    %c16_i32 = arith.constant 16 : i32
    %0 = arith.muli %arg1, %c16_i32 : i32
    %c1_i32 = arith.constant 1 : i32
    %1 = arith.subi %0, %c1_i32 : i32
    %c0_i32 = arith.constant 0 : i32
    %2 = arith.maxsi %1, %c0_i32 : i32
    %c0_i32_0 = arith.constant 0 : i32
    %c0_i32_1 = arith.constant 0 : i32
    %c0_i32_2 = arith.constant 0 : i32
    return %arg0, %2, %c0_i32_0, %c0_i32_1 : i32, i32, i32, i32
  }
  func.func @transform_2(%arg0: i32, %arg1: i32) -> (i32, i32, i32, i32) {
    %c1_i32 = arith.constant 1 : i32
    %0 = arith.addi %arg1, %c1_i32 : i32
    %c16_i32 = arith.constant 16 : i32
    %1 = arith.muli %0, %c16_i32 : i32
    %c15_i32 = arith.constant 15 : i32
    %2 = arith.minsi %1, %c15_i32 : i32
    %c0_i32 = arith.constant 0 : i32
    %c0_i32_0 = arith.constant 0 : i32
    %c0_i32_1 = arith.constant 0 : i32
    return %arg0, %2, %c0_i32, %c0_i32_0 : i32, i32, i32, i32
  }
  func.func @transform_3(%arg0: i32, %arg1: i32) -> (i32, i32, i32, i32) {
    %c0_i32 = arith.constant 0 : i32
    %c0_i32_0 = arith.constant 0 : i32
    %c0_i32_1 = arith.constant 0 : i32
    return %arg0, %arg1, %c0_i32, %c0_i32_0 : i32, i32, i32, i32
  }
  func.func @transform_4(%arg0: i32, %arg1: i32) -> (i32, i32, i32, i32) {
    %c16_i32 = arith.constant 16 : i32
    %0 = arith.muli %arg1, %c16_i32 : i32
    %c1_i32 = arith.constant 1 : i32
    %1 = arith.subi %0, %c1_i32 : i32
    %c0_i32 = arith.constant 0 : i32
    %2 = arith.maxsi %1, %c0_i32 : i32
    %c0_i32_0 = arith.constant 0 : i32
    %c0_i32_1 = arith.constant 0 : i32
    %c0_i32_2 = arith.constant 0 : i32
    return %arg0, %2, %c0_i32_0, %c0_i32_1 : i32, i32, i32, i32
  }
  func.func @transform_5(%arg0: i32, %arg1: i32) -> (i32, i32, i32, i32) {
    %c1_i32 = arith.constant 1 : i32
    %0 = arith.addi %arg1, %c1_i32 : i32
    %c16_i32 = arith.constant 16 : i32
    %1 = arith.muli %0, %c16_i32 : i32
    %c15_i32 = arith.constant 15 : i32
    %2 = arith.minsi %1, %c15_i32 : i32
    %c0_i32 = arith.constant 0 : i32
    %c0_i32_0 = arith.constant 0 : i32
    %c0_i32_1 = arith.constant 0 : i32
    return %arg0, %2, %c0_i32, %c0_i32_0 : i32, i32, i32, i32
  }
  func.func @transform_6(%arg0: i32, %arg1: i32) -> (i32, i32, i32) {
    %c0_i32 = arith.constant 0 : i32
    %c0_i32_0 = arith.constant 0 : i32
    %c0_i32_1 = arith.constant 0 : i32
    %c0_i32_2 = arith.constant 0 : i32
    return %c0_i32, %c0_i32_0, %c0_i32_1 : i32, i32, i32
  }
  func.func @transform_7(%arg0: i32, %arg1: i32) -> (i32, i32) {
    %c0_i32 = arith.constant 0 : i32
    %c0_i32_0 = arith.constant 0 : i32
    %c0_i32_1 = arith.constant 0 : i32
    return %c0_i32, %c0_i32_0 : i32, i32
  }
  func.func @transform_8(%arg0: i32, %arg1: i32) -> (i32, i32) {
    %c0_i32 = arith.constant 0 : i32
    %c0_i32_0 = arith.constant 0 : i32
    %c0_i32_1 = arith.constant 0 : i32
    return %c0_i32, %c0_i32_0 : i32, i32
  }
  func.func @transform_9(%arg0: i32, %arg1: i32) -> (i32, i32, i32, i32) {
    %c0_i32 = arith.constant 0 : i32
    %c0_i32_0 = arith.constant 0 : i32
    %c0_i32_1 = arith.constant 0 : i32
    return %arg0, %arg1, %c0_i32, %c0_i32_0 : i32, i32, i32, i32
  }
}

module attributes {stable_mosaic.version = 11 : i64} {
  func.func @_conv3x3_bn_relu_kernel(%arg0: i32, %arg1: i32, %arg2: memref<1x16x16x4xbf16, #tpu.memory_space<vmem>>, %arg3: memref<1x1x16x4xbf16, #tpu.memory_space<vmem>>, %arg4: memref<1x1x16x4xbf16, #tpu.memory_space<vmem>>, %arg5: memref<3x12x4xbf16, #tpu.memory_space<vmem>>, %arg6: memref<1x4xf32, #tpu.memory_space<vmem>>, %arg7: memref<1x4xf32, #tpu.memory_space<vmem>>, %arg8: memref<1x16x16x4xf32, #tpu.memory_space<vmem>>, %arg9: memref<16x18x4xf32, #tpu.memory_space<vmem>>) attributes {dimension_semantics = [#tpu.dimension_semantics<parallel>, #tpu.dimension_semantics<parallel>], iteration_bounds = array<i64: 2, 1>, scalar_prefetch = 0 : i64, scratch_operands = 1 : i64, tpu.core_type = #tpu.core_type<tc>, window_params = [{transform_indices = @transform_0, window_bounds = array<i64: 1, 16, 16, 4>}, {transform_indices = @transform_1, window_bounds = array<i64: 1, 1, 16, 4>}, {transform_indices = @transform_2, window_bounds = array<i64: 1, 1, 16, 4>}, {pipeline_mode = #tpu.pipeline_mode<synchronous>, transform_indices = @transform_3, window_bounds = array<i64: 3, 12, 4>}, {pipeline_mode = #tpu.pipeline_mode<synchronous>, transform_indices = @transform_4, window_bounds = array<i64: 1, 4>}, {pipeline_mode = #tpu.pipeline_mode<synchronous>, transform_indices = @transform_5, window_bounds = array<i64: 1, 4>}, {transform_indices = @transform_6, window_bounds = array<i64: 1, 16, 16, 4>}]} {
    %c0_i32 = arith.constant 0 : i32
    %0 = arith.cmpi sgt, %arg1, %c0_i32 : i32
    %cst = arith.constant 1.000000e+00 : f32
    %cst_0 = arith.constant 0.000000e+00 : f32
    %1 = arith.select %0, %cst, %cst_0 : f32
    %2 = arith.truncf %1 : f32 to bf16
    %c0_i32_1 = arith.constant 0 : i32
    %3 = arith.cmpi slt, %arg1, %c0_i32_1 : i32
    %cst_2 = arith.constant 1.000000e+00 : f32
    %cst_3 = arith.constant 0.000000e+00 : f32
    %4 = arith.select %3, %cst_2, %cst_3 : f32
    %5 = arith.truncf %4 : f32 to bf16
    %c0 = arith.constant 0 : index
    %c0_4 = arith.constant 0 : index
    %c0_5 = arith.constant 0 : index
    %c0_6 = arith.constant 0 : index
    %6 = vector.load %arg3[%c0, %c0_4, %c0_5, %c0_6] : memref<1x1x16x4xbf16, #tpu.memory_space<vmem>>, vector<1x1x16x4xbf16>
    %7 = vector.shape_cast %6 : vector<1x1x16x4xbf16> to vector<16x4xbf16>
    %8 = vector.broadcast %2 : bf16 to vector<16x4xbf16>
    %9 = arith.mulf %7, %8 : vector<16x4xbf16>
    %c0_7 = arith.constant 0 : index
    %c0_8 = arith.constant 0 : index
    %c0_9 = arith.constant 0 : index
    %c0_10 = arith.constant 0 : index
    %10 = vector.load %arg4[%c0_7, %c0_8, %c0_9, %c0_10] : memref<1x1x16x4xbf16, #tpu.memory_space<vmem>>, vector<1x1x16x4xbf16>
    %11 = vector.shape_cast %10 : vector<1x1x16x4xbf16> to vector<16x4xbf16>
    %12 = vector.broadcast %5 : bf16 to vector<16x4xbf16>
    %13 = arith.mulf %11, %12 : vector<16x4xbf16>
    %14 = vector.shape_cast %9 : vector<16x4xbf16> to vector<1x16x4xbf16>
    %c0_11 = arith.constant 0 : index
    %c0_12 = arith.constant 0 : index
    %c0_13 = arith.constant 0 : index
    %c0_14 = arith.constant 0 : index
    %15 = vector.load %arg2[%c0_11, %c0_12, %c0_13, %c0_14] : memref<1x16x16x4xbf16, #tpu.memory_space<vmem>>, vector<1x15x16x4xbf16>
    %16 = vector.shape_cast %15 : vector<1x15x16x4xbf16> to vector<15x16x4xbf16>
    %17 = tpu.concatenate %14, %16 in 0 : vector<1x16x4xbf16>, vector<15x16x4xbf16> -> vector<16x16x4xbf16>
    %c0_15 = arith.constant 0 : index
    %c0_16 = arith.constant 0 : index
    %c0_17 = arith.constant 0 : index
    %c0_18 = arith.constant 0 : index
    %18 = vector.load %arg2[%c0_15, %c0_16, %c0_17, %c0_18] : memref<1x16x16x4xbf16, #tpu.memory_space<vmem>>, vector<1x16x16x4xbf16>
    %19 = vector.shape_cast %18 : vector<1x16x16x4xbf16> to vector<16x16x4xbf16>
    %c0_19 = arith.constant 0 : index
    %c1 = arith.constant 1 : index
    %c0_20 = arith.constant 0 : index
    %c0_21 = arith.constant 0 : index
    %20 = vector.load %arg2[%c0_19, %c1, %c0_20, %c0_21] : memref<1x16x16x4xbf16, #tpu.memory_space<vmem>>, vector<1x15x16x4xbf16>
    %21 = vector.shape_cast %20 : vector<1x15x16x4xbf16> to vector<15x16x4xbf16>
    %22 = vector.shape_cast %13 : vector<16x4xbf16> to vector<1x16x4xbf16>
    %23 = tpu.concatenate %21, %22 in 0 : vector<15x16x4xbf16>, vector<1x16x4xbf16> -> vector<16x16x4xbf16>
    %24 = tpu.concatenate %17, %19, %23 in 2 : vector<16x16x4xbf16>, vector<16x16x4xbf16>, vector<16x16x4xbf16> -> vector<16x16x12xbf16>
    %25 = vector.shape_cast %24 : vector<16x16x12xbf16> to vector<256x12xbf16>
    %cst_22 = arith.constant 0.000000e+00 : f32
    %26 = vector.broadcast %cst_22 : f32 to vector<16x18x4xf32>
    %c0_23 = arith.constant 0 : index
    %c0_24 = arith.constant 0 : index
    %c0_25 = arith.constant 0 : index
    %27 = vector.load %arg9[%c0_23, %c0_24, %c0_25] : memref<16x18x4xf32, #tpu.memory_space<vmem>>, vector<16x18x4xf32>
    tpu.vector_store %arg9[%c0_23, %c0_24, %c0_25], %26 {strides = array<i32>} : memref<16x18x4xf32, #tpu.memory_space<vmem>>, vector<16x18x4xf32>,
    %c0_26 = arith.constant 0 : index
    %c0_27 = arith.constant 0 : index
    %c0_28 = arith.constant 0 : index
    %28 = vector.load %arg5[%c0_26, %c0_27, %c0_28] : memref<3x12x4xbf16, #tpu.memory_space<vmem>>, vector<1x12x4xbf16>
    %29 = vector.shape_cast %28 : vector<1x12x4xbf16> to vector<12x4xbf16>
    %cst_29 = arith.constant dense<0.000000e+00> : vector<256x4xf32>
    %30 = tpu.matmul %25, %29, %cst_29 {dimension_numbers = #tpu.dot_dimension_numbers<[1], [0], [0], [1], [0, 0, 1, 1], [], []>} : vector<256x12xbf16>, vector<12x4xbf16>, vector<256x4xf32> -> vector<256x4xf32>
    %31 = vector.shape_cast %30 : vector<256x4xf32> to vector<16x16x4xf32>
    %c0_30 = arith.constant 0 : index
    %c2 = arith.constant 2 : index
    %c0_31 = arith.constant 0 : index
    %32 = vector.load %arg9[%c0_30, %c2, %c0_31] : memref<16x18x4xf32, #tpu.memory_space<vmem>>, vector<16x16x4xf32>
    %33 = arith.addf %32, %31 : vector<16x16x4xf32>
    %c0_32 = arith.constant 0 : index
    %c2_33 = arith.constant 2 : index
    %c0_34 = arith.constant 0 : index
    %34 = vector.load %arg9[%c0_32, %c2_33, %c0_34] : memref<16x18x4xf32, #tpu.memory_space<vmem>>, vector<16x16x4xf32>
    tpu.vector_store %arg9[%c0_32, %c2_33, %c0_34], %33 {strides = array<i32>} : memref<16x18x4xf32, #tpu.memory_space<vmem>>, vector<16x16x4xf32>,
    %c1_35 = arith.constant 1 : index
    %c0_36 = arith.constant 0 : index
    %c0_37 = arith.constant 0 : index
    %35 = vector.load %arg5[%c1_35, %c0_36, %c0_37] : memref<3x12x4xbf16, #tpu.memory_space<vmem>>, vector<1x12x4xbf16>
    %36 = vector.shape_cast %35 : vector<1x12x4xbf16> to vector<12x4xbf16>
    %cst_38 = arith.constant dense<0.000000e+00> : vector<256x4xf32>
    %37 = tpu.matmul %25, %36, %cst_38 {dimension_numbers = #tpu.dot_dimension_numbers<[1], [0], [0], [1], [0, 0, 1, 1], [], []>} : vector<256x12xbf16>, vector<12x4xbf16>, vector<256x4xf32> -> vector<256x4xf32>
    %38 = vector.shape_cast %37 : vector<256x4xf32> to vector<16x16x4xf32>
    %c0_39 = arith.constant 0 : index
    %c1_40 = arith.constant 1 : index
    %c0_41 = arith.constant 0 : index
    %39 = vector.load %arg9[%c0_39, %c1_40, %c0_41] : memref<16x18x4xf32, #tpu.memory_space<vmem>>, vector<16x16x4xf32>
    %40 = arith.addf %39, %38 : vector<16x16x4xf32>
    %c0_42 = arith.constant 0 : index
    %c1_43 = arith.constant 1 : index
    %c0_44 = arith.constant 0 : index
    %41 = vector.load %arg9[%c0_42, %c1_43, %c0_44] : memref<16x18x4xf32, #tpu.memory_space<vmem>>, vector<16x16x4xf32>
    tpu.vector_store %arg9[%c0_42, %c1_43, %c0_44], %40 {strides = array<i32>} : memref<16x18x4xf32, #tpu.memory_space<vmem>>, vector<16x16x4xf32>,
    %c2_45 = arith.constant 2 : index
    %c0_46 = arith.constant 0 : index
    %c0_47 = arith.constant 0 : index
    %42 = vector.load %arg5[%c2_45, %c0_46, %c0_47] : memref<3x12x4xbf16, #tpu.memory_space<vmem>>, vector<1x12x4xbf16>
    %43 = vector.shape_cast %42 : vector<1x12x4xbf16> to vector<12x4xbf16>
    %cst_48 = arith.constant dense<0.000000e+00> : vector<256x4xf32>
    %44 = tpu.matmul %25, %43, %cst_48 {dimension_numbers = #tpu.dot_dimension_numbers<[1], [0], [0], [1], [0, 0, 1, 1], [], []>} : vector<256x12xbf16>, vector<12x4xbf16>, vector<256x4xf32> -> vector<256x4xf32>
    %45 = vector.shape_cast %44 : vector<256x4xf32> to vector<16x16x4xf32>
    %c0_49 = arith.constant 0 : index
    %c0_50 = arith.constant 0 : index
    %c0_51 = arith.constant 0 : index
    %46 = vector.load %arg9[%c0_49, %c0_50, %c0_51] : memref<16x18x4xf32, #tpu.memory_space<vmem>>, vector<16x16x4xf32>
    %47 = arith.addf %46, %45 : vector<16x16x4xf32>
    %c0_52 = arith.constant 0 : index
    %c0_53 = arith.constant 0 : index
    %c0_54 = arith.constant 0 : index
    %48 = vector.load %arg9[%c0_52, %c0_53, %c0_54] : memref<16x18x4xf32, #tpu.memory_space<vmem>>, vector<16x16x4xf32>
    tpu.vector_store %arg9[%c0_52, %c0_53, %c0_54], %47 {strides = array<i32>} : memref<16x18x4xf32, #tpu.memory_space<vmem>>, vector<16x16x4xf32>,
    %c0_55 = arith.constant 0 : index
    %c1_56 = arith.constant 1 : index
    %c0_57 = arith.constant 0 : index
    %49 = vector.load %arg9[%c0_55, %c1_56, %c0_57] : memref<16x18x4xf32, #tpu.memory_space<vmem>>, vector<16x16x4xf32>
    %c0_58 = arith.constant 0 : index
    %c0_59 = arith.constant 0 : index
    %50 = vector.load %arg6[%c0_58, %c0_59] : memref<1x4xf32, #tpu.memory_space<vmem>>, vector<1x4xf32>
    %51 = vector.shape_cast %50 : vector<1x4xf32> to vector<1x1x4xf32>
    %52 = vector.broadcast %51 : vector<1x1x4xf32> to vector<16x16x4xf32>
    %53 = arith.mulf %49, %52 : vector<16x16x4xf32>
    %c0_60 = arith.constant 0 : index
    %c0_61 = arith.constant 0 : index
    %54 = vector.load %arg7[%c0_60, %c0_61] : memref<1x4xf32, #tpu.memory_space<vmem>>, vector<1x4xf32>
    %55 = vector.shape_cast %54 : vector<1x4xf32> to vector<1x1x4xf32>
    %56 = vector.broadcast %55 : vector<1x1x4xf32> to vector<16x16x4xf32>
    %57 = arith.addf %53, %56 : vector<16x16x4xf32>
    %cst_62 = arith.constant 0.000000e+00 : f32
    %58 = vector.broadcast %cst_62 : f32 to vector<16x16x4xf32>
    %59 = arith.maximumf %57, %58 : vector<16x16x4xf32>
    %60 = vector.shape_cast %59 : vector<16x16x4xf32> to vector<1x16x16x4xf32>
    %c0_63 = arith.constant 0 : index
    %c0_64 = arith.constant 0 : index
    %c0_65 = arith.constant 0 : index
    %c0_66 = arith.constant 0 : index
    %61 = vector.load %arg8[%c0_63, %c0_64, %c0_65, %c0_66] : memref<1x16x16x4xf32, #tpu.memory_space<vmem>>, vector<1x16x16x4xf32>
    tpu.vector_store %arg8[%c0_63, %c0_64, %c0_65, %c0_66], %60 {strides = array<i32>} : memref<1x16x16x4xf32, #tpu.memory_space<vmem>>, vector<1x16x16x4xf32>,
    return
  }
  func.func @transform_0(%arg0: i32, %arg1: i32) -> (i32, i32, i32, i32) {
    %c0_i32 = arith.constant 0 : i32
    %c0_i32_0 = arith.constant 0 : i32
    %c0_i32_1 = arith.constant 0 : i32
    return %arg0, %arg1, %c0_i32, %c0_i32_0 : i32, i32, i32, i32
  }
  func.func @transform_1(%arg0: i32, %arg1: i32) -> (i32, i32, i32, i32) {
    %c16_i32 = arith.constant 16 : i32
    %0 = arith.muli %arg1, %c16_i32 : i32
    %c1_i32 = arith.constant 1 : i32
    %1 = arith.subi %0, %c1_i32 : i32
    %c0_i32 = arith.constant 0 : i32
    %2 = arith.maxsi %1, %c0_i32 : i32
    %c0_i32_0 = arith.constant 0 : i32
    %c0_i32_1 = arith.constant 0 : i32
    %c0_i32_2 = arith.constant 0 : i32
    return %arg0, %2, %c0_i32_0, %c0_i32_1 : i32, i32, i32, i32
  }
  func.func @transform_2(%arg0: i32, %arg1: i32) -> (i32, i32, i32, i32) {
    %c1_i32 = arith.constant 1 : i32
    %0 = arith.addi %arg1, %c1_i32 : i32
    %c16_i32 = arith.constant 16 : i32
    %1 = arith.muli %0, %c16_i32 : i32
    %c15_i32 = arith.constant 15 : i32
    %2 = arith.minsi %1, %c15_i32 : i32
    %c0_i32 = arith.constant 0 : i32
    %c0_i32_0 = arith.constant 0 : i32
    %c0_i32_1 = arith.constant 0 : i32
    return %arg0, %2, %c0_i32, %c0_i32_0 : i32, i32, i32, i32
  }
  func.func @transform_3(%arg0: i32, %arg1: i32) -> (i32, i32, i32) {
    %c0_i32 = arith.constant 0 : i32
    %c0_i32_0 = arith.constant 0 : i32
    %c0_i32_1 = arith.constant 0 : i32
    %c0_i32_2 = arith.constant 0 : i32
    return %c0_i32, %c0_i32_0, %c0_i32_1 : i32, i32, i32
  }
  func.func @transform_4(%arg0: i32, %arg1: i32) -> (i32, i32) {
    %c0_i32 = arith.constant 0 : i32
    %c0_i32_0 = arith.constant 0 : i32
    %c0_i32_1 = arith.constant 0 : i32
    return %c0_i32, %c0_i32_0 : i32, i32
  }
  func.func @transform_5(%arg0: i32, %arg1: i32) -> (i32, i32) {
    %c0_i32 = arith.constant 0 : i32
    %c0_i32_0 = arith.constant 0 : i32
    %c0_i32_1 = arith.constant 0 : i32
    return %c0_i32, %c0_i32_0 : i32, i32
  }
  func.func @transform_6(%arg0: i32, %arg1: i32) -> (i32, i32, i32, i32) {
    %c0_i32 = arith.constant 0 : i32
    %c0_i32_0 = arith.constant 0 : i32
    %c0_i32_1 = arith.constant 0 : i32
    return %arg0, %arg1, %c0_i32, %c0_i32_0 : i32, i32, i32, i32
  }
}

</mosaic_0001>

<llo_original>
// kernel: tile.7
$region0: #{tile.7}
  %s0 = inlined_call_operand.vmem [shape: f32[2,4], index: 0, kind: input, shape index: {}]
  %s1 = inlined_call_operand.vmem [shape: f32[1,8], index: 1, kind: output, shape index: {}]
  $region1: #{tile.7} parent=0
    #allocation0 [shape = 'u8[4096]{0}', space=vmem, size = 0x1000, scoped, tag = 'scoped mem for output reshape']
    #allocation1 [shape = 'u8[4096]{0}', space=vmem, size = 0x1000, scoped, tag = 'scoped mem for input reshape']
    %s3 = ssub.s32 4, 1
    %v4 = vld [vmem:[%s0] sm:%s3]
    %5 = vst [vmem:[#allocation1] sm:%s3] %v4
    %v6 = vld [vmem:[#allocation1] sm:$0x1]
    %vm7 = vcmask 31744
    %8 = vst.msk [vmem:[#allocation0] sm:$0x1] %vm7, %v6
    %s9 = scalar_lea.vmem [#allocation1], 1
    %v10 = vld [vmem:[%s9] sm:$0x1]
    %11 = vrot.lane.b32.xlu0 %v10, 4
    %v12 = vpop.permute.xlu0 %11
    %vm13 = vcmask 64544
    %14 = vst.msk [vmem:[#allocation0] sm:$0x1] %vm13, %v12
    %s16 = ssub.s32 2, 1
    %v17 = vld [vmem:[#allocation0] sm:%s16]
    %s19 = ssub.s32 2, 1
    %20 = vst [vmem:[%s1] sm:%s19] %v17

// kernel: tile.6
$region0: #{tile.6}
  #allocation0 [shape = 's32[1]{0}', space=sflag, size = 0x4, scoped, tag = 'scoped memory for tile.6']
  %s0 = inlined_call_operand.vmem [shape: f32[4], index: 0, kind: input, shape index: {}]
  %s1 = inlined_call_operand.vmem [shape: f32[2,4], index: 1, kind: output, shape index: {}]
  // Predicated region
  $region2: #{tile.6} parent=0 // pred_check
    _
  $region3: #{tile.6} parent=0 // pred_check_branch
    %3 = sbr.rel (0) target = $region5
  $region4: #{tile.6} parent=0 // pred_region
    _
  $region5: #{tile.6} parent=0 // pred_fallthru
    _
  %v4 = vld [vmem:[%s0] ss:$0 sm:$0xff]
  %5 = vst [vmem:[%s1] sm:$0x3] %v4

// kernel: upconv_forward.3
$region0: #{upconv_forward.3}
  #allocation0 [shape = 'u32[]', space=smem, size = 0x4, offset = 0x4, fixed_abs, tag = 'smem constant byte address 0x4 - core index']
  #allocation1 [shape = 'u32[72,128]{1,0:T(1,128)}', space=vmem, size = 0x9000, scoped, tag = 'internal scratch']
  %s0 = inlined_call_operand.vmem [shape: f32[2,8,8,8], index: 0, kind: input, shape index: {}]
  %s1 = inlined_call_operand.vmem [shape: bf16[8,8], index: 1, kind: input, shape index: {}]
  %s2 = inlined_call_operand.vmem [shape: bf16[8,8], index: 2, kind: input, shape index: {}]
  %s3 = inlined_call_operand.vmem [shape: f32[1,8], index: 3, kind: input, shape index: {}]
  %s4 = inlined_call_operand.vmem [shape: bf16[2,8,2,8,8], index: 4, kind: output, shape index: {}]
  %s5 = sld [smem:[#allocation0]]
  $region49: #{upconv_forward.3} parent=0
    _
  %s7 = ssub.s32 1, %s5
  %s8 = scalar_select 0, %s7, %s5
  loop: start=0, step=1, limit=4
  $region2: #{upconv_forward.3} parent=0 // loop_pre_header
    _
  $region3: #{upconv_forward.3} parent=0 // loop_header
    %s10 = sphi 0, %s14
    %p11 = scmp.ge.s32.totalorder %s10, 4
    %s17 = sphi 0, %s29
    %s18 = sphi 0, %s25
    %s19 = sphi 0, %s17
    %s20 = sphi 0, %s18
    %s21 = sphi 0, %s19
    %s22 = sphi 0, %s20
    %s34 = sphi 0, %s36
    %s37 = sphi 0, %s34
    %s38 = sphi 0, %s37
    %s54 = sphi 0, %s38
    %s58 = sphi 0, %s58
    %s60 = sphi 0, %s58
    %s61 = sphi 0, %s60
    %s75 = sphi 0, %s61
    %s79 = sphi 0, %s79
    %s81 = sphi 0, %s79
    %s82 = sphi 0, %s81
    %s96 = sphi 0, %s82
    %s100 = sphi 0, %s100
    %s102 = sphi 0, %s100
    %s103 = sphi 0, %s102
    %s117 = sphi 0, %s103
    %s125 = sphi 0, %s127
    %s128 = sphi 0, %s125
    %s129 = sphi 0, %s128
    %s145 = sphi 0, %s129
  $region4: #{upconv_forward.3} parent=0 // loop_header_branch
    %13 = sbr.rel (%p11) target = $region8
  $region5: #{upconv_forward.3} parent=0 // loop_body
    %s15 = ssub.s32 %s10, 1
    %s16 = ssub.s32 %s10, 2
    %s23 = sadd.s32 1, %s18
    %p24 = scmp.ge.s32.totalorder %s23, 1
    %s25 = scalar_select %p24, 0, %s23
    %s26 = sadd.s32 1, %s17
    %s27 = scalar_select %p24, %s26, %s17
    %p28 = scmp.ge.s32.totalorder %s27, 2
    %s29 = scalar_select %p28, 0, %s27
    %s30 = ssub.s32 %s17, %s29
    %s31 = ssub.s32 %s18, %s25
    %s32 = sor.u32 %s30, %s31
    %p33 = scmp.eq.s32.totalorder %s32, 0
    %s35 = sadd.s32 %s34, 1
    %s36 = scalar_select %p33, %s34, %s35
    %p39 = pneg %p33
    %p40 = scmp.eq.s32.totalorder %s10, 1
    %p41 = por %p39, %p40
    %p42 = scmp.ne.s32.totalorder %s34, %s37
    %p43 = scmp.eq.s32.totalorder %s10, 0
    %p44 = por %p42, %p43
    %p45 = scmp.ne.s32.totalorder %s34, %s37
    %p46 = scmp.eq.s32.totalorder %s15, 1
    %p47 = por %p45, %p46
    %p48 = scmp.ne.s32.totalorder %s37, %s38
    %p49 = scmp.eq.s32.totalorder %s15, 0
    %p50 = por %p48, %p49
    %p51 = scmp.ne.s32.totalorder %s37, %s38
    %p52 = scmp.eq.s32.totalorder %s16, 1
    %p53 = por %p51, %p52
    %p55 = scmp.ne.s32.totalorder %s38, %s54
    %p56 = scmp.eq.s32.totalorder %s16, 0
    %p57 = por %p55, %p56
    %s59 = sadd.s32 %s58, 1
    %p62 = scmp.eq.s32.totalorder %s10, 1
    %p63 = scmp.ne.s32.totalorder %s58, %s60
    %p64 = scmp.eq.s32.totalorder %s10, 0
    %p65 = por %p63, %p64
    %p66 = scmp.ne.s32.totalorder %s58, %s60
    %p67 = scmp.eq.s32.totalorder %s15, 1
    %p68 = por %p66, %p67
    %p69 = scmp.ne.s32.totalorder %s60, %s61
    %p70 = scmp.eq.s32.totalorder %s15, 0
    %p71 = por %p69, %p70
    %p72 = scmp.ne.s32.totalorder %s60, %s61
    %p73 = scmp.eq.s32.totalorder %s16, 1
    %p74 = por %p72, %p73
    %p76 = scmp.ne.s32.totalorder %s61, %s75
    %p77 = scmp.eq.s32.totalorder %s16, 0
    %p78 = por %p76, %p77
    %s80 = sadd.s32 %s79, 1
    %p83 = scmp.eq.s32.totalorder %s10, 1
    %p84 = scmp.ne.s32.totalorder %s79, %s81
    %p85 = scmp.eq.s32.totalorder %s10, 0
    %p86 = por %p84, %p85
    %p87 = scmp.ne.s32.totalorder %s79, %s81
    %p88 = scmp.eq.s32.totalorder %s15, 1
    %p89 = por %p87, %p88
    %p90 = scmp.ne.s32.totalorder %s81, %s82
    %p91 = scmp.eq.s32.totalorder %s15, 0
    %p92 = por %p90, %p91
    %p93 = scmp.ne.s32.totalorder %s81, %s82
    %p94 = scmp.eq.s32.totalorder %s16, 1
    %p95 = por %p93, %p94
    %p97 = scmp.ne.s32.totalorder %s82, %s96
    %p98 = scmp.eq.s32.totalorder %s16, 0
    %p99 = por %p97, %p98
    %s101 = sadd.s32 %s100, 1
    %p104 = scmp.eq.s32.totalorder %s10, 1
    %p105 = scmp.ne.s32.totalorder %s100, %s102
    %p106 = scmp.eq.s32.totalorder %s10, 0
    %p107 = por %p105, %p106
    %p108 = scmp.ne.s32.totalorder %s100, %s102
    %p109 = scmp.eq.s32.totalorder %s15, 1
    %p110 = por %p108, %p109
    %p111 = scmp.ne.s32.totalorder %s102, %s103
    %p112 = scmp.eq.s32.totalorder %s15, 0
    %p113 = por %p111, %p112
    %p114 = scmp.ne.s32.totalorder %s102, %s103
    %p115 = scmp.eq.s32.totalorder %s16, 1
    %p116 = por %p114, %p115
    %p118 = scmp.ne.s32.totalorder %s103, %s117
    %p119 = scmp.eq.s32.totalorder %s16, 0
    %p120 = por %p118, %p119
    %s121 = ssub.s32 %s17, %s29
    %s122 = ssub.s32 %s18, %s25
    %s123 = sor.u32 %s121, %s122
    %p124 = scmp.eq.s32.totalorder %s123, 0
    %s126 = sadd.s32 %s125, 1
    %s127 = scalar_select %p124, %s125, %s126
    %p130 = pneg %p124
    %p131 = scmp.eq.s32.totalorder %s10, 1
    %p132 = por %p130, %p131
    %p133 = scmp.ne.s32.totalorder %s125, %s128
    %p134 = scmp.eq.s32.totalorder %s10, 0
    %p135 = por %p133, %p134
    %p136 = scmp.ne.s32.totalorder %s125, %s128
    %p137 = scmp.eq.s32.totalorder %s15, 1
    %p138 = por %p136, %p137
    %p139 = scmp.ne.s32.totalorder %s128, %s129
    %p140 = scmp.eq.s32.totalorder %s15, 0
    %p141 = por %p139, %p140
    %p142 = scmp.ne.s32.totalorder %s128, %s129
    %p143 = scmp.eq.s32.totalorder %s16, 1
    %p144 = por %p142, %p143
    %p146 = scmp.ne.s32.totalorder %s129, %s145
    %p147 = scmp.eq.s32.totalorder %s16, 0
    %p148 = por %p146, %p147
    %p149 = scmp.le.s32.totalorder 1, %s10
    %p150 = scmp.lt.s32.totalorder %s10, 3
    %p151 = pnand %p149, %p150
    %p152 = pneg %p151
    // Predicated region
    $region9: #{upconv_forward.3} parent=5 // pred_check
      _
    $region10: #{upconv_forward.3} parent=5 // pred_check_branch
      %154 = sbr.rel (%p151) target = $region12
    $region11: #{upconv_forward.3} parent=5 // pred_region
      %s155 = ssub.s32 %s10, 1
      // Predicated region
      $region13: #{upconv_forward.3} parent=11 // pred_check
        %p156 = pneg %p71
      $region14: #{upconv_forward.3} parent=11 // pred_check_branch
        %158 = sbr.rel (%p156) target = $region16
      $region15: #{upconv_forward.3} parent=11 // pred_region
        _
      $region16: #{upconv_forward.3} parent=11 // pred_fallthru
        _
      // Predicated region
      $region17: #{upconv_forward.3} parent=11 // pred_check
        %p159 = pneg %p92
      $region18: #{upconv_forward.3} parent=11 // pred_check_branch
        %161 = sbr.rel (%p159) target = $region20
      $region19: #{upconv_forward.3} parent=11 // pred_region
        _
      $region20: #{upconv_forward.3} parent=11 // pred_fallthru
        _
      // Predicated region
      $region21: #{upconv_forward.3} parent=11 // pred_check
        %p162 = pneg %p113
      $region22: #{upconv_forward.3} parent=11 // pred_check_branch
        %164 = sbr.rel (%p162) target = $region24
      $region23: #{upconv_forward.3} parent=11 // pred_region
        _
      $region24: #{upconv_forward.3} parent=11 // pred_fallthru
        _
    $region12: #{upconv_forward.3} parent=5 // pred_fallthru
      _
    %p165 = scmp.lt.s32.totalorder %s10, 2
    // Predicated region
    $region25: #{upconv_forward.3} parent=5 // pred_check
      %p166 = pneg %p165
    $region26: #{upconv_forward.3} parent=5 // pred_check_branch
      %168 = sbr.rel (%p166) target = $region28
    $region27: #{upconv_forward.3} parent=5 // pred_region
      // Predicated region
      $region29: #{upconv_forward.3} parent=27 // pred_check
        %p169 = pneg %p44
      $region30: #{upconv_forward.3} parent=27 // pred_check_branch
        %171 = sbr.rel (%p169) target = $region32
      $region31: #{upconv_forward.3} parent=27 // pred_region
        %s172 = smul.u32 8, %s18
        %p173 = scmp.lt.s32.totalorder %s17, 1
        %s174 = scalar_select %p173, %s17, 1
        %p175 = scmp.lt.s32.totalorder %s172, 7
        %s176 = scalar_select %p175, %s172, 7
        %s177 = smul.addr %s174, 8
        %s178 = sadd.s32 %s176, %s177
        %s179 = smul.addr %s178, 8
        %s180 = scalar_lea.vmem %s0, %s179
        %s181 = smul.u32 8, %s18
      $region32: #{upconv_forward.3} parent=27 // pred_fallthru
        _
    $region28: #{upconv_forward.3} parent=5 // pred_fallthru
      _
    %p182 = scmp.le.s32.totalorder 1, %s10
    %p183 = scmp.lt.s32.totalorder %s10, 3
    %p184 = pnand %p182, %p183
    %p185 = pneg %p184
    // Predicated region
    $region33: #{upconv_forward.3} parent=5 // pred_check
      _
    $region34: #{upconv_forward.3} parent=5 // pred_check_branch
      %187 = sbr.rel (%p184) target = $region36
    $region35: #{upconv_forward.3} parent=5 // pred_region
      %s188 = ssub.s32 %s10, 1
      %s189 = smul.u32 8, %s20
      %p190 = scmp.lt.s32.totalorder %s19, 1
      %s191 = scalar_select %p190, %s19, 1
      %p192 = scmp.lt.s32.totalorder %s189, 7
      %s193 = scalar_select %p192, %s189, 7
      %s194 = smul.addr %s191, 8
      %s195 = sadd.s32 %s193, %s194
      %s196 = smul.addr %s195, 8
      %s197 = scalar_lea.vmem %s0, %s196
      %p198 = pneg %p50
      %p199 = pneg %p47
      %p200 = pneg %p71
      %p201 = pneg %p68
      %p202 = pneg %p92
      %p203 = pneg %p89
      %p204 = pneg %p113
      %p205 = pneg %p110
      %p206 = pneg %p141
      %p207 = pneg %p138
      %s208 = smul.u32 8, %s20
      %p209 = scmp.lt.s32.totalorder %s19, 1
      %s210 = scalar_select %p209, %s19, 1
      %p211 = scmp.lt.s32.totalorder %s208, 7
      %s212 = scalar_select %p211, %s208, 7
      %s213 = smul.addr %s212, 2
      %s214 = smul.addr %s210, 16
      %s215 = sadd.s32 %s213, %s214
      %s216 = smul.addr %s215, 4
      %s217 = scalar_lea.vmem %s4, %s216
      %s218 = smul.u32 8, %s20
      %p219 = scmp.lt.s32.totalorder %s19, 1
      %s220 = scalar_select %p219, %s19, 1
      %p221 = scmp.lt.s32.totalorder %s218, 7
      %s222 = scalar_select %p221, %s218, 7
      %s223 = smul.addr %s220, 8
      %s224 = sadd.s32 %s222, %s223
      %s225 = smul.addr %s224, 8
      %s226 = scalar_lea.vmem %s0, %s225
      %s227 = smul.u32 8, %s20
      %s228 = smul.u32 8, %s20
      %p229 = scmp.lt.s32.totalorder %s19, 1
      %s230 = scalar_select %p229, %s19, 1
      %p231 = scmp.lt.s32.totalorder %s228, 7
      %s232 = scalar_select %p231, %s228, 7
      %s233 = smul.addr %s232, 2
      %s234 = smul.addr %s230, 16
      %s235 = sadd.s32 %s233, %s234
      %s236 = smul.addr %s235, 4
      %s237 = scalar_lea.vmem %s4, %s236
      %s238 = smul.u32 8, %s20
      %v240 = vld [vmem:[%s226] sm:$0xff]
      %v241 = vld [vmem:[%s226 + $0x8] sm:$0xff]
      %v242 = vld [vmem:[%s226 + $0x10] sm:$0xff]
      %v243 = vld [vmem:[%s226 + $0x18] sm:$0xff]
      %v244 = vld [vmem:[%s226 + $0x20] sm:$0xff]
      %v245 = vld [vmem:[%s226 + $0x28] sm:$0xff]
      %v246 = vld [vmem:[%s226 + $0x30] sm:$0xff]
      %v247 = vld [vmem:[%s226 + $0x38] sm:$0xff]
      %v248 = vpack.c.bf16 %v241, %v240
      %v249 = vpack.c.bf16 %v243, %v242
      %v250 = vpack.c.bf16 %v245, %v244
      %v251 = vpack.c.bf16 %v247, %v246
      %v252 = vld [vmem:[%s3] sm:$0x1]
      %v253 = vld [vmem:[%s1] sm:$0xf]
      %v255 = vperm.slane %v252, 0
      %vm257 = vcmask 64512
      %v259 = vsel %vm257, %v248, 0
      %v262 = vsel %vm257, %v249, 0
      %v265 = vsel %vm257, %v250, 0
      %v268 = vsel %vm257, %v251, 0
      %vm270 = vcmask 1043456
      %v272 = vsel %vm270, %v253, 0
      %274 = vmatpush.bf16.msra.mxu0 0
      %275 = vmatpush.bf16.msra.mxu0 0
      %276 = vmatpush.bf16.msra.mxu0 0
      %277 = vmatpush.bf16.msra.mxu0 0
      %278 = vmatpush.bf16.msra.mxu0 0
      %279 = vmatpush.bf16.msra.mxu0 0
      %280 = vmatpush.bf16.msra.mxu0 0
      %281 = vmatpush.bf16.msra.mxu0 %v272
      %282 = vmatmul.bf16.gmra.mxu0 %v259
      %v283 = vpop.f32.mrf.mxu0
      %v284 = vadd.f32 %v255, %v283
      %v285 = vpop.f32.mrf.mxu0
      %v286 = vadd.f32 %v255, %v285
      %287 = vmatmul.bf16.gmra.mxu0 %v262
      %v288 = vpop.f32.mrf.mxu0
      %v289 = vadd.f32 %v255, %v288
      %v290 = vpop.f32.mrf.mxu0
      %v291 = vadd.f32 %v255, %v290
      %292 = vmatmul.bf16.gmra.mxu0 %v265
      %v293 = vpop.f32.mrf.mxu0
      %v294 = vadd.f32 %v255, %v293
      %v295 = vpop.f32.mrf.mxu0
      %v296 = vadd.f32 %v255, %v295
      %297 = vmatmul.bf16.gmra.mxu0 %v268
      %v298 = vpop.f32.mrf.mxu0
      %v299 = vadd.f32 %v255, %v298
      %v300 = vpop.f32.mrf.mxu0
      %v301 = vadd.f32 %v255, %v300
      %302 = vdwg.mxu0
      %v303 = vld [vmem:[%s2] sm:$0xf]
      %v305 = vsel %vm270, %v303, 0
      %307 = vmatpush.bf16.msra.mxu0 0
      %308 = vmatpush.bf16.msra.mxu0 0
      %309 = vmatpush.bf16.msra.mxu0 0
      %310 = vmatpush.bf16.msra.mxu0 0
      %311 = vmatpush.bf16.msra.mxu0 0
      %312 = vmatpush.bf16.msra.mxu0 0
      %313 = vmatpush.bf16.msra.mxu0 0
      %314 = vmatpush.bf16.msra.mxu0 %v305
      %315 = vmatmul.bf16.gmra.mxu0 %v259
      %v316 = vpop.f32.mrf.mxu0
      %v317 = vadd.f32 %v255, %v316
      %v318 = vpop.f32.mrf.mxu0
      %v319 = vadd.f32 %v255, %v318
      %320 = vmatmul.bf16.gmra.mxu0 %v262
      %v321 = vpop.f32.mrf.mxu0
      %v322 = vadd.f32 %v255, %v321
      %v323 = vpop.f32.mrf.mxu0
      %v324 = vadd.f32 %v255, %v323
      %325 = vmatmul.bf16.gmra.mxu0 %v265
      %v326 = vpop.f32.mrf.mxu0
      %v327 = vadd.f32 %v255, %v326
      %v328 = vpop.f32.mrf.mxu0
      %v329 = vadd.f32 %v255, %v328
      %330 = vmatmul.bf16.gmra.mxu0 %v268
      %v331 = vpop.f32.mrf.mxu0
      %v332 = vadd.f32 %v255, %v331
      %v333 = vpop.f32.mrf.mxu0
      %v334 = vadd.f32 %v255, %v333
      %335 = vdwg.mxu0
      %v336 = vpack.c.bf16 %v284, %v284
      %v337 = vpack.c.bf16 %v286, %v286
      %v338 = vpack.c.bf16 %v289, %v289
      %v339 = vpack.c.bf16 %v291, %v291
      %v340 = vpack.c.bf16 %v294, %v294
      %v341 = vpack.c.bf16 %v296, %v296
      %v342 = vpack.c.bf16 %v299, %v299
      %v343 = vpack.c.bf16 %v301, %v301
      %vm344 = vcmask 60416
      %345 = vst.msk [vmem:[%s237] sm:$0xf] %vm344, %v336
      %346 = vst.msk [vmem:[%s237 + $0x8] sm:$0xf] %vm344, %v337
      %347 = vst.msk [vmem:[%s237 + $0x10] sm:$0xf] %vm344, %v338
      %348 = vst.msk [vmem:[%s237 + $0x18] sm:$0xf] %vm344, %v339
      %349 = vst.msk [vmem:[%s237 + $0x20] sm:$0xf] %vm344, %v340
      %350 = vst.msk [vmem:[%s237 + $0x28] sm:$0xf] %vm344, %v341
      %351 = vst.msk [vmem:[%s237 + $0x30] sm:$0xf] %vm344, %v342
      %352 = vst.msk [vmem:[%s237 + $0x38] sm:$0xf] %vm344, %v343
      %v353 = vpack.c.bf16 %v317, %v317
      %v354 = vpack.c.bf16 %v319, %v319
      %v355 = vpack.c.bf16 %v322, %v322
      %v356 = vpack.c.bf16 %v324, %v324
      %v357 = vpack.c.bf16 %v327, %v327
      %v358 = vpack.c.bf16 %v329, %v329
      %v359 = vpack.c.bf16 %v332, %v332
      %v360 = vpack.c.bf16 %v334, %v334
      %s361 = scalar_lea.vmem %s237, 4
      %362 = vst.msk [vmem:[%s361] sm:$0xf] %vm344, %v353
      %363 = vst.msk [vmem:[%s361 + $0x8] sm:$0xf] %vm344, %v354
      %364 = vst.msk [vmem:[%s361 + $0x10] sm:$0xf] %vm344, %v355
      %365 = vst.msk [vmem:[%s361 + $0x18] sm:$0xf] %vm344, %v356
      %366 = vst.msk [vmem:[%s361 + $0x20] sm:$0xf] %vm344, %v357
      %367 = vst.msk [vmem:[%s361 + $0x28] sm:$0xf] %vm344, %v358
      %368 = vst.msk [vmem:[%s361 + $0x30] sm:$0xf] %vm344, %v359
      %369 = vst.msk [vmem:[%s361 + $0x38] sm:$0xf] %vm344, %v360
      %s370 = smul.u32 8, %s20
      %p371 = scmp.lt.s32.totalorder %s19, 1
      %s372 = scalar_select %p371, %s19, 1
      %p373 = scmp.lt.s32.totalorder %s370, 7
      %s374 = scalar_select %p373, %s370, 7
      %s375 = smul.addr %s374, 2
      %s376 = smul.addr %s372, 16
      %s377 = sadd.s32 %s375, %s376
      %s378 = smul.addr %s377, 4
      %s379 = scalar_lea.vmem %s4, %s378
      // Predicated region
      $region37: #{upconv_forward.3} parent=35 // pred_check
        %p380 = pneg %p138
      $region38: #{upconv_forward.3} parent=35 // pred_check_branch
        %382 = sbr.rel (%p380) target = $region40
      $region39: #{upconv_forward.3} parent=35 // pred_region
        %s383 = smul.u32 8, %s20
      $region40: #{upconv_forward.3} parent=35 // pred_fallthru
        _
    $region36: #{upconv_forward.3} parent=5 // pred_fallthru
      _
    %p384 = scmp.le.s32.totalorder 2, %s10
    // Predicated region
    $region41: #{upconv_forward.3} parent=5 // pred_check
      %p385 = pneg %p384
    $region42: #{upconv_forward.3} parent=5 // pred_check_branch
      %387 = sbr.rel (%p385) target = $region44
    $region43: #{upconv_forward.3} parent=5 // pred_region
      %s388 = ssub.s32 %s10, 2
      // Predicated region
      $region45: #{upconv_forward.3} parent=43 // pred_check
        %p389 = pneg %p144
      $region46: #{upconv_forward.3} parent=43 // pred_check_branch
        %391 = sbr.rel (%p389) target = $region48
      $region47: #{upconv_forward.3} parent=43 // pred_region
        %s392 = smul.u32 8, %s22
        %p393 = scmp.lt.s32.totalorder %s21, 1
        %s394 = scalar_select %p393, %s21, 1
        %p395 = scmp.lt.s32.totalorder %s392, 7
        %s396 = scalar_select %p395, %s392, 7
        %s397 = smul.addr %s396, 2
        %s398 = smul.addr %s394, 16
        %s399 = sadd.s32 %s397, %s398
        %s400 = smul.addr %s399, 4
        %s401 = scalar_lea.vmem %s4, %s400
      $region48: #{upconv_forward.3} parent=43 // pred_fallthru
        _
    $region44: #{upconv_forward.3} parent=5 // pred_fallthru
      _
  $region6: #{upconv_forward.3} parent=0 // loop_footer
    %s14 = sadd.s32 1, %s10
  $region7: #{upconv_forward.3} parent=0 // loop_footer_branch
    %9 = sbr.rel target = $region3
  $region8: #{upconv_forward.3} parent=0 // loop_exit
    _

// kernel: upconv_forward.5
$region0: #{upconv_forward.5}
  #allocation0 [shape = 'u32[]', space=smem, size = 0x4, offset = 0x4, fixed_abs, tag = 'smem constant byte address 0x4 - core index']
  #allocation1 [shape = 'u32[72,128]{1,0:T(1,128)}', space=vmem, size = 0x9000, scoped, tag = 'internal scratch']
  #allocation2 [shape = 'f32[16,18,4]{2,1,0:T(8,128)}', space=vmem, size = 0x30000, scoped, tag = 'scratch operand']
  %s0 = inlined_call_operand.vmem [shape: bf16[2,16,16,4], index: 0, kind: input, shape index: {}, may-alias: {0,1,2}]
  %s1 = inlined_call_operand.vmem [shape: bf16[2,16,16,4], index: 1, kind: input, shape index: {}, may-alias: {0,1,2}]
  %s2 = inlined_call_operand.vmem [shape: bf16[2,16,16,4], index: 2, kind: input, shape index: {}, may-alias: {0,1,2}]
  %s3 = inlined_call_operand.vmem [shape: bf16[3,12,4], index: 3, kind: input, shape index: {}]
  %s4 = inlined_call_operand.vmem [shape: f32[1,4], index: 4, kind: input, shape index: {}]
  %s5 = inlined_call_operand.vmem [shape: f32[1,4], index: 5, kind: input, shape index: {}]
  %s6 = inlined_call_operand.vmem [shape: f32[2,16,16,4], index: 6, kind: output, shape index: {}]
  %s7 = sld [smem:[#allocation0]]
  $region57: #{upconv_forward.5} parent=0
    _
  %s9 = ssub.s32 1, %s7
  %s10 = scalar_select 0, %s9, %s7
  loop: start=0, step=1, limit=4
  $region2: #{upconv_forward.5} parent=0 // loop_pre_header
    _
  $region3: #{upconv_forward.5} parent=0 // loop_header
    %s12 = sphi 0, %s16
    %p13 = scmp.ge.s32.totalorder %s12, 4
    %s19 = sphi 0, %s31
    %s20 = sphi 0, %s27
    %s21 = sphi 0, %s19
    %s22 = sphi 0, %s20
    %s23 = sphi 0, %s21
    %s24 = sphi 0, %s22
    %s36 = sphi 0, %s38
    %s39 = sphi 0, %s36
    %s40 = sphi 0, %s39
    %s56 = sphi 0, %s40
    %s72 = sphi 0, %s74
    %s75 = sphi 0, %s72
    %s76 = sphi 0, %s75
    %s92 = sphi 0, %s76
    %s108 = sphi 0, %s110
    %s111 = sphi 0, %s108
    %s112 = sphi 0, %s111
    %s128 = sphi 0, %s112
    %s132 = sphi 0, %s132
    %s134 = sphi 0, %s132
    %s135 = sphi 0, %s134
    %s149 = sphi 0, %s135
    %s153 = sphi 0, %s153
    %s155 = sphi 0, %s153
    %s156 = sphi 0, %s155
    %s170 = sphi 0, %s156
    %s174 = sphi 0, %s174
    %s176 = sphi 0, %s174
    %s177 = sphi 0, %s176
    %s191 = sphi 0, %s177
    %s199 = sphi 0, %s201
    %s202 = sphi 0, %s199
    %s203 = sphi 0, %s202
    %s219 = sphi 0, %s203
  $region4: #{upconv_forward.5} parent=0 // loop_header_branch
    %15 = sbr.rel (%p13) target = $region8
  $region5: #{upconv_forward.5} parent=0 // loop_body
    %s17 = ssub.s32 %s12, 1
    %s18 = ssub.s32 %s12, 2
    %s25 = sadd.s32 1, %s20
    %p26 = scmp.ge.s32.totalorder %s25, 1
    %s27 = scalar_select %p26, 0, %s25
    %s28 = sadd.s32 1, %s19
    %s29 = scalar_select %p26, %s28, %s19
    %p30 = scmp.ge.s32.totalorder %s29, 2
    %s31 = scalar_select %p30, 0, %s29
    %s32 = ssub.s32 %s19, %s31
    %s33 = ssub.s32 %s20, %s27
    %s34 = sor.u32 %s32, %s33
    %p35 = scmp.eq.s32.totalorder %s34, 0
    %s37 = sadd.s32 %s36, 1
    %s38 = scalar_select %p35, %s36, %s37
    %p41 = pneg %p35
    %p42 = scmp.eq.s32.totalorder %s12, 1
    %p43 = por %p41, %p42
    %p44 = scmp.ne.s32.totalorder %s36, %s39
    %p45 = scmp.eq.s32.totalorder %s12, 0
    %p46 = por %p44, %p45
    %p47 = scmp.ne.s32.totalorder %s36, %s39
    %p48 = scmp.eq.s32.totalorder %s17, 1
    %p49 = por %p47, %p48
    %p50 = scmp.ne.s32.totalorder %s39, %s40
    %p51 = scmp.eq.s32.totalorder %s17, 0
    %p52 = por %p50, %p51
    %p53 = scmp.ne.s32.totalorder %s39, %s40
    %p54 = scmp.eq.s32.totalorder %s18, 1
    %p55 = por %p53, %p54
    %p57 = scmp.ne.s32.totalorder %s40, %s56
    %p58 = scmp.eq.s32.totalorder %s18, 0
    %p59 = por %p57, %p58
    %s60 = smul.u32 %s20, 16
    %s61 = ssub.s32 %s60, 1
    %p62 = scmp.gt.s32.totalorder %s61, 0
    %s63 = scalar_select %p62, %s61, 0
    %s64 = smul.u32 %s27, 16
    %s65 = ssub.s32 %s64, 1
    %p66 = scmp.gt.s32.totalorder %s65, 0
    %s67 = scalar_select %p66, %s65, 0
    %s68 = ssub.s32 %s19, %s31
    %s69 = ssub.s32 %s63, %s67
    %s70 = sor.u32 %s68, %s69
    %p71 = scmp.eq.s32.totalorder %s70, 0
    %s73 = sadd.s32 %s72, 1
    %s74 = scalar_select %p71, %s72, %s73
    %p77 = pneg %p71
    %p78 = scmp.eq.s32.totalorder %s12, 1
    %p79 = por %p77, %p78
    %p80 = scmp.ne.s32.totalorder %s72, %s75
    %p81 = scmp.eq.s32.totalorder %s12, 0
    %p82 = por %p80, %p81
    %p83 = scmp.ne.s32.totalorder %s72, %s75
    %p84 = scmp.eq.s32.totalorder %s17, 1
    %p85 = por %p83, %p84
    %p86 = scmp.ne.s32.totalorder %s75, %s76
    %p87 = scmp.eq.s32.totalorder %s17, 0
    %p88 = por %p86, %p87
    %p89 = scmp.ne.s32.totalorder %s75, %s76
    %p90 = scmp.eq.s32.totalorder %s18, 1
    %p91 = por %p89, %p90
    %p93 = scmp.ne.s32.totalorder %s76, %s92
    %p94 = scmp.eq.s32.totalorder %s18, 0
    %p95 = por %p93, %p94
    %s96 = sadd.s32 %s20, 1
    %s97 = smul.u32 %s96, 16
    %p98 = scmp.lt.s32.totalorder %s97, 15
    %s99 = scalar_select %p98, %s97, 15
    %s100 = sadd.s32 %s27, 1
    %s101 = smul.u32 %s100, 16
    %p102 = scmp.lt.s32.totalorder %s101, 15
    %s103 = scalar_select %p102, %s101, 15
    %s104 = ssub.s32 %s19, %s31
    %s105 = ssub.s32 %s99, %s103
    %s106 = sor.u32 %s104, %s105
    %p107 = scmp.eq.s32.totalorder %s106, 0
    %s109 = sadd.s32 %s108, 1
    %s110 = scalar_select %p107, %s108, %s109
    %p113 = pneg %p107
    %p114 = scmp.eq.s32.totalorder %s12, 1
    %p115 = por %p113, %p114
    %p116 = scmp.ne.s32.totalorder %s108, %s111
    %p117 = scmp.eq.s32.totalorder %s12, 0
    %p118 = por %p116, %p117
    %p119 = scmp.ne.s32.totalorder %s108, %s111
    %p120 = scmp.eq.s32.totalorder %s17, 1
    %p121 = por %p119, %p120
    %p122 = scmp.ne.s32.totalorder %s111, %s112
    %p123 = scmp.eq.s32.totalorder %s17, 0
    %p124 = por %p122, %p123
    %p125 = scmp.ne.s32.totalorder %s111, %s112
    %p126 = scmp.eq.s32.totalorder %s18, 1
    %p127 = por %p125, %p126
    %p129 = scmp.ne.s32.totalorder %s112, %s128
    %p130 = scmp.eq.s32.totalorder %s18, 0
    %p131 = por %p129, %p130
    %s133 = sadd.s32 %s132, 1
    %p136 = scmp.eq.s32.totalorder %s12, 1
    %p137 = scmp.ne.s32.totalorder %s132, %s134
    %p138 = scmp.eq.s32.totalorder %s12, 0
    %p139 = por %p137, %p138
    %p140 = scmp.ne.s32.totalorder %s132, %s134
    %p141 = scmp.eq.s32.totalorder %s17, 1
    %p142 = por %p140, %p141
    %p143 = scmp.ne.s32.totalorder %s134, %s135
    %p144 = scmp.eq.s32.totalorder %s17, 0
    %p145 = por %p143, %p144
    %p146 = scmp.ne.s32.totalorder %s134, %s135
    %p147 = scmp.eq.s32.totalorder %s18, 1
    %p148 = por %p146, %p147
    %p150 = scmp.ne.s32.totalorder %s135, %s149
    %p151 = scmp.eq.s32.totalorder %s18, 0
    %p152 = por %p150, %p151
    %s154 = sadd.s32 %s153, 1
    %p157 = scmp.eq.s32.totalorder %s12, 1
    %p158 = scmp.ne.s32.totalorder %s153, %s155
    %p159 = scmp.eq.s32.totalorder %s12, 0
    %p160 = por %p158, %p159
    %p161 = scmp.ne.s32.totalorder %s153, %s155
    %p162 = scmp.eq.s32.totalorder %s17, 1
    %p163 = por %p161, %p162
    %p164 = scmp.ne.s32.totalorder %s155, %s156
    %p165 = scmp.eq.s32.totalorder %s17, 0
    %p166 = por %p164, %p165
    %p167 = scmp.ne.s32.totalorder %s155, %s156
    %p168 = scmp.eq.s32.totalorder %s18, 1
    %p169 = por %p167, %p168
    %p171 = scmp.ne.s32.totalorder %s156, %s170
    %p172 = scmp.eq.s32.totalorder %s18, 0
    %p173 = por %p171, %p172
    %s175 = sadd.s32 %s174, 1
    %p178 = scmp.eq.s32.totalorder %s12, 1
    %p179 = scmp.ne.s32.totalorder %s174, %s176
    %p180 = scmp.eq.s32.totalorder %s12, 0
    %p181 = por %p179, %p180
    %p182 = scmp.ne.s32.totalorder %s174, %s176
    %p183 = scmp.eq.s32.totalorder %s17, 1
    %p184 = por %p182, %p183
    %p185 = scmp.ne.s32.totalorder %s176, %s177
    %p186 = scmp.eq.s32.totalorder %s17, 0
    %p187 = por %p185, %p186
    %p188 = scmp.ne.s32.totalorder %s176, %s177
    %p189 = scmp.eq.s32.totalorder %s18, 1
    %p190 = por %p188, %p189
    %p192 = scmp.ne.s32.totalorder %s177, %s191
    %p193 = scmp.eq.s32.totalorder %s18, 0
    %p194 = por %p192, %p193
    %s195 = ssub.s32 %s19, %s31
    %s196 = ssub.s32 %s20, %s27
    %s197 = sor.u32 %s195, %s196
    %p198 = scmp.eq.s32.totalorder %s197, 0
    %s200 = sadd.s32 %s199, 1
    %s201 = scalar_select %p198, %s199, %s200
    %p204 = pneg %p198
    %p205 = scmp.eq.s32.totalorder %s12, 1
    %p206 = por %p204, %p205
    %p207 = scmp.ne.s32.totalorder %s199, %s202
    %p208 = scmp.eq.s32.totalorder %s12, 0
    %p209 = por %p207, %p208
    %p210 = scmp.ne.s32.totalorder %s199, %s202
    %p211 = scmp.eq.s32.totalorder %s17, 1
    %p212 = por %p210, %p211
    %p213 = scmp.ne.s32.totalorder %s202, %s203
    %p214 = scmp.eq.s32.totalorder %s17, 0
    %p215 = por %p213, %p214
    %p216 = scmp.ne.s32.totalorder %s202, %s203
    %p217 = scmp.eq.s32.totalorder %s18, 1
    %p218 = por %p216, %p217
    %p220 = scmp.ne.s32.totalorder %s203, %s219
    %p221 = scmp.eq.s32.totalorder %s18, 0
    %p222 = por %p220, %p221
    %p223 = scmp.le.s32.totalorder 1, %s12
    %p224 = scmp.lt.s32.totalorder %s12, 3
    %p225 = pnand %p223, %p224
    %p226 = pneg %p225
    // Predicated region
    $region9: #{upconv_forward.5} parent=5 // pred_check
      _
    $region10: #{upconv_forward.5} parent=5 // pred_check_branch
      %228 = sbr.rel (%p225) target = $region12
    $region11: #{upconv_forward.5} parent=5 // pred_region
      %s229 = ssub.s32 %s12, 1
      // Predicated region
      $region13: #{upconv_forward.5} parent=11 // pred_check
        %p230 = pneg %p145
      $region14: #{upconv_forward.5} parent=11 // pred_check_branch
        %232 = sbr.rel (%p230) target = $region16
      $region15: #{upconv_forward.5} parent=11 // pred_region
        _
      $region16: #{upconv_forward.5} parent=11 // pred_fallthru
        _
      // Predicated region
      $region17: #{upconv_forward.5} parent=11 // pred_check
        %p233 = pneg %p166
      $region18: #{upconv_forward.5} parent=11 // pred_check_branch
        %235 = sbr.rel (%p233) target = $region20
      $region19: #{upconv_forward.5} parent=11 // pred_region
        _
      $region20: #{upconv_forward.5} parent=11 // pred_fallthru
        _
      // Predicated region
      $region21: #{upconv_forward.5} parent=11 // pred_check
        %p236 = pneg %p187
      $region22: #{upconv_forward.5} parent=11 // pred_check_branch
        %238 = sbr.rel (%p236) target = $region24
      $region23: #{upconv_forward.5} parent=11 // pred_region
        _
      $region24: #{upconv_forward.5} parent=11 // pred_fallthru
        _
    $region12: #{upconv_forward.5} parent=5 // pred_fallthru
      _
    %p239 = scmp.lt.s32.totalorder %s12, 2
    // Predicated region
    $region25: #{upconv_forward.5} parent=5 // pred_check
      %p240 = pneg %p239
    $region26: #{upconv_forward.5} parent=5 // pred_check_branch
      %242 = sbr.rel (%p240) target = $region28
    $region27: #{upconv_forward.5} parent=5 // pred_region
      // Predicated region
      $region29: #{upconv_forward.5} parent=27 // pred_check
        %p243 = pneg %p46
      $region30: #{upconv_forward.5} parent=27 // pred_check_branch
        %245 = sbr.rel (%p243) target = $region32
      $region31: #{upconv_forward.5} parent=27 // pred_region
        %s246 = smul.u32 16, %s20
        %p247 = scmp.lt.s32.totalorder %s19, 1
        %s248 = scalar_select %p247, %s19, 1
        %p249 = scmp.lt.s32.totalorder %s246, 15
        %s250 = scalar_select %p249, %s246, 15
        %s251 = smul.addr %s250, 2
        %s252 = smul.addr %s248, 32
        %s253 = sadd.s32 %s251, %s252
        %s254 = smul.addr %s253, 4
        %s255 = scalar_lea.vmem %s0, %s254
        %s256 = smul.u32 16, %s20
      $region32: #{upconv_forward.5} parent=27 // pred_fallthru
        _
      // Predicated region
      $region33: #{upconv_forward.5} parent=27 // pred_check
        %p257 = pneg %p82
      $region34: #{upconv_forward.5} parent=27 // pred_check_branch
        %259 = sbr.rel (%p257) target = $region36
      $region35: #{upconv_forward.5} parent=27 // pred_region
        %s260 = smul.u32 %s20, 16
        %s261 = ssub.s32 %s260, 1
        %p262 = scmp.gt.s32.totalorder %s261, 0
        %s263 = scalar_select %p262, %s261, 0
        %p264 = scmp.lt.s32.totalorder %s19, 1
        %s265 = scalar_select %p264, %s19, 1
        %p266 = scmp.lt.s32.totalorder %s263, 15
        %s267 = scalar_select %p266, %s263, 15
        %s268 = smul.addr %s267, 2
        %s269 = smul.addr %s265, 32
        %s270 = sadd.s32 %s268, %s269
        %s271 = smul.addr %s270, 4
        %s272 = scalar_lea.vmem %s1, %s271
        %s273 = smul.u32 %s20, 16
        %s274 = ssub.s32 %s273, 1
        %p275 = scmp.gt.s32.totalorder %s274, 0
        %s276 = scalar_select %p275, %s274, 0
      $region36: #{upconv_forward.5} parent=27 // pred_fallthru
        _
      // Predicated region
      $region37: #{upconv_forward.5} parent=27 // pred_check
        %p277 = pneg %p118
      $region38: #{upconv_forward.5} parent=27 // pred_check_branch
        %279 = sbr.rel (%p277) target = $region40
      $region39: #{upconv_forward.5} parent=27 // pred_region
        %s280 = sadd.s32 %s20, 1
        %s281 = smul.u32 %s280, 16
        %p282 = scmp.lt.s32.totalorder %s281, 15
        %s283 = scalar_select %p282, %s281, 15
        %p284 = scmp.lt.s32.totalorder %s19, 1
        %s285 = scalar_select %p284, %s19, 1
        %p286 = scmp.lt.s32.totalorder %s283, 15
        %s287 = scalar_select %p286, %s283, 15
        %s288 = smul.addr %s287, 2
        %s289 = smul.addr %s285, 32
        %s290 = sadd.s32 %s288, %s289
        %s291 = smul.addr %s290, 4
        %s292 = scalar_lea.vmem %s2, %s291
        %s293 = sadd.s32 %s20, 1
        %s294 = smul.u32 %s293, 16
        %p295 = scmp.lt.s32.totalorder %s294, 15
        %s296 = scalar_select %p295, %s294, 15
      $region40: #{upconv_forward.5} parent=27 // pred_fallthru
        _
    $region28: #{upconv_forward.5} parent=5 // pred_fallthru
      _
    %p297 = scmp.le.s32.totalorder 1, %s12
    %p298 = scmp.lt.s32.totalorder %s12, 3
    %p299 = pnand %p297, %p298
    %p300 = pneg %p299
    // Predicated region
    $region41: #{upconv_forward.5} parent=5 // pred_check
      _
    $region42: #{upconv_forward.5} parent=5 // pred_check_branch
      %302 = sbr.rel (%p299) target = $region44
    $region43: #{upconv_forward.5} parent=5 // pred_region
      %s303 = ssub.s32 %s12, 1
      %s304 = smul.u32 16, %s22
      %p305 = scmp.lt.s32.totalorder %s21, 1
      %s306 = scalar_select %p305, %s21, 1
      %p307 = scmp.lt.s32.totalorder %s304, 15
      %s308 = scalar_select %p307, %s304, 15
      %s309 = smul.addr %s308, 2
      %s310 = smul.addr %s306, 32
      %s311 = sadd.s32 %s309, %s310
      %s312 = smul.addr %s311, 4
      %s313 = scalar_lea.vmem %s0, %s312
      %p314 = pneg %p52
      %p315 = pneg %p49
      %s316 = smul.u32 %s22, 16
      %s317 = ssub.s32 %s316, 1
      %p318 = scmp.gt.s32.totalorder %s317, 0
      %s319 = scalar_select %p318, %s317, 0
      %p320 = scmp.lt.s32.totalorder %s21, 1
      %s321 = scalar_select %p320, %s21, 1
      %p322 = scmp.lt.s32.totalorder %s319, 15
      %s323 = scalar_select %p322, %s319, 15
      %s324 = smul.addr %s323, 2
      %s325 = smul.addr %s321, 32
      %s326 = sadd.s32 %s324, %s325
      %s327 = smul.addr %s326, 4
      %s328 = scalar_lea.vmem %s1, %s327
      %p329 = pneg %p88
      %p330 = pneg %p85
      %s331 = sadd.s32 %s22, 1
      %s332 = smul.u32 %s331, 16
      %p333 = scmp.lt.s32.totalorder %s332, 15
      %s334 = scalar_select %p333, %s332, 15
      %p335 = scmp.lt.s32.totalorder %s21, 1
      %s336 = scalar_select %p335, %s21, 1
      %p337 = scmp.lt.s32.totalorder %s334, 15
      %s338 = scalar_select %p337, %s334, 15
      %s339 = smul.addr %s338, 2
      %s340 = smul.addr %s336, 32
      %s341 = sadd.s32 %s339, %s340
      %s342 = smul.addr %s341, 4
      %s343 = scalar_lea.vmem %s2, %s342
      %p344 = pneg %p124
      %p345 = pneg %p121
      %p346 = pneg %p145
      %p347 = pneg %p142
      %p348 = pneg %p166
      %p349 = pneg %p163
      %p350 = pneg %p187
      %p351 = pneg %p184
      %p352 = pneg %p215
      %p353 = pneg %p212
      %s354 = smul.u32 16, %s22
      %p355 = scmp.lt.s32.totalorder %s21, 1
      %s356 = scalar_select %p355, %s21, 1
      %p357 = scmp.lt.s32.totalorder %s354, 15
      %s358 = scalar_select %p357, %s354, 15
      %s359 = smul.addr %s358, 2
      %s360 = smul.addr %s356, 32
      %s361 = sadd.s32 %s359, %s360
      %s362 = smul.addr %s361, 8
      %s363 = scalar_lea.vmem %s6, %s362
      %s364 = smul.u32 16, %s22
      %p365 = scmp.lt.s32.totalorder %s21, 1
      %s366 = scalar_select %p365, %s21, 1
      %p367 = scmp.lt.s32.totalorder %s364, 15
      %s368 = scalar_select %p367, %s364, 15
      %s369 = smul.addr %s368, 2
      %s370 = smul.addr %s366, 32
      %s371 = sadd.s32 %s369, %s370
      %s372 = smul.addr %s371, 4
      %s373 = scalar_lea.vmem %s0, %s372
      %s374 = smul.u32 16, %s22
      %s375 = smul.u32 %s22, 16
      %s376 = ssub.s32 %s375, 1
      %p377 = scmp.gt.s32.totalorder %s376, 0
      %s378 = scalar_select %p377, %s376, 0
      %p379 = scmp.lt.s32.totalorder %s21, 1
      %s380 = scalar_select %p379, %s21, 1
      %p381 = scmp.lt.s32.totalorder %s378, 15
      %s382 = scalar_select %p381, %s378, 15
      %s383 = smul.addr %s382, 2
      %s384 = smul.addr %s380, 32
      %s385 = sadd.s32 %s383, %s384
      %s386 = smul.addr %s385, 4
      %s387 = scalar_lea.vmem %s1, %s386
      %s388 = smul.u32 %s22, 16
      %s389 = ssub.s32 %s388, 1
      %p390 = scmp.gt.s32.totalorder %s389, 0
      %s391 = scalar_select %p390, %s389, 0
      %s392 = sadd.s32 %s22, 1
      %s393 = smul.u32 %s392, 16
      %p394 = scmp.lt.s32.totalorder %s393, 15
      %s395 = scalar_select %p394, %s393, 15
      %p396 = scmp.lt.s32.totalorder %s21, 1
      %s397 = scalar_select %p396, %s21, 1
      %p398 = scmp.lt.s32.totalorder %s395, 15
      %s399 = scalar_select %p398, %s395, 15
      %s400 = smul.addr %s399, 2
      %s401 = smul.addr %s397, 32
      %s402 = sadd.s32 %s400, %s401
      %s403 = smul.addr %s402, 4
      %s404 = scalar_lea.vmem %s2, %s403
      %s405 = sadd.s32 %s22, 1
      %s406 = smul.u32 %s405, 16
      %p407 = scmp.lt.s32.totalorder %s406, 15
      %s408 = scalar_select %p407, %s406, 15
      %s409 = smul.u32 16, %s22
      %p410 = scmp.lt.s32.totalorder %s21, 1
      %s411 = scalar_select %p410, %s21, 1
      %p412 = scmp.lt.s32.totalorder %s409, 15
      %s413 = scalar_select %p412, %s409, 15
      %s414 = smul.addr %s413, 2
      %s415 = smul.addr %s411, 32
      %s416 = sadd.s32 %s414, %s415
      %s417 = smul.addr %s416, 8
      %s418 = scalar_lea.vmem %s6, %s417
      %s419 = smul.u32 16, %s22
      %p421 = scmp.gt.s32.totalorder %s22, 0
      %s422 = scalar_select %p421, 1.0, 0.0
      %p424 = scmp.ne.f32.partialorder %s422, %s422
      %s425 = sshrl.u32 %s422, 16
      %s426 = sand.u32 %s425, 1
      %s427 = sadd.s32 32767, %s426
      %s428 = sadd.s32 %s422, %s427
      %s429 = sand.u32 %s428, 4294901760
      %s430 = scalar_select %p424, 2143289344, %s429
      %s432 = sshrl.u32 %s430, 16
      %p433 = scmp.lt.s32.totalorder %s22, 0
      %s434 = scalar_select %p433, 1.0, 0.0
      %p436 = scmp.ne.f32.partialorder %s434, %s434
      %s437 = sshrl.u32 %s434, 16
      %s438 = sand.u32 %s437, 1
      %s439 = sadd.s32 32767, %s438
      %s440 = sadd.s32 %s434, %s439
      %s441 = sand.u32 %s440, 4294901760
      %s442 = scalar_select %p436, 2143289344, %s441
      %s444 = sshrl.u32 %s442, 16
      %v445 = vld [vmem:[%s387] sm:$0xf]
      %v446 = vld [vmem:[%s387 + $0x4] sm:$0xf]
      %s447 = sshll.u32 %s432, 16
      %s448 = sor.u32 %s432, %s447
      %v449 = vstv %s448
      %v451 = vunpack.c.l.bf16 %v445
      %v452 = vunpack.c.l.bf16 %v446
      %v453 = vunpack.c.l.bf16 %v449
      %v454 = vmul.f32 %v451, %v453
      %v455 = vmul.f32 %v452, %v453
      %v456 = vpack.c.bf16 %v454, %v454
      %v457 = vpack.c.bf16 %v455, %v455
      %v458 = vld [vmem:[%s404] sm:$0xf]
      %v459 = vld [vmem:[%s404 + $0x4] sm:$0xf]
      %s460 = sshll.u32 %s444, 16
      %s461 = sor.u32 %s444, %s460
      %v462 = vstv %s461
      %v464 = vunpack.c.l.bf16 %v458
      %v465 = vunpack.c.l.bf16 %v459
      %v466 = vunpack.c.l.bf16 %v462
      %v467 = vmul.f32 %v464, %v466
      %v468 = vmul.f32 %v465, %v466
      %v469 = vpack.c.bf16 %v467, %v467
      %v470 = vpack.c.bf16 %v468, %v468
      %v471 = vld [vmem:[%s373] sm:$0xf]
      %v472 = vld [vmem:[%s373 + $0x4] sm:$0xf]
      %v473 = vld [vmem:[%s373 + $0x8] sm:$0xf]
      %v474 = vld [vmem:[%s373 + $0xc] sm:$0xf]
      %v475 = vld [vmem:[%s373 + $0x10] sm:$0xf]
      %v476 = vld [vmem:[%s373 + $0x14] sm:$0xf]
      %v477 = vld [vmem:[%s373 + $0x18] sm:$0xf]
      %v478 = vld [vmem:[%s373 + $0x1c] sm:$0xf]
      %v479 = vld [vmem:[%s373 + $0x20] sm:$0xf]
      %v480 = vld [vmem:[%s373 + $0x24] sm:$0xf]
      %v481 = vld [vmem:[%s373 + $0x28] sm:$0xf]
      %v482 = vld [vmem:[%s373 + $0x2c] sm:$0xf]
      %v483 = vld [vmem:[%s373 + $0x30] sm:$0xf]
      %v484 = vld [vmem:[%s373 + $0x34] sm:$0xf]
      %v485 = vld [vmem:[%s373 + $0x38] sm:$0xf]
      %v486 = vld [vmem:[%s373 + $0x3c] sm:$0xf]
      %v487 = vld [vmem:[%s373 + $0x40] sm:$0xf]
      %v488 = vld [vmem:[%s373 + $0x44] sm:$0xf]
      %v489 = vld [vmem:[%s373 + $0x48] sm:$0xf]
      %v490 = vld [vmem:[%s373 + $0x4c] sm:$0xf]
      %v491 = vld [vmem:[%s373 + $0x50] sm:$0xf]
      %v492 = vld [vmem:[%s373 + $0x54] sm:$0xf]
      %v493 = vld [vmem:[%s373 + $0x58] sm:$0xf]
      %v494 = vld [vmem:[%s373 + $0x5c] sm:$0xf]
      %v495 = vld [vmem:[%s373 + $0x60] sm:$0xf]
      %v496 = vld [vmem:[%s373 + $0x64] sm:$0xf]
      %v497 = vld [vmem:[%s373 + $0x68] sm:$0xf]
      %v498 = vld [vmem:[%s373 + $0x6c] sm:$0xf]
      %v499 = vld [vmem:[%s373 + $0x70] sm:$0xf]
      %v500 = vld [vmem:[%s373 + $0x74] sm:$0xf]
      %v501 = vld [vmem:[%s373 + $0x78] sm:$0xf]
      %v502 = vld [vmem:[%s373 + $0x7c] sm:$0xf]
      %s503 = scalar_lea.vmem %s373, 8
      %v504 = vld [vmem:[%s503] sm:$0xf]
      %v505 = vld [vmem:[%s503 + $0x4] sm:$0xf]
      %v506 = vld [vmem:[%s503 + $0x8] sm:$0xf]
      %v507 = vld [vmem:[%s503 + $0xc] sm:$0xf]
      %v508 = vld [vmem:[%s503 + $0x10] sm:$0xf]
      %v509 = vld [vmem:[%s503 + $0x14] sm:$0xf]
      %v510 = vld [vmem:[%s503 + $0x18] sm:$0xf]
      %v511 = vld [vmem:[%s503 + $0x1c] sm:$0xf]
      %v512 = vld [vmem:[%s503 + $0x20] sm:$0xf]
      %v513 = vld [vmem:[%s503 + $0x24] sm:$0xf]
      %v514 = vld [vmem:[%s503 + $0x28] sm:$0xf]
      %v515 = vld [vmem:[%s503 + $0x2c] sm:$0xf]
      %v516 = vld [vmem:[%s503 + $0x30] sm:$0xf]
      %v517 = vld [vmem:[%s503 + $0x34] sm:$0xf]
      %v518 = vld [vmem:[%s503 + $0x38] sm:$0xf]
      %v519 = vld [vmem:[%s503 + $0x3c] sm:$0xf]
      %v520 = vld [vmem:[%s503 + $0x40] sm:$0xf]
      %v521 = vld [vmem:[%s503 + $0x44] sm:$0xf]
      %v522 = vld [vmem:[%s503 + $0x48] sm:$0xf]
      %v523 = vld [vmem:[%s503 + $0x4c] sm:$0xf]
      %v524 = vld [vmem:[%s503 + $0x50] sm:$0xf]
      %v525 = vld [vmem:[%s503 + $0x54] sm:$0xf]
      %v526 = vld [vmem:[%s503 + $0x58] sm:$0xf]
      %v527 = vld [vmem:[%s503 + $0x5c] sm:$0xf]
      %v528 = vld [vmem:[%s503 + $0x60] sm:$0xf]
      %v529 = vld [vmem:[%s503 + $0x64] sm:$0xf]
      %v530 = vld [vmem:[%s503 + $0x68] sm:$0xf]
      %v531 = vld [vmem:[%s503 + $0x6c] sm:$0xf]
      %v532 = vld [vmem:[%s503 + $0x70] sm:$0xf]
      %v533 = vld [vmem:[%s503 + $0x74] sm:$0xf]
      %v566 = vunpack.c.l.b16 %v456
      %v567 = vunpack.c.l.b16 %v457
      %v568 = vunpack.c.l.b16 %v471
      %v569 = vunpack.c.l.b16 %v472
      %v570 = vunpack.c.l.b16 %v473
      %v571 = vunpack.c.l.b16 %v474
      %v572 = vunpack.c.l.b16 %v475
      %v573 = vunpack.c.l.b16 %v476
      %v574 = vunpack.c.l.b16 %v477
      %v575 = vunpack.c.l.b16 %v478
      %v576 = vunpack.c.l.b16 %v479
      %v577 = vunpack.c.l.b16 %v480
      %v578 = vunpack.c.l.b16 %v481
      %v579 = vunpack.c.l.b16 %v482
      %v580 = vunpack.c.l.b16 %v483
      %v581 = vunpack.c.l.b16 %v484
      %v582 = vunpack.c.l.b16 %v485
      %v583 = vunpack.c.l.b16 %v486
      %v584 = vunpack.c.l.b16 %v487
      %v585 = vunpack.c.l.b16 %v488
      %v586 = vunpack.c.l.b16 %v489
      %v587 = vunpack.c.l.b16 %v490
      %v588 = vunpack.c.l.b16 %v491
      %v589 = vunpack.c.l.b16 %v492
      %v590 = vunpack.c.l.b16 %v493
      %v591 = vunpack.c.l.b16 %v494
      %v592 = vunpack.c.l.b16 %v495
      %v593 = vunpack.c.l.b16 %v496
      %v594 = vunpack.c.l.b16 %v497
      %v595 = vunpack.c.l.b16 %v498
      %v596 = vunpack.c.l.b16 %v499
      %v597 = vunpack.c.l.b16 %v500
      %v598 = vpack.c.b16 %v567, %v566
      %v599 = vpack.c.b16 %v569, %v568
      %v600 = vpack.c.b16 %v571, %v570
      %v601 = vpack.c.b16 %v573, %v572
      %v602 = vpack.c.b16 %v575, %v574
      %v603 = vpack.c.b16 %v577, %v576
      %v604 = vpack.c.b16 %v579, %v578
      %v605 = vpack.c.b16 %v581, %v580
      %v606 = vpack.c.b16 %v583, %v582
      %v607 = vpack.c.b16 %v585, %v584
      %v608 = vpack.c.b16 %v587, %v586
      %v609 = vpack.c.b16 %v589, %v588
      %v610 = vpack.c.b16 %v591, %v590
      %v611 = vpack.c.b16 %v593, %v592
      %v612 = vpack.c.b16 %v595, %v594
      %v613 = vpack.c.b16 %v597, %v596
      %v616 = vunpack.c.l.b16 %v501
      %v617 = vunpack.c.l.b16 %v502
      %v618 = vpack.c.b16 %v617, %v616
      %619 = vrot.lane.b32.xlu0 %v599, 4
      %v620 = vpop.permute.xlu0 %619
      %621 = vrot.lane.b32.xlu0 %v600, 4
      %v622 = vpop.permute.xlu0 %621
      %623 = vrot.lane.b32.xlu0 %v601, 4
      %v624 = vpop.permute.xlu0 %623
      %625 = vrot.lane.b32.xlu0 %v602, 4
      %v626 = vpop.permute.xlu0 %625
      %627 = vrot.lane.b32.xlu0 %v603, 4
      %v628 = vpop.permute.xlu0 %627
      %629 = vrot.lane.b32.xlu0 %v604, 4
      %v630 = vpop.permute.xlu0 %629
      %631 = vrot.lane.b32.xlu0 %v605, 4
      %v632 = vpop.permute.xlu0 %631
      %633 = vrot.lane.b32.xlu0 %v606, 4
      %v634 = vpop.permute.xlu0 %633
      %635 = vrot.lane.b32.xlu0 %v607, 4
      %v636 = vpop.permute.xlu0 %635
      %637 = vrot.lane.b32.xlu0 %v608, 4
      %v638 = vpop.permute.xlu0 %637
      %639 = vrot.lane.b32.xlu0 %v609, 4
      %v640 = vpop.permute.xlu0 %639
      %641 = vrot.lane.b32.xlu0 %v610, 4
      %v642 = vpop.permute.xlu0 %641
      %643 = vrot.lane.b32.xlu0 %v611, 4
      %v644 = vpop.permute.xlu0 %643
      %645 = vrot.lane.b32.xlu0 %v612, 4
      %v646 = vpop.permute.xlu0 %645
      %647 = vrot.lane.b32.xlu0 %v613, 4
      %v648 = vpop.permute.xlu0 %647
      %649 = vrot.lane.b32.xlu0 %v618, 4
      %v650 = vpop.permute.xlu0 %649
      %v683 = vunpack.c.l.b16 %v504
      %v684 = vunpack.c.l.b16 %v505
      %v685 = vunpack.c.l.b16 %v506
      %v686 = vunpack.c.l.b16 %v507
      %v687 = vunpack.c.l.b16 %v508
      %v688 = vunpack.c.l.b16 %v509
      %v689 = vunpack.c.l.b16 %v510
      %v690 = vunpack.c.l.b16 %v511
      %v691 = vunpack.c.l.b16 %v512
      %v692 = vunpack.c.l.b16 %v513
      %v693 = vunpack.c.l.b16 %v514
      %v694 = vunpack.c.l.b16 %v515
      %v695 = vunpack.c.l.b16 %v516
      %v696 = vunpack.c.l.b16 %v517
      %v697 = vunpack.c.l.b16 %v518
      %v698 = vunpack.c.l.b16 %v519
      %v699 = vunpack.c.l.b16 %v520
      %v700 = vunpack.c.l.b16 %v521
      %v701 = vunpack.c.l.b16 %v522
      %v702 = vunpack.c.l.b16 %v523
      %v703 = vunpack.c.l.b16 %v524
      %v704 = vunpack.c.l.b16 %v525
      %v705 = vunpack.c.l.b16 %v526
      %v706 = vunpack.c.l.b16 %v527
      %v707 = vunpack.c.l.b16 %v528
      %v708 = vunpack.c.l.b16 %v529
      %v709 = vunpack.c.l.b16 %v530
      %v710 = vunpack.c.l.b16 %v531
      %v711 = vunpack.c.l.b16 %v532
      %v712 = vunpack.c.l.b16 %v533
      %v713 = vunpack.c.l.b16 %v469
      %v714 = vunpack.c.l.b16 %v470
      %v715 = vpack.c.b16 %v684, %v683
      %v716 = vpack.c.b16 %v686, %v685
      %v717 = vpack.c.b16 %v688, %v687
      %v718 = vpack.c.b16 %v690, %v689
      %v719 = vpack.c.b16 %v692, %v691
      %v720 = vpack.c.b16 %v694, %v693
      %v721 = vpack.c.b16 %v696, %v695
      %v722 = vpack.c.b16 %v698, %v697
      %v723 = vpack.c.b16 %v700, %v699
      %v724 = vpack.c.b16 %v702, %v701
      %v725 = vpack.c.b16 %v704, %v703
      %v726 = vpack.c.b16 %v706, %v705
      %v727 = vpack.c.b16 %v708, %v707
      %v728 = vpack.c.b16 %v710, %v709
      %v729 = vpack.c.b16 %v712, %v711
      %v730 = vpack.c.b16 %v714, %v713
      %731 = vrot.lane.b32.xlu0 %v715, 8
      %v732 = vpop.permute.xlu0 %731
      %733 = vrot.lane.b32.xlu0 %v716, 8
      %v734 = vpop.permute.xlu0 %733
      %735 = vrot.lane.b32.xlu0 %v717, 8
      %v736 = vpop.permute.xlu0 %735
      %737 = vrot.lane.b32.xlu0 %v718, 8
      %v738 = vpop.permute.xlu0 %737
      %739 = vrot.lane.b32.xlu0 %v719, 8
      %v740 = vpop.permute.xlu0 %739
      %741 = vrot.lane.b32.xlu0 %v720, 8
      %v742 = vpop.permute.xlu0 %741
      %743 = vrot.lane.b32.xlu0 %v721, 8
      %v744 = vpop.permute.xlu0 %743
      %745 = vrot.lane.b32.xlu0 %v722, 8
      %v746 = vpop.permute.xlu0 %745
      %747 = vrot.lane.b32.xlu0 %v723, 8
      %v748 = vpop.permute.xlu0 %747
      %749 = vrot.lane.b32.xlu0 %v724, 8
      %v750 = vpop.permute.xlu0 %749
      %751 = vrot.lane.b32.xlu0 %v725, 8
      %v752 = vpop.permute.xlu0 %751
      %753 = vrot.lane.b32.xlu0 %v726, 8
      %v754 = vpop.permute.xlu0 %753
      %755 = vrot.lane.b32.xlu0 %v727, 8
      %v756 = vpop.permute.xlu0 %755
      %757 = vrot.lane.b32.xlu0 %v728, 8
      %v758 = vpop.permute.xlu0 %757
      %759 = vrot.lane.b32.xlu0 %v729, 8
      %v760 = vpop.permute.xlu0 %759
      %761 = vrot.lane.b32.xlu0 %v730, 8
      %v762 = vpop.permute.xlu0 %761
      %vm763 = vcmask 31744
      %v766 = vsel %vm763, %v598, %v620
      %v769 = vsel %vm763, %v599, %v622
      %v772 = vsel %vm763, %v600, %v624
      %v775 = vsel %vm763, %v601, %v626
      %v778 = vsel %vm763, %v602, %v628
      %v781 = vsel %vm763, %v603, %v630
      %v784 = vsel %vm763, %v604, %v632
      %v787 = vsel %vm763, %v605, %v634
      %v790 = vsel %vm763, %v606, %v636
      %v793 = vsel %vm763, %v607, %v638
      %v796 = vsel %vm763, %v608, %v640
      %v799 = vsel %vm763, %v609, %v642
      %v802 = vsel %vm763, %v610, %v644
      %v805 = vsel %vm763, %v611, %v646
      %v808 = vsel %vm763, %v612, %v648
      %v811 = vsel %vm763, %v613, %v650
      %vm812 = vcmask 64512
      %v814 = vsel %vm812, %v766, %v732
      %v816 = vsel %vm812, %v769, %v734
      %v818 = vsel %vm812, %v772, %v736
      %v820 = vsel %vm812, %v775, %v738
      %v822 = vsel %vm812, %v778, %v740
      %v824 = vsel %vm812, %v781, %v742
      %v826 = vsel %vm812, %v784, %v744
      %v828 = vsel %vm812, %v787, %v746
      %v830 = vsel %vm812, %v790, %v748
      %v832 = vsel %vm812, %v793, %v750
      %v834 = vsel %vm812, %v796, %v752
      %v836 = vsel %vm812, %v799, %v754
      %v838 = vsel %vm812, %v802, %v756
      %v840 = vsel %vm812, %v805, %v758
      %v842 = vsel %vm812, %v808, %v760
      %v844 = vsel %vm812, %v811, %v762
      %845 = vst.msk [vmem:[#allocation2] sm:$0xff] %vm763, 0.0
      %846 = vst.msk [vmem:[#allocation2 + $0x8] sm:$0xff] %vm763, 0.0
      %vm847 = vcmask 25600
      %848 = vst.msk [vmem:[#allocation2 + $0x10] sm:$0x3] %vm847, 0.0
      %849 = vst.msk [vmem:[#allocation2 + $0x18] sm:$0xff] %vm763, 0.0
      %850 = vst.msk [vmem:[#allocation2 + $0x20] sm:$0xff] %vm763, 0.0
      %851 = vst.msk [vmem:[#allocation2 + $0x28] sm:$0x3] %vm847, 0.0
      %852 = vst.msk [vmem:[#allocation2 + $0x30] sm:$0xff] %vm763, 0.0
      %853 = vst.msk [vmem:[#allocation2 + $0x38] sm:$0xff] %vm763, 0.0
      %854 = vst.msk [vmem:[#allocation2 + $0x40] sm:$0x3] %vm847, 0.0
      %855 = vst.msk [vmem:[#allocation2 + $0x48] sm:$0xff] %vm763, 0.0
      %856 = vst.msk [vmem:[#allocation2 + $0x50] sm:$0xff] %vm763, 0.0
      %857 = vst.msk [vmem:[#allocation2 + $0x58] sm:$0x3] %vm847, 0.0
      %858 = vst.msk [vmem:[#allocation2 + $0x60] sm:$0xff] %vm763, 0.0
      %859 = vst.msk [vmem:[#allocation2 + $0x68] sm:$0xff] %vm763, 0.0
      %860 = vst.msk [vmem:[#allocation2 + $0x70] sm:$0x3] %vm847, 0.0
      %861 = vst.msk [vmem:[#allocation2 + $0x78] sm:$0xff] %vm763, 0.0
      %862 = vst.msk [vmem:[#allocation2 + $0x80] sm:$0xff] %vm763, 0.0
      %863 = vst.msk [vmem:[#allocation2 + $0x88] sm:$0x3] %vm847, 0.0
      %864 = vst.msk [vmem:[#allocation2 + $0x90] sm:$0xff] %vm763, 0.0
      %865 = vst.msk [vmem:[#allocation2 + $0x98] sm:$0xff] %vm763, 0.0
      %866 = vst.msk [vmem:[#allocation2 + $0xa0] sm:$0x3] %vm847, 0.0
      %867 = vst.msk [vmem:[#allocation2 + $0xa8] sm:$0xff] %vm763, 0.0
      %868 = vst.msk [vmem:[#allocation2 + $0xb0] sm:$0xff] %vm763, 0.0
      %869 = vst.msk [vmem:[#allocation2 + $0xb8] sm:$0x3] %vm847, 0.0
      %870 = vst.msk [vmem:[#allocation2 + $0xc0] sm:$0xff] %vm763, 0.0
      %871 = vst.msk [vmem:[#allocation2 + $0xc8] sm:$0xff] %vm763, 0.0
      %872 = vst.msk [vmem:[#allocation2 + $0xd0] sm:$0x3] %vm847, 0.0
      %873 = vst.msk [vmem:[#allocation2 + $0xd8] sm:$0xff] %vm763, 0.0
      %874 = vst.msk [vmem:[#allocation2 + $0xe0] sm:$0xff] %vm763, 0.0
      %875 = vst.msk [vmem:[#allocation2 + $0xe8] sm:$0x3] %vm847, 0.0
      %876 = vst.msk [vmem:[#allocation2 + $0xf0] sm:$0xff] %vm763, 0.0
      %877 = vst.msk [vmem:[#allocation2 + $0xf8] sm:$0xff] %vm763, 0.0
      %878 = vst.msk [vmem:[#allocation2 + $0x100] sm:$0x3] %vm847, 0.0
      %879 = vst.msk [vmem:[#allocation2 + $0x108] sm:$0xff] %vm763, 0.0
      %880 = vst.msk [vmem:[#allocation2 + $0x110] sm:$0xff] %vm763, 0.0
      %881 = vst.msk [vmem:[#allocation2 + $0x118] sm:$0x3] %vm847, 0.0
      %882 = vst.msk [vmem:[#allocation2 + $0x120] sm:$0xff] %vm763, 0.0
      %883 = vst.msk [vmem:[#allocation2 + $0x128] sm:$0xff] %vm763, 0.0
      %884 = vst.msk [vmem:[#allocation2 + $0x130] sm:$0x3] %vm847, 0.0
      %885 = vst.msk [vmem:[#allocation2 + $0x138] sm:$0xff] %vm763, 0.0
      %886 = vst.msk [vmem:[#allocation2 + $0x140] sm:$0xff] %vm763, 0.0
      %887 = vst.msk [vmem:[#allocation2 + $0x148] sm:$0x3] %vm847, 0.0
      %888 = vst.msk [vmem:[#allocation2 + $0x150] sm:$0xff] %vm763, 0.0
      %889 = vst.msk [vmem:[#allocation2 + $0x158] sm:$0xff] %vm763, 0.0
      %890 = vst.msk [vmem:[#allocation2 + $0x160] sm:$0x3] %vm847, 0.0
      %891 = vst.msk [vmem:[#allocation2 + $0x168] sm:$0xff] %vm763, 0.0
      %892 = vst.msk [vmem:[#allocation2 + $0x170] sm:$0xff] %vm763, 0.0
      %893 = vst.msk [vmem:[#allocation2 + $0x178] sm:$0x3] %vm847, 0.0
      %v894 = vld [vmem:[%s3] sm:$0xf]
      %v895 = vld [vmem:[%s3 + $0x4] sm:$0x3]
      %v898 = vunpack.c.l.b16 %v894
      %v899 = vunpack.c.l.b16 %v895
      %v900 = vpack.c.b16 %v899, %v898
      %vm901 = vcmask 97280
      %v902 = vsel %vm901, %v814, 0
      %v904 = vsel %vm901, %v816, 0
      %v906 = vsel %vm901, %v818, 0
      %v908 = vsel %vm901, %v820, 0
      %v910 = vsel %vm901, %v822, 0
      %v912 = vsel %vm901, %v824, 0
      %v914 = vsel %vm901, %v826, 0
      %v916 = vsel %vm901, %v828, 0
      %v918 = vsel %vm901, %v830, 0
      %v920 = vsel %vm901, %v832, 0
      %v922 = vsel %vm901, %v834, 0
      %v924 = vsel %vm901, %v836, 0
      %v926 = vsel %vm901, %v838, 0
      %v928 = vsel %vm901, %v840, 0
      %v930 = vsel %vm901, %v842, 0
      %v932 = vsel %vm901, %v844, 0
      %vm934 = vcmask 1045504
      %v936 = vsel %vm934, %v900, 0
      %938 = vmatpush.bf16.msra.mxu0 0
      %939 = vmatpush.bf16.msra.mxu0 0
      %940 = vmatpush.bf16.msra.mxu0 0
      %941 = vmatpush.bf16.msra.mxu0 0
      %942 = vmatpush.bf16.msra.mxu0 0
      %943 = vmatpush.bf16.msra.mxu0 0
      %944 = vmatpush.bf16.msra.mxu0 0
      %945 = vmatpush.bf16.msra.mxu0 %v936
      %946 = vmatmul.bf16.gmra.mxu0 %v902
      %v947 = vpop.f32.mrf.mxu0
      %v948 = vadd.f32 0.0, %v947
      %v949 = vpop.f32.mrf.mxu0
      %v950 = vadd.f32 0.0, %v949
      %951 = vmatmul.bf16.gmra.mxu0 %v904
      %v952 = vpop.f32.mrf.mxu0
      %v953 = vadd.f32 0.0, %v952
      %v954 = vpop.f32.mrf.mxu0
      %v955 = vadd.f32 0.0, %v954
      %956 = vmatmul.bf16.gmra.mxu0 %v906
      %v957 = vpop.f32.mrf.mxu0
      %v958 = vadd.f32 0.0, %v957
      %v959 = vpop.f32.mrf.mxu0
      %v960 = vadd.f32 0.0, %v959
      %961 = vmatmul.bf16.gmra.mxu0 %v908
      %v962 = vpop.f32.mrf.mxu0
      %v963 = vadd.f32 0.0, %v962
      %v964 = vpop.f32.mrf.mxu0
      %v965 = vadd.f32 0.0, %v964
      %966 = vmatmul.bf16.gmra.mxu0 %v910
      %v967 = vpop.f32.mrf.mxu0
      %v968 = vadd.f32 0.0, %v967
      %v969 = vpop.f32.mrf.mxu0
      %v970 = vadd.f32 0.0, %v969
      %971 = vmatmul.bf16.gmra.mxu0 %v912
      %v972 = vpop.f32.mrf.mxu0
      %v973 = vadd.f32 0.0, %v972
      %v974 = vpop.f32.mrf.mxu0
      %v975 = vadd.f32 0.0, %v974
      %976 = vmatmul.bf16.gmra.mxu0 %v914
      %v977 = vpop.f32.mrf.mxu0
      %v978 = vadd.f32 0.0, %v977
      %v979 = vpop.f32.mrf.mxu0
      %v980 = vadd.f32 0.0, %v979
      %981 = vmatmul.bf16.gmra.mxu0 %v916
      %v982 = vpop.f32.mrf.mxu0
      %v983 = vadd.f32 0.0, %v982
      %v984 = vpop.f32.mrf.mxu0
      %v985 = vadd.f32 0.0, %v984
      %986 = vmatmul.bf16.gmra.mxu0 %v918
      %v987 = vpop.f32.mrf.mxu0
      %v988 = vadd.f32 0.0, %v987
      %v989 = vpop.f32.mrf.mxu0
      %v990 = vadd.f32 0.0, %v989
      %991 = vmatmul.bf16.gmra.mxu0 %v920
      %v992 = vpop.f32.mrf.mxu0
      %v993 = vadd.f32 0.0, %v992
      %v994 = vpop.f32.mrf.mxu0
      %v995 = vadd.f32 0.0, %v994
      %996 = vmatmul.bf16.gmra.mxu0 %v922
      %v997 = vpop.f32.mrf.mxu0
      %v998 = vadd.f32 0.0, %v997
      %v999 = vpop.f32.mrf.mxu0
      %v1000 = vadd.f32 0.0, %v999
      %1001 = vmatmul.bf16.gmra.mxu0 %v924
      %v1002 = vpop.f32.mrf.mxu0
      %v1003 = vadd.f32 0.0, %v1002
      %v1004 = vpop.f32.mrf.mxu0
      %v1005 = vadd.f32 0.0, %v1004
      %1006 = vmatmul.bf16.gmra.mxu0 %v926
      %v1007 = vpop.f32.mrf.mxu0
      %v1008 = vadd.f32 0.0, %v1007
      %v1009 = vpop.f32.mrf.mxu0
      %v1010 = vadd.f32 0.0, %v1009
      %1011 = vmatmul.bf16.gmra.mxu0 %v928
      %v1012 = vpop.f32.mrf.mxu0
      %v1013 = vadd.f32 0.0, %v1012
      %v1014 = vpop.f32.mrf.mxu0
      %v1015 = vadd.f32 0.0, %v1014
      %1016 = vmatmul.bf16.gmra.mxu0 %v930
      %v1017 = vpop.f32.mrf.mxu0
      %v1018 = vadd.f32 0.0, %v1017
      %v1019 = vpop.f32.mrf.mxu0
      %v1020 = vadd.f32 0.0, %v1019
      %1021 = vmatmul.bf16.gmra.mxu0 %v932
      %v1022 = vpop.f32.mrf.mxu0
      %v1023 = vadd.f32 0.0, %v1022
      %v1024 = vpop.f32.mrf.mxu0
      %v1025 = vadd.f32 0.0, %v1024
      %1026 = vdwg.mxu0
      %v1027 = vld [vmem:[#allocation2 + $0x2] sm:$0xff]
      %v1028 = vld [vmem:[#allocation2 + $0xa] sm:$0xff]
      %v1029 = vld [vmem:[#allocation2 + $0x1a] sm:$0xff]
      %v1030 = vld [vmem:[#allocation2 + $0x22] sm:$0xff]
      %v1031 = vld [vmem:[#allocation2 + $0x32] sm:$0xff]
      %v1032 = vld [vmem:[#allocation2 + $0x3a] sm:$0xff]
      %v1033 = vld [vmem:[#allocation2 + $0x4a] sm:$0xff]
      %v1034 = vld [vmem:[#allocation2 + $0x52] sm:$0xff]
      %v1035 = vld [vmem:[#allocation2 + $0x62] sm:$0xff]
      %v1036 = vld [vmem:[#allocation2 + $0x6a] sm:$0xff]
      %v1037 = vld [vmem:[#allocation2 + $0x7a] sm:$0xff]
      %v1038 = vld [vmem:[#allocation2 + $0x82] sm:$0xff]
      %v1039 = vld [vmem:[#allocation2 + $0x92] sm:$0xff]
      %v1040 = vld [vmem:[#allocation2 + $0x9a] sm:$0xff]
      %v1041 = vld [vmem:[#allocation2 + $0xaa] sm:$0xff]
      %v1042 = vld [vmem:[#allocation2 + $0xb2] sm:$0xff]
      %v1043 = vld [vmem:[#allocation2 + $0xc2] sm:$0xff]
      %v1044 = vld [vmem:[#allocation2 + $0xca] sm:$0xff]
      %v1045 = vld [vmem:[#allocation2 + $0xda] sm:$0xff]
      %v1046 = vld [vmem:[#allocation2 + $0xe2] sm:$0xff]
      %v1047 = vld [vmem:[#allocation2 + $0xf2] sm:$0xff]
      %v1048 = vld [vmem:[#allocation2 + $0xfa] sm:$0xff]
      %v1049 = vld [vmem:[#allocation2 + $0x10a] sm:$0xff]
      %v1050 = vld [vmem:[#allocation2 + $0x112] sm:$0xff]
      %v1051 = vld [vmem:[#allocation2 + $0x122] sm:$0xff]
      %v1052 = vld [vmem:[#allocation2 + $0x12a] sm:$0xff]
      %v1053 = vld [vmem:[#allocation2 + $0x13a] sm:$0xff]
      %v1054 = vld [vmem:[#allocation2 + $0x142] sm:$0xff]
      %v1055 = vld [vmem:[#allocation2 + $0x152] sm:$0xff]
      %v1056 = vld [vmem:[#allocation2 + $0x15a] sm:$0xff]
      %v1057 = vld [vmem:[#allocation2 + $0x16a] sm:$0xff]
      %v1058 = vld [vmem:[#allocation2 + $0x172] sm:$0xff]
      %v1059 = vadd.f32 %v1027, %v948
      %v1060 = vadd.f32 %v1028, %v950
      %v1061 = vadd.f32 %v1029, %v953
      %v1062 = vadd.f32 %v1030, %v955
      %v1063 = vadd.f32 %v1031, %v958
      %v1064 = vadd.f32 %v1032, %v960
      %v1065 = vadd.f32 %v1033, %v963
      %v1066 = vadd.f32 %v1034, %v965
      %v1067 = vadd.f32 %v1035, %v968
      %v1068 = vadd.f32 %v1036, %v970
      %v1069 = vadd.f32 %v1037, %v973
      %v1070 = vadd.f32 %v1038, %v975
      %v1071 = vadd.f32 %v1039, %v978
      %v1072 = vadd.f32 %v1040, %v980
      %v1073 = vadd.f32 %v1041, %v983
      %v1074 = vadd.f32 %v1042, %v985
      %v1075 = vadd.f32 %v1043, %v988
      %v1076 = vadd.f32 %v1044, %v990
      %v1077 = vadd.f32 %v1045, %v993
      %v1078 = vadd.f32 %v1046, %v995
      %v1079 = vadd.f32 %v1047, %v998
      %v1080 = vadd.f32 %v1048, %v1000
      %v1081 = vadd.f32 %v1049, %v1003
      %v1082 = vadd.f32 %v1050, %v1005
      %v1083 = vadd.f32 %v1051, %v1008
      %v1084 = vadd.f32 %v1052, %v1010
      %v1085 = vadd.f32 %v1053, %v1013
      %v1086 = vadd.f32 %v1054, %v1015
      %v1087 = vadd.f32 %v1055, %v1018
      %v1088 = vadd.f32 %v1056, %v1020
      %v1089 = vadd.f32 %v1057, %v1023
      %v1090 = vadd.f32 %v1058, %v1025
      %1091 = vst.msk [vmem:[#allocation2 + $0x2] sm:$0xff] %vm763, %v1059
      %1092 = vst.msk [vmem:[#allocation2 + $0xa] sm:$0xff] %vm763, %v1060
      %1093 = vst.msk [vmem:[#allocation2 + $0x1a] sm:$0xff] %vm763, %v1061
      %1094 = vst.msk [vmem:[#allocation2 + $0x22] sm:$0xff] %vm763, %v1062
      %1095 = vst.msk [vmem:[#allocation2 + $0x32] sm:$0xff] %vm763, %v1063
      %1096 = vst.msk [vmem:[#allocation2 + $0x3a] sm:$0xff] %vm763, %v1064
      %1097 = vst.msk [vmem:[#allocation2 + $0x4a] sm:$0xff] %vm763, %v1065
      %1098 = vst.msk [vmem:[#allocation2 + $0x52] sm:$0xff] %vm763, %v1066
      %1099 = vst.msk [vmem:[#allocation2 + $0x62] sm:$0xff] %vm763, %v1067
      %1100 = vst.msk [vmem:[#allocation2 + $0x6a] sm:$0xff] %vm763, %v1068
      %1101 = vst.msk [vmem:[#allocation2 + $0x7a] sm:$0xff] %vm763, %v1069
      %1102 = vst.msk [vmem:[#allocation2 + $0x82] sm:$0xff] %vm763, %v1070
      %1103 = vst.msk [vmem:[#allocation2 + $0x92] sm:$0xff] %vm763, %v1071
      %1104 = vst.msk [vmem:[#allocation2 + $0x9a] sm:$0xff] %vm763, %v1072
      %1105 = vst.msk [vmem:[#allocation2 + $0xaa] sm:$0xff] %vm763, %v1073
      %1106 = vst.msk [vmem:[#allocation2 + $0xb2] sm:$0xff] %vm763, %v1074
      %1107 = vst.msk [vmem:[#allocation2 + $0xc2] sm:$0xff] %vm763, %v1075
      %1108 = vst.msk [vmem:[#allocation2 + $0xca] sm:$0xff] %vm763, %v1076
      %1109 = vst.msk [vmem:[#allocation2 + $0xda] sm:$0xff] %vm763, %v1077
      %1110 = vst.msk [vmem:[#allocation2 + $0xe2] sm:$0xff] %vm763, %v1078
      %1111 = vst.msk [vmem:[#allocation2 + $0xf2] sm:$0xff] %vm763, %v1079
      %1112 = vst.msk [vmem:[#allocation2 + $0xfa] sm:$0xff] %vm763, %v1080
      %1113 = vst.msk [vmem:[#allocation2 + $0x10a] sm:$0xff] %vm763, %v1081
      %1114 = vst.msk [vmem:[#allocation2 + $0x112] sm:$0xff] %vm763, %v1082
      %1115 = vst.msk [vmem:[#allocation2 + $0x122] sm:$0xff] %vm763, %v1083
      %1116 = vst.msk [vmem:[#allocation2 + $0x12a] sm:$0xff] %vm763, %v1084
      %1117 = vst.msk [vmem:[#allocation2 + $0x13a] sm:$0xff] %vm763, %v1085
      %1118 = vst.msk [vmem:[#allocation2 + $0x142] sm:$0xff] %vm763, %v1086
      %1119 = vst.msk [vmem:[#allocation2 + $0x152] sm:$0xff] %vm763, %v1087
      %1120 = vst.msk [vmem:[#allocation2 + $0x15a] sm:$0xff] %vm763, %v1088
      %1121 = vst.msk [vmem:[#allocation2 + $0x16a] sm:$0xff] %vm763, %v1089
      %1122 = vst.msk [vmem:[#allocation2 + $0x172] sm:$0xff] %vm763, %v1090
      %s1123 = scalar_lea.vmem %s3, 8
      %v1124 = vld [vmem:[%s1123] sm:$0xf]
      %v1125 = vld [vmem:[%s1123 + $0x4] sm:$0x3]
      %v1128 = vunpack.c.l.b16 %v1124
      %v1129 = vunpack.c.l.b16 %v1125
      %v1130 = vpack.c.b16 %v1129, %v1128
      %v1132 = vsel %vm934, %v1130, 0
      %1134 = vmatpush.bf16.msra.mxu0 0
      %1135 = vmatpush.bf16.msra.mxu0 0
      %1136 = vmatpush.bf16.msra.mxu0 0
      %1137 = vmatpush.bf16.msra.mxu0 0
      %1138 = vmatpush.bf16.msra.mxu0 0
      %1139 = vmatpush.bf16.msra.mxu0 0
      %1140 = vmatpush.bf16.msra.mxu0 0
      %1141 = vmatpush.bf16.msra.mxu0 %v1132
      %1142 = vmatmul.bf16.gmra.mxu0 %v902
      %v1143 = vpop.f32.mrf.mxu0
      %v1144 = vadd.f32 0.0, %v1143
      %v1145 = vpop.f32.mrf.mxu0
      %v1146 = vadd.f32 0.0, %v1145
      %1147 = vmatmul.bf16.gmra.mxu0 %v904
      %v1148 = vpop.f32.mrf.mxu0
      %v1149 = vadd.f32 0.0, %v1148
      %v1150 = vpop.f32.mrf.mxu0
      %v1151 = vadd.f32 0.0, %v1150
      %1152 = vmatmul.bf16.gmra.mxu0 %v906
      %v1153 = vpop.f32.mrf.mxu0
      %v1154 = vadd.f32 0.0, %v1153
      %v1155 = vpop.f32.mrf.mxu0
      %v1156 = vadd.f32 0.0, %v1155
      %1157 = vmatmul.bf16.gmra.mxu0 %v908
      %v1158 = vpop.f32.mrf.mxu0
      %v1159 = vadd.f32 0.0, %v1158
      %v1160 = vpop.f32.mrf.mxu0
      %v1161 = vadd.f32 0.0, %v1160
      %1162 = vmatmul.bf16.gmra.mxu0 %v910
      %v1163 = vpop.f32.mrf.mxu0
      %v1164 = vadd.f32 0.0, %v1163
      %v1165 = vpop.f32.mrf.mxu0
      %v1166 = vadd.f32 0.0, %v1165
      %1167 = vmatmul.bf16.gmra.mxu0 %v912
      %v1168 = vpop.f32.mrf.mxu0
      %v1169 = vadd.f32 0.0, %v1168
      %v1170 = vpop.f32.mrf.mxu0
      %v1171 = vadd.f32 0.0, %v1170
      %1172 = vmatmul.bf16.gmra.mxu0 %v914
      %v1173 = vpop.f32.mrf.mxu0
      %v1174 = vadd.f32 0.0, %v1173
      %v1175 = vpop.f32.mrf.mxu0
      %v1176 = vadd.f32 0.0, %v1175
      %1177 = vmatmul.bf16.gmra.mxu0 %v916
      %v1178 = vpop.f32.mrf.mxu0
      %v1179 = vadd.f32 0.0, %v1178
      %v1180 = vpop.f32.mrf.mxu0
      %v1181 = vadd.f32 0.0, %v1180
      %1182 = vmatmul.bf16.gmra.mxu0 %v918
      %v1183 = vpop.f32.mrf.mxu0
      %v1184 = vadd.f32 0.0, %v1183
      %v1185 = vpop.f32.mrf.mxu0
      %v1186 = vadd.f32 0.0, %v1185
      %1187 = vmatmul.bf16.gmra.mxu0 %v920
      %v1188 = vpop.f32.mrf.mxu0
      %v1189 = vadd.f32 0.0, %v1188
      %v1190 = vpop.f32.mrf.mxu0
      %v1191 = vadd.f32 0.0, %v1190
      %1192 = vmatmul.bf16.gmra.mxu0 %v922
      %v1193 = vpop.f32.mrf.mxu0
      %v1194 = vadd.f32 0.0, %v1193
      %v1195 = vpop.f32.mrf.mxu0
      %v1196 = vadd.f32 0.0, %v1195
      %1197 = vmatmul.bf16.gmra.mxu0 %v924
      %v1198 = vpop.f32.mrf.mxu0
      %v1199 = vadd.f32 0.0, %v1198
      %v1200 = vpop.f32.mrf.mxu0
      %v1201 = vadd.f32 0.0, %v1200
      %1202 = vmatmul.bf16.gmra.mxu0 %v926
      %v1203 = vpop.f32.mrf.mxu0
      %v1204 = vadd.f32 0.0, %v1203
      %v1205 = vpop.f32.mrf.mxu0
      %v1206 = vadd.f32 0.0, %v1205
      %1207 = vmatmul.bf16.gmra.mxu0 %v928
      %v1208 = vpop.f32.mrf.mxu0
      %v1209 = vadd.f32 0.0, %v1208
      %v1210 = vpop.f32.mrf.mxu0
      %v1211 = vadd.f32 0.0, %v1210
      %1212 = vmatmul.bf16.gmra.mxu0 %v930
      %v1213 = vpop.f32.mrf.mxu0
      %v1214 = vadd.f32 0.0, %v1213
      %v1215 = vpop.f32.mrf.mxu0
      %v1216 = vadd.f32 0.0, %v1215
      %1217 = vmatmul.bf16.gmra.mxu0 %v932
      %v1218 = vpop.f32.mrf.mxu0
      %v1219 = vadd.f32 0.0, %v1218
      %v1220 = vpop.f32.mrf.mxu0
      %v1221 = vadd.f32 0.0, %v1220
      %1222 = vdwg.mxu0
      %v1223 = vld [vmem:[#allocation2 + $0x1] sm:$0xff]
      %v1224 = vld [vmem:[#allocation2 + $0x9] sm:$0xff]
      %v1225 = vld [vmem:[#allocation2 + $0x19] sm:$0xff]
      %v1226 = vld [vmem:[#allocation2 + $0x21] sm:$0xff]
      %v1227 = vld [vmem:[#allocation2 + $0x31] sm:$0xff]
      %v1228 = vld [vmem:[#allocation2 + $0x39] sm:$0xff]
      %v1229 = vld [vmem:[#allocation2 + $0x49] sm:$0xff]
      %v1230 = vld [vmem:[#allocation2 + $0x51] sm:$0xff]
      %v1231 = vld [vmem:[#allocation2 + $0x61] sm:$0xff]
      %v1232 = vld [vmem:[#allocation2 + $0x69] sm:$0xff]
      %v1233 = vld [vmem:[#allocation2 + $0x79] sm:$0xff]
      %v1234 = vld [vmem:[#allocation2 + $0x81] sm:$0xff]
      %v1235 = vld [vmem:[#allocation2 + $0x91] sm:$0xff]
      %v1236 = vld [vmem:[#allocation2 + $0x99] sm:$0xff]
      %v1237 = vld [vmem:[#allocation2 + $0xa9] sm:$0xff]
      %v1238 = vld [vmem:[#allocation2 + $0xb1] sm:$0xff]
      %v1239 = vld [vmem:[#allocation2 + $0xc1] sm:$0xff]
      %v1240 = vld [vmem:[#allocation2 + $0xc9] sm:$0xff]
      %v1241 = vld [vmem:[#allocation2 + $0xd9] sm:$0xff]
      %v1242 = vld [vmem:[#allocation2 + $0xe1] sm:$0xff]
      %v1243 = vld [vmem:[#allocation2 + $0xf1] sm:$0xff]
      %v1244 = vld [vmem:[#allocation2 + $0xf9] sm:$0xff]
      %v1245 = vld [vmem:[#allocation2 + $0x109] sm:$0xff]
      %v1246 = vld [vmem:[#allocation2 + $0x111] sm:$0xff]
      %v1247 = vld [vmem:[#allocation2 + $0x121] sm:$0xff]
      %v1248 = vld [vmem:[#allocation2 + $0x129] sm:$0xff]
      %v1249 = vld [vmem:[#allocation2 + $0x139] sm:$0xff]
      %v1250 = vld [vmem:[#allocation2 + $0x141] sm:$0xff]
      %v1251 = vld [vmem:[#allocation2 + $0x151] sm:$0xff]
      %v1252 = vld [vmem:[#allocation2 + $0x159] sm:$0xff]
      %v1253 = vld [vmem:[#allocation2 + $0x169] sm:$0xff]
      %v1254 = vld [vmem:[#allocation2 + $0x171] sm:$0xff]
      %v1255 = vadd.f32 %v1223, %v1144
      %v1256 = vadd.f32 %v1224, %v1146
      %v1257 = vadd.f32 %v1225, %v1149
      %v1258 = vadd.f32 %v1226, %v1151
      %v1259 = vadd.f32 %v1227, %v1154
      %v1260 = vadd.f32 %v1228, %v1156
      %v1261 = vadd.f32 %v1229, %v1159
      %v1262 = vadd.f32 %v1230, %v1161
      %v1263 = vadd.f32 %v1231, %v1164
      %v1264 = vadd.f32 %v1232, %v1166
      %v1265 = vadd.f32 %v1233, %v1169
      %v1266 = vadd.f32 %v1234, %v1171
      %v1267 = vadd.f32 %v1235, %v1174
      %v1268 = vadd.f32 %v1236, %v1176
      %v1269 = vadd.f32 %v1237, %v1179
      %v1270 = vadd.f32 %v1238, %v1181
      %v1271 = vadd.f32 %v1239, %v1184
      %v1272 = vadd.f32 %v1240, %v1186
      %v1273 = vadd.f32 %v1241, %v1189
      %v1274 = vadd.f32 %v1242, %v1191
      %v1275 = vadd.f32 %v1243, %v1194
      %v1276 = vadd.f32 %v1244, %v1196
      %v1277 = vadd.f32 %v1245, %v1199
      %v1278 = vadd.f32 %v1246, %v1201
      %v1279 = vadd.f32 %v1247, %v1204
      %v1280 = vadd.f32 %v1248, %v1206
      %v1281 = vadd.f32 %v1249, %v1209
      %v1282 = vadd.f32 %v1250, %v1211
      %v1283 = vadd.f32 %v1251, %v1214
      %v1284 = vadd.f32 %v1252, %v1216
      %v1285 = vadd.f32 %v1253, %v1219
      %v1286 = vadd.f32 %v1254, %v1221
      %1287 = vst.msk [vmem:[#allocation2 + $0x1] sm:$0xff] %vm763, %v1255
      %1288 = vst.msk [vmem:[#allocation2 + $0x9] sm:$0xff] %vm763, %v1256
      %1289 = vst.msk [vmem:[#allocation2 + $0x19] sm:$0xff] %vm763, %v1257
      %1290 = vst.msk [vmem:[#allocation2 + $0x21] sm:$0xff] %vm763, %v1258
      %1291 = vst.msk [vmem:[#allocation2 + $0x31] sm:$0xff] %vm763, %v1259
      %1292 = vst.msk [vmem:[#allocation2 + $0x39] sm:$0xff] %vm763, %v1260
      %1293 = vst.msk [vmem:[#allocation2 + $0x49] sm:$0xff] %vm763, %v1261
      %1294 = vst.msk [vmem:[#allocation2 + $0x51] sm:$0xff] %vm763, %v1262
      %1295 = vst.msk [vmem:[#allocation2 + $0x61] sm:$0xff] %vm763, %v1263
      %1296 = vst.msk [vmem:[#allocation2 + $0x69] sm:$0xff] %vm763, %v1264
      %1297 = vst.msk [vmem:[#allocation2 + $0x79] sm:$0xff] %vm763, %v1265
      %1298 = vst.msk [vmem:[#allocation2 + $0x81] sm:$0xff] %vm763, %v1266
      %1299 = vst.msk [vmem:[#allocation2 + $0x91] sm:$0xff] %vm763, %v1267
      %1300 = vst.msk [vmem:[#allocation2 + $0x99] sm:$0xff] %vm763, %v1268
      %1301 = vst.msk [vmem:[#allocation2 + $0xa9] sm:$0xff] %vm763, %v1269
      %1302 = vst.msk [vmem:[#allocation2 + $0xb1] sm:$0xff] %vm763, %v1270
      %1303 = vst.msk [vmem:[#allocation2 + $0xc1] sm:$0xff] %vm763, %v1271
      %1304 = vst.msk [vmem:[#allocation2 + $0xc9] sm:$0xff] %vm763, %v1272
      %1305 = vst.msk [vmem:[#allocation2 + $0xd9] sm:$0xff] %vm763, %v1273
      %1306 = vst.msk [vmem:[#allocation2 + $0xe1] sm:$0xff] %vm763, %v1274
      %1307 = vst.msk [vmem:[#allocation2 + $0xf1] sm:$0xff] %vm763, %v1275
      %1308 = vst.msk [vmem:[#allocation2 + $0xf9] sm:$0xff] %vm763, %v1276
      %1309 = vst.msk [vmem:[#allocation2 + $0x109] sm:$0xff] %vm763, %v1277
      %1310 = vst.msk [vmem:[#allocation2 + $0x111] sm:$0xff] %vm763, %v1278
      %1311 = vst.msk [vmem:[#allocation2 + $0x121] sm:$0xff] %vm763, %v1279
      %1312 = vst.msk [vmem:[#allocation2 + $0x129] sm:$0xff] %vm763, %v1280
      %1313 = vst.msk [vmem:[#allocation2 + $0x139] sm:$0xff] %vm763, %v1281
      %1314 = vst.msk [vmem:[#allocation2 + $0x141] sm:$0xff] %vm763, %v1282
      %1315 = vst.msk [vmem:[#allocation2 + $0x151] sm:$0xff] %vm763, %v1283
      %1316 = vst.msk [vmem:[#allocation2 + $0x159] sm:$0xff] %vm763, %v1284
      %1317 = vst.msk [vmem:[#allocation2 + $0x169] sm:$0xff] %vm763, %v1285
      %1318 = vst.msk [vmem:[#allocation2 + $0x171] sm:$0xff] %vm763, %v1286
      %s1319 = scalar_lea.vmem %s3, 16
      %v1320 = vld [vmem:[%s1319] sm:$0xf]
      %v1321 = vld [vmem:[%s1319 + $0x4] sm:$0x3]
      %v1324 = vunpack.c.l.b16 %v1320
      %v1325 = vunpack.c.l.b16 %v1321
      %v1326 = vpack.c.b16 %v1325, %v1324
      %v1328 = vsel %vm934, %v1326, 0
      %1330 = vmatpush.bf16.msra.mxu0 0
      %1331 = vmatpush.bf16.msra.mxu0 0
      %1332 = vmatpush.bf16.msra.mxu0 0
      %1333 = vmatpush.bf16.msra.mxu0 0
      %1334 = vmatpush.bf16.msra.mxu0 0
      %1335 = vmatpush.bf16.msra.mxu0 0
      %1336 = vmatpush.bf16.msra.mxu0 0
      %1337 = vmatpush.bf16.msra.mxu0 %v1328
      %1338 = vmatmul.bf16.gmra.mxu0 %v902
      %v1339 = vpop.f32.mrf.mxu0
      %v1340 = vadd.f32 0.0, %v1339
      %v1341 = vpop.f32.mrf.mxu0
      %v1342 = vadd.f32 0.0, %v1341
      %1343 = vmatmul.bf16.gmra.mxu0 %v904
      %v1344 = vpop.f32.mrf.mxu0
      %v1345 = vadd.f32 0.0, %v1344
      %v1346 = vpop.f32.mrf.mxu0
      %v1347 = vadd.f32 0.0, %v1346
      %1348 = vmatmul.bf16.gmra.mxu0 %v906
      %v1349 = vpop.f32.mrf.mxu0
      %v1350 = vadd.f32 0.0, %v1349
      %v1351 = vpop.f32.mrf.mxu0
      %v1352 = vadd.f32 0.0, %v1351
      %1353 = vmatmul.bf16.gmra.mxu0 %v908
      %v1354 = vpop.f32.mrf.mxu0
      %v1355 = vadd.f32 0.0, %v1354
      %v1356 = vpop.f32.mrf.mxu0
      %v1357 = vadd.f32 0.0, %v1356
      %1358 = vmatmul.bf16.gmra.mxu0 %v910
      %v1359 = vpop.f32.mrf.mxu0
      %v1360 = vadd.f32 0.0, %v1359
      %v1361 = vpop.f32.mrf.mxu0
      %v1362 = vadd.f32 0.0, %v1361
      %1363 = vmatmul.bf16.gmra.mxu0 %v912
      %v1364 = vpop.f32.mrf.mxu0
      %v1365 = vadd.f32 0.0, %v1364
      %v1366 = vpop.f32.mrf.mxu0
      %v1367 = vadd.f32 0.0, %v1366
      %1368 = vmatmul.bf16.gmra.mxu0 %v914
      %v1369 = vpop.f32.mrf.mxu0
      %v1370 = vadd.f32 0.0, %v1369
      %v1371 = vpop.f32.mrf.mxu0
      %v1372 = vadd.f32 0.0, %v1371
      %1373 = vmatmul.bf16.gmra.mxu0 %v916
      %v1374 = vpop.f32.mrf.mxu0
      %v1375 = vadd.f32 0.0, %v1374
      %v1376 = vpop.f32.mrf.mxu0
      %v1377 = vadd.f32 0.0, %v1376
      %1378 = vmatmul.bf16.gmra.mxu0 %v918
      %v1379 = vpop.f32.mrf.mxu0
      %v1380 = vadd.f32 0.0, %v1379
      %v1381 = vpop.f32.mrf.mxu0
      %v1382 = vadd.f32 0.0, %v1381
      %1383 = vmatmul.bf16.gmra.mxu0 %v920
      %v1384 = vpop.f32.mrf.mxu0
      %v1385 = vadd.f32 0.0, %v1384
      %v1386 = vpop.f32.mrf.mxu0
      %v1387 = vadd.f32 0.0, %v1386
      %1388 = vmatmul.bf16.gmra.mxu0 %v922
      %v1389 = vpop.f32.mrf.mxu0
      %v1390 = vadd.f32 0.0, %v1389
      %v1391 = vpop.f32.mrf.mxu0
      %v1392 = vadd.f32 0.0, %v1391
      %1393 = vmatmul.bf16.gmra.mxu0 %v924
      %v1394 = vpop.f32.mrf.mxu0
      %v1395 = vadd.f32 0.0, %v1394
      %v1396 = vpop.f32.mrf.mxu0
      %v1397 = vadd.f32 0.0, %v1396
      %1398 = vmatmul.bf16.gmra.mxu0 %v926
      %v1399 = vpop.f32.mrf.mxu0
      %v1400 = vadd.f32 0.0, %v1399
      %v1401 = vpop.f32.mrf.mxu0
      %v1402 = vadd.f32 0.0, %v1401
      %1403 = vmatmul.bf16.gmra.mxu0 %v928
      %v1404 = vpop.f32.mrf.mxu0
      %v1405 = vadd.f32 0.0, %v1404
      %v1406 = vpop.f32.mrf.mxu0
      %v1407 = vadd.f32 0.0, %v1406
      %1408 = vmatmul.bf16.gmra.mxu0 %v930
      %v1409 = vpop.f32.mrf.mxu0
      %v1410 = vadd.f32 0.0, %v1409
      %v1411 = vpop.f32.mrf.mxu0
      %v1412 = vadd.f32 0.0, %v1411
      %1413 = vmatmul.bf16.gmra.mxu0 %v932
      %v1414 = vpop.f32.mrf.mxu0
      %v1415 = vadd.f32 0.0, %v1414
      %v1416 = vpop.f32.mrf.mxu0
      %v1417 = vadd.f32 0.0, %v1416
      %1418 = vdwg.mxu0
      %v1419 = vld [vmem:[#allocation2] sm:$0xff]
      %v1420 = vld [vmem:[#allocation2 + $0x8] sm:$0xff]
      %v1421 = vld [vmem:[#allocation2 + $0x18] sm:$0xff]
      %v1422 = vld [vmem:[#allocation2 + $0x20] sm:$0xff]
      %v1423 = vld [vmem:[#allocation2 + $0x30] sm:$0xff]
      %v1424 = vld [vmem:[#allocation2 + $0x38] sm:$0xff]
      %v1425 = vld [vmem:[#allocation2 + $0x48] sm:$0xff]
      %v1426 = vld [vmem:[#allocation2 + $0x50] sm:$0xff]
      %v1427 = vld [vmem:[#allocation2 + $0x60] sm:$0xff]
      %v1428 = vld [vmem:[#allocation2 + $0x68] sm:$0xff]
      %v1429 = vld [vmem:[#allocation2 + $0x78] sm:$0xff]
      %v1430 = vld [vmem:[#allocation2 + $0x80] sm:$0xff]
      %v1431 = vld [vmem:[#allocation2 + $0x90] sm:$0xff]
      %v1432 = vld [vmem:[#allocation2 + $0x98] sm:$0xff]
      %v1433 = vld [vmem:[#allocation2 + $0xa8] sm:$0xff]
      %v1434 = vld [vmem:[#allocation2 + $0xb0] sm:$0xff]
      %v1435 = vld [vmem:[#allocation2 + $0xc0] sm:$0xff]
      %v1436 = vld [vmem:[#allocation2 + $0xc8] sm:$0xff]
      %v1437 = vld [vmem:[#allocation2 + $0xd8] sm:$0xff]
      %v1438 = vld [vmem:[#allocation2 + $0xe0] sm:$0xff]
      %v1439 = vld [vmem:[#allocation2 + $0xf0] sm:$0xff]
      %v1440 = vld [vmem:[#allocation2 + $0xf8] sm:$0xff]
      %v1441 = vld [vmem:[#allocation2 + $0x108] sm:$0xff]
      %v1442 = vld [vmem:[#allocation2 + $0x110] sm:$0xff]
      %v1443 = vld [vmem:[#allocation2 + $0x120] sm:$0xff]
      %v1444 = vld [vmem:[#allocation2 + $0x128] sm:$0xff]
      %v1445 = vld [vmem:[#allocation2 + $0x138] sm:$0xff]
      %v1446 = vld [vmem:[#allocation2 + $0x140] sm:$0xff]
      %v1447 = vld [vmem:[#allocation2 + $0x150] sm:$0xff]
      %v1448 = vld [vmem:[#allocation2 + $0x158] sm:$0xff]
      %v1449 = vld [vmem:[#allocation2 + $0x168] sm:$0xff]
      %v1450 = vld [vmem:[#allocation2 + $0x170] sm:$0xff]
      %v1451 = vadd.f32 %v1419, %v1340
      %v1452 = vadd.f32 %v1420, %v1342
      %v1453 = vadd.f32 %v1421, %v1345
      %v1454 = vadd.f32 %v1422, %v1347
      %v1455 = vadd.f32 %v1423, %v1350
      %v1456 = vadd.f32 %v1424, %v1352
      %v1457 = vadd.f32 %v1425, %v1355
      %v1458 = vadd.f32 %v1426, %v1357
      %v1459 = vadd.f32 %v1427, %v1360
      %v1460 = vadd.f32 %v1428, %v1362
      %v1461 = vadd.f32 %v1429, %v1365
      %v1462 = vadd.f32 %v1430, %v1367
      %v1463 = vadd.f32 %v1431, %v1370
      %v1464 = vadd.f32 %v1432, %v1372
      %v1465 = vadd.f32 %v1433, %v1375
      %v1466 = vadd.f32 %v1434, %v1377
      %v1467 = vadd.f32 %v1435, %v1380
      %v1468 = vadd.f32 %v1436, %v1382
      %v1469 = vadd.f32 %v1437, %v1385
      %v1470 = vadd.f32 %v1438, %v1387
      %v1471 = vadd.f32 %v1439, %v1390
      %v1472 = vadd.f32 %v1440, %v1392
      %v1473 = vadd.f32 %v1441, %v1395
      %v1474 = vadd.f32 %v1442, %v1397
      %v1475 = vadd.f32 %v1443, %v1400
      %v1476 = vadd.f32 %v1444, %v1402
      %v1477 = vadd.f32 %v1445, %v1405
      %v1478 = vadd.f32 %v1446, %v1407
      %v1479 = vadd.f32 %v1447, %v1410
      %v1480 = vadd.f32 %v1448, %v1412
      %v1481 = vadd.f32 %v1449, %v1415
      %v1482 = vadd.f32 %v1450, %v1417
      %1483 = vst.msk [vmem:[#allocation2] sm:$0xff] %vm763, %v1451
      %1484 = vst.msk [vmem:[#allocation2 + $0x8] sm:$0xff] %vm763, %v1452
      %1485 = vst.msk [vmem:[#allocation2 + $0x18] sm:$0xff] %vm763, %v1453
      %1486 = vst.msk [vmem:[#allocation2 + $0x20] sm:$0xff] %vm763, %v1454
      %1487 = vst.msk [vmem:[#allocation2 + $0x30] sm:$0xff] %vm763, %v1455
      %1488 = vst.msk [vmem:[#allocation2 + $0x38] sm:$0xff] %vm763, %v1456
      %1489 = vst.msk [vmem:[#allocation2 + $0x48] sm:$0xff] %vm763, %v1457
      %1490 = vst.msk [vmem:[#allocation2 + $0x50] sm:$0xff] %vm763, %v1458
      %1491 = vst.msk [vmem:[#allocation2 + $0x60] sm:$0xff] %vm763, %v1459
      %1492 = vst.msk [vmem:[#allocation2 + $0x68] sm:$0xff] %vm763, %v1460
      %1493 = vst.msk [vmem:[#allocation2 + $0x78] sm:$0xff] %vm763, %v1461
      %1494 = vst.msk [vmem:[#allocation2 + $0x80] sm:$0xff] %vm763, %v1462
      %1495 = vst.msk [vmem:[#allocation2 + $0x90] sm:$0xff] %vm763, %v1463
      %1496 = vst.msk [vmem:[#allocation2 + $0x98] sm:$0xff] %vm763, %v1464
      %1497 = vst.msk [vmem:[#allocation2 + $0xa8] sm:$0xff] %vm763, %v1465
      %1498 = vst.msk [vmem:[#allocation2 + $0xb0] sm:$0xff] %vm763, %v1466
      %1499 = vst.msk [vmem:[#allocation2 + $0xc0] sm:$0xff] %vm763, %v1467
      %1500 = vst.msk [vmem:[#allocation2 + $0xc8] sm:$0xff] %vm763, %v1468
      %1501 = vst.msk [vmem:[#allocation2 + $0xd8] sm:$0xff] %vm763, %v1469
      %1502 = vst.msk [vmem:[#allocation2 + $0xe0] sm:$0xff] %vm763, %v1470
      %1503 = vst.msk [vmem:[#allocation2 + $0xf0] sm:$0xff] %vm763, %v1471
      %1504 = vst.msk [vmem:[#allocation2 + $0xf8] sm:$0xff] %vm763, %v1472
      %1505 = vst.msk [vmem:[#allocation2 + $0x108] sm:$0xff] %vm763, %v1473
      %1506 = vst.msk [vmem:[#allocation2 + $0x110] sm:$0xff] %vm763, %v1474
      %1507 = vst.msk [vmem:[#allocation2 + $0x120] sm:$0xff] %vm763, %v1475
      %1508 = vst.msk [vmem:[#allocation2 + $0x128] sm:$0xff] %vm763, %v1476
      %1509 = vst.msk [vmem:[#allocation2 + $0x138] sm:$0xff] %vm763, %v1477
      %1510 = vst.msk [vmem:[#allocation2 + $0x140] sm:$0xff] %vm763, %v1478
      %1511 = vst.msk [vmem:[#allocation2 + $0x150] sm:$0xff] %vm763, %v1479
      %1512 = vst.msk [vmem:[#allocation2 + $0x158] sm:$0xff] %vm763, %v1480
      %1513 = vst.msk [vmem:[#allocation2 + $0x168] sm:$0xff] %vm763, %v1481
      %1514 = vst.msk [vmem:[#allocation2 + $0x170] sm:$0xff] %vm763, %v1482
      %v1515 = vld [vmem:[#allocation2 + $0x1] sm:$0xff]
      %v1516 = vld [vmem:[#allocation2 + $0x9] sm:$0xff]
      %v1517 = vld [vmem:[#allocation2 + $0x19] sm:$0xff]
      %v1518 = vld [vmem:[#allocation2 + $0x21] sm:$0xff]
      %v1519 = vld [vmem:[#allocation2 + $0x31] sm:$0xff]
      %v1520 = vld [vmem:[#allocation2 + $0x39] sm:$0xff]
      %v1521 = vld [vmem:[#allocation2 + $0x49] sm:$0xff]
      %v1522 = vld [vmem:[#allocation2 + $0x51] sm:$0xff]
      %v1523 = vld [vmem:[#allocation2 + $0x61] sm:$0xff]
      %v1524 = vld [vmem:[#allocation2 + $0x69] sm:$0xff]
      %v1525 = vld [vmem:[#allocation2 + $0x79] sm:$0xff]
      %v1526 = vld [vmem:[#allocation2 + $0x81] sm:$0xff]
      %v1527 = vld [vmem:[#allocation2 + $0x91] sm:$0xff]
      %v1528 = vld [vmem:[#allocation2 + $0x99] sm:$0xff]
      %v1529 = vld [vmem:[#allocation2 + $0xa9] sm:$0xff]
      %v1530 = vld [vmem:[#allocation2 + $0xb1] sm:$0xff]
      %v1531 = vld [vmem:[#allocation2 + $0xc1] sm:$0xff]
      %v1532 = vld [vmem:[#allocation2 + $0xc9] sm:$0xff]
      %v1533 = vld [vmem:[#allocation2 + $0xd9] sm:$0xff]
      %v1534 = vld [vmem:[#allocation2 + $0xe1] sm:$0xff]
      %v1535 = vld [vmem:[#allocation2 + $0xf1] sm:$0xff]
      %v1536 = vld [vmem:[#allocation2 + $0xf9] sm:$0xff]
      %v1537 = vld [vmem:[#allocation2 + $0x109] sm:$0xff]
      %v1538 = vld [vmem:[#allocation2 + $0x111] sm:$0xff]
      %v1539 = vld [vmem:[#allocation2 + $0x121] sm:$0xff]
      %v1540 = vld [vmem:[#allocation2 + $0x129] sm:$0xff]
      %v1541 = vld [vmem:[#allocation2 + $0x139] sm:$0xff]
      %v1542 = vld [vmem:[#allocation2 + $0x141] sm:$0xff]
      %v1543 = vld [vmem:[#allocation2 + $0x151] sm:$0xff]
      %v1544 = vld [vmem:[#allocation2 + $0x159] sm:$0xff]
      %v1545 = vld [vmem:[#allocation2 + $0x169] sm:$0xff]
      %v1546 = vld [vmem:[#allocation2 + $0x171] sm:$0xff]
      %v1547 = vld [vmem:[%s4] sm:$0x1]
      %v1549 = vperm.slane %v1547, 0
      %v1551 = vmul.f32 %v1515, %v1549
      %v1552 = vmul.f32 %v1516, %v1549
      %v1553 = vmul.f32 %v1517, %v1549
      %v1554 = vmul.f32 %v1518, %v1549
      %v1555 = vmul.f32 %v1519, %v1549
      %v1556 = vmul.f32 %v1520, %v1549
      %v1557 = vmul.f32 %v1521, %v1549
      %v1558 = vmul.f32 %v1522, %v1549
      %v1559 = vmul.f32 %v1523, %v1549
      %v1560 = vmul.f32 %v1524, %v1549
      %v1561 = vmul.f32 %v1525, %v1549
      %v1562 = vmul.f32 %v1526, %v1549
      %v1563 = vmul.f32 %v1527, %v1549
      %v1564 = vmul.f32 %v1528, %v1549
      %v1565 = vmul.f32 %v1529, %v1549
      %v1566 = vmul.f32 %v1530, %v1549
      %v1567 = vmul.f32 %v1531, %v1549
      %v1568 = vmul.f32 %v1532, %v1549
      %v1569 = vmul.f32 %v1533, %v1549
      %v1570 = vmul.f32 %v1534, %v1549
      %v1571 = vmul.f32 %v1535, %v1549
      %v1572 = vmul.f32 %v1536, %v1549
      %v1573 = vmul.f32 %v1537, %v1549
      %v1574 = vmul.f32 %v1538, %v1549
      %v1575 = vmul.f32 %v1539, %v1549
      %v1576 = vmul.f32 %v1540, %v1549
      %v1577 = vmul.f32 %v1541, %v1549
      %v1578 = vmul.f32 %v1542, %v1549
      %v1579 = vmul.f32 %v1543, %v1549
      %v1580 = vmul.f32 %v1544, %v1549
      %v1581 = vmul.f32 %v1545, %v1549
      %v1582 = vmul.f32 %v1546, %v1549
      %v1583 = vld [vmem:[%s5] sm:$0x1]
      %v1585 = vperm.slane %v1583, 0
      %v1587 = vadd.f32 %v1551, %v1585
      %v1588 = vadd.f32 %v1552, %v1585
      %v1589 = vadd.f32 %v1553, %v1585
      %v1590 = vadd.f32 %v1554, %v1585
      %v1591 = vadd.f32 %v1555, %v1585
      %v1592 = vadd.f32 %v1556, %v1585
      %v1593 = vadd.f32 %v1557, %v1585
      %v1594 = vadd.f32 %v1558, %v1585
      %v1595 = vadd.f32 %v1559, %v1585
      %v1596 = vadd.f32 %v1560, %v1585
      %v1597 = vadd.f32 %v1561, %v1585
      %v1598 = vadd.f32 %v1562, %v1585
      %v1599 = vadd.f32 %v1563, %v1585
      %v1600 = vadd.f32 %v1564, %v1585
      %v1601 = vadd.f32 %v1565, %v1585
      %v1602 = vadd.f32 %v1566, %v1585
      %v1603 = vadd.f32 %v1567, %v1585
      %v1604 = vadd.f32 %v1568, %v1585
      %v1605 = vadd.f32 %v1569, %v1585
      %v1606 = vadd.f32 %v1570, %v1585
      %v1607 = vadd.f32 %v1571, %v1585
      %v1608 = vadd.f32 %v1572, %v1585
      %v1609 = vadd.f32 %v1573, %v1585
      %v1610 = vadd.f32 %v1574, %v1585
      %v1611 = vadd.f32 %v1575, %v1585
      %v1612 = vadd.f32 %v1576, %v1585
      %v1613 = vadd.f32 %v1577, %v1585
      %v1614 = vadd.f32 %v1578, %v1585
      %v1615 = vadd.f32 %v1579, %v1585
      %v1616 = vadd.f32 %v1580, %v1585
      %v1617 = vadd.f32 %v1581, %v1585
      %v1618 = vadd.f32 %v1582, %v1585
      %v1619 = vmax.f32 %v1587, 0.0
      %v1620 = vmax.f32 %v1588, 0.0
      %v1621 = vmax.f32 %v1589, 0.0
      %v1622 = vmax.f32 %v1590, 0.0
      %v1623 = vmax.f32 %v1591, 0.0
      %v1624 = vmax.f32 %v1592, 0.0
      %v1625 = vmax.f32 %v1593, 0.0
      %v1626 = vmax.f32 %v1594, 0.0
      %v1627 = vmax.f32 %v1595, 0.0
      %v1628 = vmax.f32 %v1596, 0.0
      %v1629 = vmax.f32 %v1597, 0.0
      %v1630 = vmax.f32 %v1598, 0.0
      %v1631 = vmax.f32 %v1599, 0.0
      %v1632 = vmax.f32 %v1600, 0.0
      %v1633 = vmax.f32 %v1601, 0.0
      %v1634 = vmax.f32 %v1602, 0.0
      %v1635 = vmax.f32 %v1603, 0.0
      %v1636 = vmax.f32 %v1604, 0.0
      %v1637 = vmax.f32 %v1605, 0.0
      %v1638 = vmax.f32 %v1606, 0.0
      %v1639 = vmax.f32 %v1607, 0.0
      %v1640 = vmax.f32 %v1608, 0.0
      %v1641 = vmax.f32 %v1609, 0.0
      %v1642 = vmax.f32 %v1610, 0.0
      %v1643 = vmax.f32 %v1611, 0.0
      %v1644 = vmax.f32 %v1612, 0.0
      %v1645 = vmax.f32 %v1613, 0.0
      %v1646 = vmax.f32 %v1614, 0.0
      %v1647 = vmax.f32 %v1615, 0.0
      %v1648 = vmax.f32 %v1616, 0.0
      %v1649 = vmax.f32 %v1617, 0.0
      %v1650 = vmax.f32 %v1618, 0.0
      %1651 = vst.msk [vmem:[%s418] sm:$0xff] %vm763, %v1619
      %1652 = vst.msk [vmem:[%s418 + $0x8] sm:$0xff] %vm763, %v1620
      %1653 = vst.msk [vmem:[%s418 + $0x10] sm:$0xff] %vm763, %v1621
      %1654 = vst.msk [vmem:[%s418 + $0x18] sm:$0xff] %vm763, %v1622
      %1655 = vst.msk [vmem:[%s418 + $0x20] sm:$0xff] %vm763, %v1623
      %1656 = vst.msk [vmem:[%s418 + $0x28] sm:$0xff] %vm763, %v1624
      %1657 = vst.msk [vmem:[%s418 + $0x30] sm:$0xff] %vm763, %v1625
      %1658 = vst.msk [vmem:[%s418 + $0x38] sm:$0xff] %vm763, %v1626
      %1659 = vst.msk [vmem:[%s418 + $0x40] sm:$0xff] %vm763, %v1627
      %1660 = vst.msk [vmem:[%s418 + $0x48] sm:$0xff] %vm763, %v1628
      %1661 = vst.msk [vmem:[%s418 + $0x50] sm:$0xff] %vm763, %v1629
      %1662 = vst.msk [vmem:[%s418 + $0x58] sm:$0xff] %vm763, %v1630
      %1663 = vst.msk [vmem:[%s418 + $0x60] sm:$0xff] %vm763, %v1631
      %1664 = vst.msk [vmem:[%s418 + $0x68] sm:$0xff] %vm763, %v1632
      %1665 = vst.msk [vmem:[%s418 + $0x70] sm:$0xff] %vm763, %v1633
      %1666 = vst.msk [vmem:[%s418 + $0x78] sm:$0xff] %vm763, %v1634
      %1667 = vst.msk [vmem:[%s418 + $0x80] sm:$0xff] %vm763, %v1635
      %1668 = vst.msk [vmem:[%s418 + $0x88] sm:$0xff] %vm763, %v1636
      %1669 = vst.msk [vmem:[%s418 + $0x90] sm:$0xff] %vm763, %v1637
      %1670 = vst.msk [vmem:[%s418 + $0x98] sm:$0xff] %vm763, %v1638
      %1671 = vst.msk [vmem:[%s418 + $0xa0] sm:$0xff] %vm763, %v1639
      %1672 = vst.msk [vmem:[%s418 + $0xa8] sm:$0xff] %vm763, %v1640
      %1673 = vst.msk [vmem:[%s418 + $0xb0] sm:$0xff] %vm763, %v1641
      %1674 = vst.msk [vmem:[%s418 + $0xb8] sm:$0xff] %vm763, %v1642
      %1675 = vst.msk [vmem:[%s418 + $0xc0] sm:$0xff] %vm763, %v1643
      %1676 = vst.msk [vmem:[%s418 + $0xc8] sm:$0xff] %vm763, %v1644
      %1677 = vst.msk [vmem:[%s418 + $0xd0] sm:$0xff] %vm763, %v1645
      %1678 = vst.msk [vmem:[%s418 + $0xd8] sm:$0xff] %vm763, %v1646
      %1679 = vst.msk [vmem:[%s418 + $0xe0] sm:$0xff] %vm763, %v1647
      %1680 = vst.msk [vmem:[%s418 + $0xe8] sm:$0xff] %vm763, %v1648
      %1681 = vst.msk [vmem:[%s418 + $0xf0] sm:$0xff] %vm763, %v1649
      %1682 = vst.msk [vmem:[%s418 + $0xf8] sm:$0xff] %vm763, %v1650
      %s1683 = smul.u32 16, %s22
      %p1684 = scmp.lt.s32.totalorder %s21, 1
      %s1685 = scalar_select %p1684, %s21, 1
      %p1686 = scmp.lt.s32.totalorder %s1683, 15
      %s1687 = scalar_select %p1686, %s1683, 15
      %s1688 = smul.addr %s1687, 2
      %s1689 = smul.addr %s1685, 32
      %s1690 = sadd.s32 %s1688, %s1689
      %s1691 = smul.addr %s1690, 8
      %s1692 = scalar_lea.vmem %s6, %s1691
      // Predicated region
      $region45: #{upconv_forward.5} parent=43 // pred_check
        %p1693 = pneg %p212
      $region46: #{upconv_forward.5} parent=43 // pred_check_branch
        %1695 = sbr.rel (%p1693) target = $region48
      $region47: #{upconv_forward.5} parent=43 // pred_region
        %s1696 = smul.u32 16, %s22
      $region48: #{upconv_forward.5} parent=43 // pred_fallthru
        _
    $region44: #{upconv_forward.5} parent=5 // pred_fallthru
      _
    %p1697 = scmp.le.s32.totalorder 2, %s12
    // Predicated region
    $region49: #{upconv_forward.5} parent=5 // pred_check
      %p1698 = pneg %p1697
    $region50: #{upconv_forward.5} parent=5 // pred_check_branch
      %1700 = sbr.rel (%p1698) target = $region52
    $region51: #{upconv_forward.5} parent=5 // pred_region
      %s1701 = ssub.s32 %s12, 2
      // Predicated region
      $region53: #{upconv_forward.5} parent=51 // pred_check
        %p1702 = pneg %p218
      $region54: #{upconv_forward.5} parent=51 // pred_check_branch
        %1704 = sbr.rel (%p1702) target = $region56
      $region55: #{upconv_forward.5} parent=51 // pred_region
        %s1705 = smul.u32 16, %s24
        %p1706 = scmp.lt.s32.totalorder %s23, 1
        %s1707 = scalar_select %p1706, %s23, 1
        %p1708 = scmp.lt.s32.totalorder %s1705, 15
        %s1709 = scalar_select %p1708, %s1705, 15
        %s1710 = smul.addr %s1709, 2
        %s1711 = smul.addr %s1707, 32
        %s1712 = sadd.s32 %s1710, %s1711
        %s1713 = smul.addr %s1712, 8
        %s1714 = scalar_lea.vmem %s6, %s1713
      $region56: #{upconv_forward.5} parent=51 // pred_fallthru
        _
    $region52: #{upconv_forward.5} parent=5 // pred_fallthru
      _
  $region6: #{upconv_forward.5} parent=0 // loop_footer
    %s16 = sadd.s32 1, %s12
  $region7: #{upconv_forward.5} parent=0 // loop_footer_branch
    %11 = sbr.rel target = $region3
  $region8: #{upconv_forward.5} parent=0 // loop_exit
    _

// kernel: upconv_forward.4
$region0: #{upconv_forward.4}
  #allocation0 [shape = 'u32[]', space=smem, size = 0x4, offset = 0x4, fixed_abs, tag = 'smem constant byte address 0x4 - core index']
  #allocation1 [shape = 'u32[72,128]{1,0:T(1,128)}', space=vmem, size = 0x9000, scoped, tag = 'internal scratch']
  #allocation2 [shape = 'f32[16,18,4]{2,1,0:T(8,128)}', space=vmem, size = 0x30000, scoped, tag = 'scratch operand']
  %s0 = inlined_call_operand.vmem [shape: bf16[2,16,16,4], index: 0, kind: input, shape index: {}, may-alias: {0,1,2}]
  %s1 = inlined_call_operand.vmem [shape: bf16[2,16,16,4], index: 1, kind: input, shape index: {}, may-alias: {0,1,2}]
  %s2 = inlined_call_operand.vmem [shape: bf16[2,16,16,4], index: 2, kind: input, shape index: {}, may-alias: {0,1,2}]
  %s3 = inlined_call_operand.vmem [shape: f32[2,16,16,4], index: 3, kind: input, shape index: {}, may-alias: {3,4,5}]
  %s4 = inlined_call_operand.vmem [shape: f32[2,16,16,4], index: 4, kind: input, shape index: {}, may-alias: {3,4,5}]
  %s5 = inlined_call_operand.vmem [shape: f32[2,16,16,4], index: 5, kind: input, shape index: {}, may-alias: {3,4,5}]
  %s6 = inlined_call_operand.vmem [shape: bf16[3,24,4], index: 6, kind: input, shape index: {}]
  %s7 = inlined_call_operand.vmem [shape: f32[1,4], index: 7, kind: input, shape index: {}]
  %s8 = inlined_call_operand.vmem [shape: f32[1,4], index: 8, kind: input, shape index: {}]
  %s9 = inlined_call_operand.vmem [shape: bf16[2,16,16,4], index: 9, kind: output, shape index: {}]
  %s10 = sld [smem:[#allocation0]]
  $region69: #{upconv_forward.4} parent=0
    _
  %s12 = ssub.s32 1, %s10
  %s13 = scalar_select 0, %s12, %s10
  loop: start=0, step=1, limit=4
  $region2: #{upconv_forward.4} parent=0 // loop_pre_header
    _
  $region3: #{upconv_forward.4} parent=0 // loop_header
    %s15 = sphi 0, %s19
    %p16 = scmp.ge.s32.totalorder %s15, 4
    %s22 = sphi 0, %s34
    %s23 = sphi 0, %s30
    %s24 = sphi 0, %s22
    %s25 = sphi 0, %s23
    %s26 = sphi 0, %s24
    %s27 = sphi 0, %s25
    %s39 = sphi 0, %s41
    %s42 = sphi 0, %s39
    %s43 = sphi 0, %s42
    %s59 = sphi 0, %s43
    %s75 = sphi 0, %s77
    %s78 = sphi 0, %s75
    %s79 = sphi 0, %s78
    %s95 = sphi 0, %s79
    %s111 = sphi 0, %s113
    %s114 = sphi 0, %s111
    %s115 = sphi 0, %s114
    %s131 = sphi 0, %s115
    %s139 = sphi 0, %s141
    %s142 = sphi 0, %s139
    %s143 = sphi 0, %s142
    %s159 = sphi 0, %s143
    %s175 = sphi 0, %s177
    %s178 = sphi 0, %s175
    %s179 = sphi 0, %s178
    %s195 = sphi 0, %s179
    %s211 = sphi 0, %s213
    %s214 = sphi 0, %s211
    %s215 = sphi 0, %s214
    %s231 = sphi 0, %s215
    %s235 = sphi 0, %s235
    %s237 = sphi 0, %s235
    %s238 = sphi 0, %s237
    %s252 = sphi 0, %s238
    %s256 = sphi 0, %s256
    %s258 = sphi 0, %s256
    %s259 = sphi 0, %s258
    %s273 = sphi 0, %s259
    %s277 = sphi 0, %s277
    %s279 = sphi 0, %s277
    %s280 = sphi 0, %s279
    %s294 = sphi 0, %s280
    %s302 = sphi 0, %s304
    %s305 = sphi 0, %s302
    %s306 = sphi 0, %s305
    %s322 = sphi 0, %s306
  $region4: #{upconv_forward.4} parent=0 // loop_header_branch
    %18 = sbr.rel (%p16) target = $region8
  $region5: #{upconv_forward.4} parent=0 // loop_body
    %s20 = ssub.s32 %s15, 1
    %s21 = ssub.s32 %s15, 2
    %s28 = sadd.s32 1, %s23
    %p29 = scmp.ge.s32.totalorder %s28, 1
    %s30 = scalar_select %p29, 0, %s28
    %s31 = sadd.s32 1, %s22
    %s32 = scalar_select %p29, %s31, %s22
    %p33 = scmp.ge.s32.totalorder %s32, 2
    %s34 = scalar_select %p33, 0, %s32
    %s35 = ssub.s32 %s22, %s34
    %s36 = ssub.s32 %s23, %s30
    %s37 = sor.u32 %s35, %s36
    %p38 = scmp.eq.s32.totalorder %s37, 0
    %s40 = sadd.s32 %s39, 1
    %s41 = scalar_select %p38, %s39, %s40
    %p44 = pneg %p38
    %p45 = scmp.eq.s32.totalorder %s15, 1
    %p46 = por %p44, %p45
    %p47 = scmp.ne.s32.totalorder %s39, %s42
    %p48 = scmp.eq.s32.totalorder %s15, 0
    %p49 = por %p47, %p48
    %p50 = scmp.ne.s32.totalorder %s39, %s42
    %p51 = scmp.eq.s32.totalorder %s20, 1
    %p52 = por %p50, %p51
    %p53 = scmp.ne.s32.totalorder %s42, %s43
    %p54 = scmp.eq.s32.totalorder %s20, 0
    %p55 = por %p53, %p54
    %p56 = scmp.ne.s32.totalorder %s42, %s43
    %p57 = scmp.eq.s32.totalorder %s21, 1
    %p58 = por %p56, %p57
    %p60 = scmp.ne.s32.totalorder %s43, %s59
    %p61 = scmp.eq.s32.totalorder %s21, 0
    %p62 = por %p60, %p61
    %s63 = smul.u32 %s23, 16
    %s64 = ssub.s32 %s63, 1
    %p65 = scmp.gt.s32.totalorder %s64, 0
    %s66 = scalar_select %p65, %s64, 0
    %s67 = smul.u32 %s30, 16
    %s68 = ssub.s32 %s67, 1
    %p69 = scmp.gt.s32.totalorder %s68, 0
    %s70 = scalar_select %p69, %s68, 0
    %s71 = ssub.s32 %s22, %s34
    %s72 = ssub.s32 %s66, %s70
    %s73 = sor.u32 %s71, %s72
    %p74 = scmp.eq.s32.totalorder %s73, 0
    %s76 = sadd.s32 %s75, 1
    %s77 = scalar_select %p74, %s75, %s76
    %p80 = pneg %p74
    %p81 = scmp.eq.s32.totalorder %s15, 1
    %p82 = por %p80, %p81
    %p83 = scmp.ne.s32.totalorder %s75, %s78
    %p84 = scmp.eq.s32.totalorder %s15, 0
    %p85 = por %p83, %p84
    %p86 = scmp.ne.s32.totalorder %s75, %s78
    %p87 = scmp.eq.s32.totalorder %s20, 1
    %p88 = por %p86, %p87
    %p89 = scmp.ne.s32.totalorder %s78, %s79
    %p90 = scmp.eq.s32.totalorder %s20, 0
    %p91 = por %p89, %p90
    %p92 = scmp.ne.s32.totalorder %s78, %s79
    %p93 = scmp.eq.s32.totalorder %s21, 1
    %p94 = por %p92, %p93
    %p96 = scmp.ne.s32.totalorder %s79, %s95
    %p97 = scmp.eq.s32.totalorder %s21, 0
    %p98 = por %p96, %p97
    %s99 = sadd.s32 %s23, 1
    %s100 = smul.u32 %s99, 16
    %p101 = scmp.lt.s32.totalorder %s100, 15
    %s102 = scalar_select %p101, %s100, 15
    %s103 = sadd.s32 %s30, 1
    %s104 = smul.u32 %s103, 16
    %p105 = scmp.lt.s32.totalorder %s104, 15
    %s106 = scalar_select %p105, %s104, 15
    %s107 = ssub.s32 %s22, %s34
    %s108 = ssub.s32 %s102, %s106
    %s109 = sor.u32 %s107, %s108
    %p110 = scmp.eq.s32.totalorder %s109, 0
    %s112 = sadd.s32 %s111, 1
    %s113 = scalar_select %p110, %s111, %s112
    %p116 = pneg %p110
    %p117 = scmp.eq.s32.totalorder %s15, 1
    %p118 = por %p116, %p117
    %p119 = scmp.ne.s32.totalorder %s111, %s114
    %p120 = scmp.eq.s32.totalorder %s15, 0
    %p121 = por %p119, %p120
    %p122 = scmp.ne.s32.totalorder %s111, %s114
    %p123 = scmp.eq.s32.totalorder %s20, 1
    %p124 = por %p122, %p123
    %p125 = scmp.ne.s32.totalorder %s114, %s115
    %p126 = scmp.eq.s32.totalorder %s20, 0
    %p127 = por %p125, %p126
    %p128 = scmp.ne.s32.totalorder %s114, %s115
    %p129 = scmp.eq.s32.totalorder %s21, 1
    %p130 = por %p128, %p129
    %p132 = scmp.ne.s32.totalorder %s115, %s131
    %p133 = scmp.eq.s32.totalorder %s21, 0
    %p134 = por %p132, %p133
    %s135 = ssub.s32 %s22, %s34
    %s136 = ssub.s32 %s23, %s30
    %s137 = sor.u32 %s135, %s136
    %p138 = scmp.eq.s32.totalorder %s137, 0
    %s140 = sadd.s32 %s139, 1
    %s141 = scalar_select %p138, %s139, %s140
    %p144 = pneg %p138
    %p145 = scmp.eq.s32.totalorder %s15, 1
    %p146 = por %p144, %p145
    %p147 = scmp.ne.s32.totalorder %s139, %s142
    %p148 = scmp.eq.s32.totalorder %s15, 0
    %p149 = por %p147, %p148
    %p150 = scmp.ne.s32.totalorder %s139, %s142
    %p151 = scmp.eq.s32.totalorder %s20, 1
    %p152 = por %p150, %p151
    %p153 = scmp.ne.s32.totalorder %s142, %s143
    %p154 = scmp.eq.s32.totalorder %s20, 0
    %p155 = por %p153, %p154
    %p156 = scmp.ne.s32.totalorder %s142, %s143
    %p157 = scmp.eq.s32.totalorder %s21, 1
    %p158 = por %p156, %p157
    %p160 = scmp.ne.s32.totalorder %s143, %s159
    %p161 = scmp.eq.s32.totalorder %s21, 0
    %p162 = por %p160, %p161
    %s163 = smul.u32 %s23, 16
    %s164 = ssub.s32 %s163, 1
    %p165 = scmp.gt.s32.totalorder %s164, 0
    %s166 = scalar_select %p165, %s164, 0
    %s167 = smul.u32 %s30, 16
    %s168 = ssub.s32 %s167, 1
    %p169 = scmp.gt.s32.totalorder %s168, 0
    %s170 = scalar_select %p169, %s168, 0
    %s171 = ssub.s32 %s22, %s34
    %s172 = ssub.s32 %s166, %s170
    %s173 = sor.u32 %s171, %s172
    %p174 = scmp.eq.s32.totalorder %s173, 0
    %s176 = sadd.s32 %s175, 1
    %s177 = scalar_select %p174, %s175, %s176
    %p180 = pneg %p174
    %p181 = scmp.eq.s32.totalorder %s15, 1
    %p182 = por %p180, %p181
    %p183 = scmp.ne.s32.totalorder %s175, %s178
    %p184 = scmp.eq.s32.totalorder %s15, 0
    %p185 = por %p183, %p184
    %p186 = scmp.ne.s32.totalorder %s175, %s178
    %p187 = scmp.eq.s32.totalorder %s20, 1
    %p188 = por %p186, %p187
    %p189 = scmp.ne.s32.totalorder %s178, %s179
    %p190 = scmp.eq.s32.totalorder %s20, 0
    %p191 = por %p189, %p190
    %p192 = scmp.ne.s32.totalorder %s178, %s179
    %p193 = scmp.eq.s32.totalorder %s21, 1
    %p194 = por %p192, %p193
    %p196 = scmp.ne.s32.totalorder %s179, %s195
    %p197 = scmp.eq.s32.totalorder %s21, 0
    %p198 = por %p196, %p197
    %s199 = sadd.s32 %s23, 1
    %s200 = smul.u32 %s199, 16
    %p201 = scmp.lt.s32.totalorder %s200, 15
    %s202 = scalar_select %p201, %s200, 15
    %s203 = sadd.s32 %s30, 1
    %s204 = smul.u32 %s203, 16
    %p205 = scmp.lt.s32.totalorder %s204, 15
    %s206 = scalar_select %p205, %s204, 15
    %s207 = ssub.s32 %s22, %s34
    %s208 = ssub.s32 %s202, %s206
    %s209 = sor.u32 %s207, %s208
    %p210 = scmp.eq.s32.totalorder %s209, 0
    %s212 = sadd.s32 %s211, 1
    %s213 = scalar_select %p210, %s211, %s212
    %p216 = pneg %p210
    %p217 = scmp.eq.s32.totalorder %s15, 1
    %p218 = por %p216, %p217
    %p219 = scmp.ne.s32.totalorder %s211, %s214
    %p220 = scmp.eq.s32.totalorder %s15, 0
    %p221 = por %p219, %p220
    %p222 = scmp.ne.s32.totalorder %s211, %s214
    %p223 = scmp.eq.s32.totalorder %s20, 1
    %p224 = por %p222, %p223
    %p225 = scmp.ne.s32.totalorder %s214, %s215
    %p226 = scmp.eq.s32.totalorder %s20, 0
    %p227 = por %p225, %p226
    %p228 = scmp.ne.s32.totalorder %s214, %s215
    %p229 = scmp.eq.s32.totalorder %s21, 1
    %p230 = por %p228, %p229
    %p232 = scmp.ne.s32.totalorder %s215, %s231
    %p233 = scmp.eq.s32.totalorder %s21, 0
    %p234 = por %p232, %p233
    %s236 = sadd.s32 %s235, 1
    %p239 = scmp.eq.s32.totalorder %s15, 1
    %p240 = scmp.ne.s32.totalorder %s235, %s237
    %p241 = scmp.eq.s32.totalorder %s15, 0
    %p242 = por %p240, %p241
    %p243 = scmp.ne.s32.totalorder %s235, %s237
    %p244 = scmp.eq.s32.totalorder %s20, 1
    %p245 = por %p243, %p244
    %p246 = scmp.ne.s32.totalorder %s237, %s238
    %p247 = scmp.eq.s32.totalorder %s20, 0
    %p248 = por %p246, %p247
    %p249 = scmp.ne.s32.totalorder %s237, %s238
    %p250 = scmp.eq.s32.totalorder %s21, 1
    %p251 = por %p249, %p250
    %p253 = scmp.ne.s32.totalorder %s238, %s252
    %p254 = scmp.eq.s32.totalorder %s21, 0
    %p255 = por %p253, %p254
    %s257 = sadd.s32 %s256, 1
    %p260 = scmp.eq.s32.totalorder %s15, 1
    %p261 = scmp.ne.s32.totalorder %s256, %s258
    %p262 = scmp.eq.s32.totalorder %s15, 0
    %p263 = por %p261, %p262
    %p264 = scmp.ne.s32.totalorder %s256, %s258
    %p265 = scmp.eq.s32.totalorder %s20, 1
    %p266 = por %p264, %p265
    %p267 = scmp.ne.s32.totalorder %s258, %s259
    %p268 = scmp.eq.s32.totalorder %s20, 0
    %p269 = por %p267, %p268
    %p270 = scmp.ne.s32.totalorder %s258, %s259
    %p271 = scmp.eq.s32.totalorder %s21, 1
    %p272 = por %p270, %p271
    %p274 = scmp.ne.s32.totalorder %s259, %s273
    %p275 = scmp.eq.s32.totalorder %s21, 0
    %p276 = por %p274, %p275
    %s278 = sadd.s32 %s277, 1
    %p281 = scmp.eq.s32.totalorder %s15, 1
    %p282 = scmp.ne.s32.totalorder %s277, %s279
    %p283 = scmp.eq.s32.totalorder %s15, 0
    %p284 = por %p282, %p283
    %p285 = scmp.ne.s32.totalorder %s277, %s279
    %p286 = scmp.eq.s32.totalorder %s20, 1
    %p287 = por %p285, %p286
    %p288 = scmp.ne.s32.totalorder %s279, %s280
    %p289 = scmp.eq.s32.totalorder %s20, 0
    %p290 = por %p288, %p289
    %p291 = scmp.ne.s32.totalorder %s279, %s280
    %p292 = scmp.eq.s32.totalorder %s21, 1
    %p293 = por %p291, %p292
    %p295 = scmp.ne.s32.totalorder %s280, %s294
    %p296 = scmp.eq.s32.totalorder %s21, 0
    %p297 = por %p295, %p296
    %s298 = ssub.s32 %s22, %s34
    %s299 = ssub.s32 %s23, %s30
    %s300 = sor.u32 %s298, %s299
    %p301 = scmp.eq.s32.totalorder %s300, 0
    %s303 = sadd.s32 %s302, 1
    %s304 = scalar_select %p301, %s302, %s303
    %p307 = pneg %p301
    %p308 = scmp.eq.s32.totalorder %s15, 1
    %p309 = por %p307, %p308
    %p310 = scmp.ne.s32.totalorder %s302, %s305
    %p311 = scmp.eq.s32.totalorder %s15, 0
    %p312 = por %p310, %p311
    %p313 = scmp.ne.s32.totalorder %s302, %s305
    %p314 = scmp.eq.s32.totalorder %s20, 1
    %p315 = por %p313, %p314
    %p316 = scmp.ne.s32.totalorder %s305, %s306
    %p317 = scmp.eq.s32.totalorder %s20, 0
    %p318 = por %p316, %p317
    %p319 = scmp.ne.s32.totalorder %s305, %s306
    %p320 = scmp.eq.s32.totalorder %s21, 1
    %p321 = por %p319, %p320
    %p323 = scmp.ne.s32.totalorder %s306, %s322
    %p324 = scmp.eq.s32.totalorder %s21, 0
    %p325 = por %p323, %p324
    %p326 = scmp.le.s32.totalorder 1, %s15
    %p327 = scmp.lt.s32.totalorder %s15, 3
    %p328 = pnand %p326, %p327
    %p329 = pneg %p328
    // Predicated region
    $region9: #{upconv_forward.4} parent=5 // pred_check
      _
    $region10: #{upconv_forward.4} parent=5 // pred_check_branch
      %331 = sbr.rel (%p328) target = $region12
    $region11: #{upconv_forward.4} parent=5 // pred_region
      %s332 = ssub.s32 %s15, 1
      // Predicated region
      $region13: #{upconv_forward.4} parent=11 // pred_check
        %p333 = pneg %p248
      $region14: #{upconv_forward.4} parent=11 // pred_check_branch
        %335 = sbr.rel (%p333) target = $region16
      $region15: #{upconv_forward.4} parent=11 // pred_region
        _
      $region16: #{upconv_forward.4} parent=11 // pred_fallthru
        _
      // Predicated region
      $region17: #{upconv_forward.4} parent=11 // pred_check
        %p336 = pneg %p269
      $region18: #{upconv_forward.4} parent=11 // pred_check_branch
        %338 = sbr.rel (%p336) target = $region20
      $region19: #{upconv_forward.4} parent=11 // pred_region
        _
      $region20: #{upconv_forward.4} parent=11 // pred_fallthru
        _
      // Predicated region
      $region21: #{upconv_forward.4} parent=11 // pred_check
        %p339 = pneg %p290
      $region22: #{upconv_forward.4} parent=11 // pred_check_branch
        %341 = sbr.rel (%p339) target = $region24
      $region23: #{upconv_forward.4} parent=11 // pred_region
        _
      $region24: #{upconv_forward.4} parent=11 // pred_fallthru
        _
    $region12: #{upconv_forward.4} parent=5 // pred_fallthru
      _
    %p342 = scmp.lt.s32.totalorder %s15, 2
    // Predicated region
    $region25: #{upconv_forward.4} parent=5 // pred_check
      %p343 = pneg %p342
    $region26: #{upconv_forward.4} parent=5 // pred_check_branch
      %345 = sbr.rel (%p343) target = $region28
    $region27: #{upconv_forward.4} parent=5 // pred_region
      // Predicated region
      $region29: #{upconv_forward.4} parent=27 // pred_check
        %p346 = pneg %p49
      $region30: #{upconv_forward.4} parent=27 // pred_check_branch
        %348 = sbr.rel (%p346) target = $region32
      $region31: #{upconv_forward.4} parent=27 // pred_region
        %s349 = smul.u32 16, %s23
        %p350 = scmp.lt.s32.totalorder %s22, 1
        %s351 = scalar_select %p350, %s22, 1
        %p352 = scmp.lt.s32.totalorder %s349, 15
        %s353 = scalar_select %p352, %s349, 15
        %s354 = smul.addr %s353, 2
        %s355 = smul.addr %s351, 32
        %s356 = sadd.s32 %s354, %s355
        %s357 = smul.addr %s356, 4
        %s358 = scalar_lea.vmem %s0, %s357
        %s359 = smul.u32 16, %s23
      $region32: #{upconv_forward.4} parent=27 // pred_fallthru
        _
      // Predicated region
      $region33: #{upconv_forward.4} parent=27 // pred_check
        %p360 = pneg %p85
      $region34: #{upconv_forward.4} parent=27 // pred_check_branch
        %362 = sbr.rel (%p360) target = $region36
      $region35: #{upconv_forward.4} parent=27 // pred_region
        %s363 = smul.u32 %s23, 16
        %s364 = ssub.s32 %s363, 1
        %p365 = scmp.gt.s32.totalorder %s364, 0
        %s366 = scalar_select %p365, %s364, 0
        %p367 = scmp.lt.s32.totalorder %s22, 1
        %s368 = scalar_select %p367, %s22, 1
        %p369 = scmp.lt.s32.totalorder %s366, 15
        %s370 = scalar_select %p369, %s366, 15
        %s371 = smul.addr %s370, 2
        %s372 = smul.addr %s368, 32
        %s373 = sadd.s32 %s371, %s372
        %s374 = smul.addr %s373, 4
        %s375 = scalar_lea.vmem %s1, %s374
        %s376 = smul.u32 %s23, 16
        %s377 = ssub.s32 %s376, 1
        %p378 = scmp.gt.s32.totalorder %s377, 0
        %s379 = scalar_select %p378, %s377, 0
      $region36: #{upconv_forward.4} parent=27 // pred_fallthru
        _
      // Predicated region
      $region37: #{upconv_forward.4} parent=27 // pred_check
        %p380 = pneg %p121
      $region38: #{upconv_forward.4} parent=27 // pred_check_branch
        %382 = sbr.rel (%p380) target = $region40
      $region39: #{upconv_forward.4} parent=27 // pred_region
        %s383 = sadd.s32 %s23, 1
        %s384 = smul.u32 %s383, 16
        %p385 = scmp.lt.s32.totalorder %s384, 15
        %s386 = scalar_select %p385, %s384, 15
        %p387 = scmp.lt.s32.totalorder %s22, 1
        %s388 = scalar_select %p387, %s22, 1
        %p389 = scmp.lt.s32.totalorder %s386, 15
        %s390 = scalar_select %p389, %s386, 15
        %s391 = smul.addr %s390, 2
        %s392 = smul.addr %s388, 32
        %s393 = sadd.s32 %s391, %s392
        %s394 = smul.addr %s393, 4
        %s395 = scalar_lea.vmem %s2, %s394
        %s396 = sadd.s32 %s23, 1
        %s397 = smul.u32 %s396, 16
        %p398 = scmp.lt.s32.totalorder %s397, 15
        %s399 = scalar_select %p398, %s397, 15
      $region40: #{upconv_forward.4} parent=27 // pred_fallthru
        _
      // Predicated region
      $region41: #{upconv_forward.4} parent=27 // pred_check
        %p400 = pneg %p149
      $region42: #{upconv_forward.4} parent=27 // pred_check_branch
        %402 = sbr.rel (%p400) target = $region44
      $region43: #{upconv_forward.4} parent=27 // pred_region
        %s403 = smul.u32 16, %s23
        %p404 = scmp.lt.s32.totalorder %s22, 1
        %s405 = scalar_select %p404, %s22, 1
        %p406 = scmp.lt.s32.totalorder %s403, 15
        %s407 = scalar_select %p406, %s403, 15
        %s408 = smul.addr %s407, 2
        %s409 = smul.addr %s405, 32
        %s410 = sadd.s32 %s408, %s409
        %s411 = smul.addr %s410, 8
        %s412 = scalar_lea.vmem %s3, %s411
        %s413 = smul.u32 16, %s23
      $region44: #{upconv_forward.4} parent=27 // pred_fallthru
        _
      // Predicated region
      $region45: #{upconv_forward.4} parent=27 // pred_check
        %p414 = pneg %p185
      $region46: #{upconv_forward.4} parent=27 // pred_check_branch
        %416 = sbr.rel (%p414) target = $region48
      $region47: #{upconv_forward.4} parent=27 // pred_region
        %s417 = smul.u32 %s23, 16
        %s418 = ssub.s32 %s417, 1
        %p419 = scmp.gt.s32.totalorder %s418, 0
        %s420 = scalar_select %p419, %s418, 0
        %p421 = scmp.lt.s32.totalorder %s22, 1
        %s422 = scalar_select %p421, %s22, 1
        %p423 = scmp.lt.s32.totalorder %s420, 15
        %s424 = scalar_select %p423, %s420, 15
        %s425 = smul.addr %s424, 2
        %s426 = smul.addr %s422, 32
        %s427 = sadd.s32 %s425, %s426
        %s428 = smul.addr %s427, 8
        %s429 = scalar_lea.vmem %s4, %s428
        %s430 = smul.u32 %s23, 16
        %s431 = ssub.s32 %s430, 1
        %p432 = scmp.gt.s32.totalorder %s431, 0
        %s433 = scalar_select %p432, %s431, 0
      $region48: #{upconv_forward.4} parent=27 // pred_fallthru
        _
      // Predicated region
      $region49: #{upconv_forward.4} parent=27 // pred_check
        %p434 = pneg %p221
      $region50: #{upconv_forward.4} parent=27 // pred_check_branch
        %436 = sbr.rel (%p434) target = $region52
      $region51: #{upconv_forward.4} parent=27 // pred_region
        %s437 = sadd.s32 %s23, 1
        %s438 = smul.u32 %s437, 16
        %p439 = scmp.lt.s32.totalorder %s438, 15
        %s440 = scalar_select %p439, %s438, 15
        %p441 = scmp.lt.s32.totalorder %s22, 1
        %s442 = scalar_select %p441, %s22, 1
        %p443 = scmp.lt.s32.totalorder %s440, 15
        %s444 = scalar_select %p443, %s440, 15
        %s445 = smul.addr %s444, 2
        %s446 = smul.addr %s442, 32
        %s447 = sadd.s32 %s445, %s446
        %s448 = smul.addr %s447, 8
        %s449 = scalar_lea.vmem %s5, %s448
        %s450 = sadd.s32 %s23, 1
        %s451 = smul.u32 %s450, 16
        %p452 = scmp.lt.s32.totalorder %s451, 15
        %s453 = scalar_select %p452, %s451, 15
      $region52: #{upconv_forward.4} parent=27 // pred_fallthru
        _
    $region28: #{upconv_forward.4} parent=5 // pred_fallthru
      _
    %p454 = scmp.le.s32.totalorder 1, %s15
    %p455 = scmp.lt.s32.totalorder %s15, 3
    %p456 = pnand %p454, %p455
    %p457 = pneg %p456
    // Predicated region
    $region53: #{upconv_forward.4} parent=5 // pred_check
      _
    $region54: #{upconv_forward.4} parent=5 // pred_check_branch
      %459 = sbr.rel (%p456) target = $region56
    $region55: #{upconv_forward.4} parent=5 // pred_region
      %s460 = ssub.s32 %s15, 1
      %s461 = smul.u32 16, %s25
      %p462 = scmp.lt.s32.totalorder %s24, 1
      %s463 = scalar_select %p462, %s24, 1
      %p464 = scmp.lt.s32.totalorder %s461, 15
      %s465 = scalar_select %p464, %s461, 15
      %s466 = smul.addr %s465, 2
      %s467 = smul.addr %s463, 32
      %s468 = sadd.s32 %s466, %s467
      %s469 = smul.addr %s468, 4
      %s470 = scalar_lea.vmem %s0, %s469
      %p471 = pneg %p55
      %p472 = pneg %p52
      %s473 = smul.u32 %s25, 16
      %s474 = ssub.s32 %s473, 1
      %p475 = scmp.gt.s32.totalorder %s474, 0
      %s476 = scalar_select %p475, %s474, 0
      %p477 = scmp.lt.s32.totalorder %s24, 1
      %s478 = scalar_select %p477, %s24, 1
      %p479 = scmp.lt.s32.totalorder %s476, 15
      %s480 = scalar_select %p479, %s476, 15
      %s481 = smul.addr %s480, 2
      %s482 = smul.addr %s478, 32
      %s483 = sadd.s32 %s481, %s482
      %s484 = smul.addr %s483, 4
      %s485 = scalar_lea.vmem %s1, %s484
      %p486 = pneg %p91
      %p487 = pneg %p88
      %s488 = sadd.s32 %s25, 1
      %s489 = smul.u32 %s488, 16
      %p490 = scmp.lt.s32.totalorder %s489, 15
      %s491 = scalar_select %p490, %s489, 15
      %p492 = scmp.lt.s32.totalorder %s24, 1
      %s493 = scalar_select %p492, %s24, 1
      %p494 = scmp.lt.s32.totalorder %s491, 15
      %s495 = scalar_select %p494, %s491, 15
      %s496 = smul.addr %s495, 2
      %s497 = smul.addr %s493, 32
      %s498 = sadd.s32 %s496, %s497
      %s499 = smul.addr %s498, 4
      %s500 = scalar_lea.vmem %s2, %s499
      %p501 = pneg %p127
      %p502 = pneg %p124
      %s503 = smul.u32 16, %s25
      %p504 = scmp.lt.s32.totalorder %s24, 1
      %s505 = scalar_select %p504, %s24, 1
      %p506 = scmp.lt.s32.totalorder %s503, 15
      %s507 = scalar_select %p506, %s503, 15
      %s508 = smul.addr %s507, 2
      %s509 = smul.addr %s505, 32
      %s510 = sadd.s32 %s508, %s509
      %s511 = smul.addr %s510, 8
      %s512 = scalar_lea.vmem %s3, %s511
      %p513 = pneg %p155
      %p514 = pneg %p152
      %s515 = smul.u32 %s25, 16
      %s516 = ssub.s32 %s515, 1
      %p517 = scmp.gt.s32.totalorder %s516, 0
      %s518 = scalar_select %p517, %s516, 0
      %p519 = scmp.lt.s32.totalorder %s24, 1
      %s520 = scalar_select %p519, %s24, 1
      %p521 = scmp.lt.s32.totalorder %s518, 15
      %s522 = scalar_select %p521, %s518, 15
      %s523 = smul.addr %s522, 2
      %s524 = smul.addr %s520, 32
      %s525 = sadd.s32 %s523, %s524
      %s526 = smul.addr %s525, 8
      %s527 = scalar_lea.vmem %s4, %s526
      %p528 = pneg %p191
      %p529 = pneg %p188
      %s530 = sadd.s32 %s25, 1
      %s531 = smul.u32 %s530, 16
      %p532 = scmp.lt.s32.totalorder %s531, 15
      %s533 = scalar_select %p532, %s531, 15
      %p534 = scmp.lt.s32.totalorder %s24, 1
      %s535 = scalar_select %p534, %s24, 1
      %p536 = scmp.lt.s32.totalorder %s533, 15
      %s537 = scalar_select %p536, %s533, 15
      %s538 = smul.addr %s537, 2
      %s539 = smul.addr %s535, 32
      %s540 = sadd.s32 %s538, %s539
      %s541 = smul.addr %s540, 8
      %s542 = scalar_lea.vmem %s5, %s541
      %p543 = pneg %p227
      %p544 = pneg %p224
      %p545 = pneg %p248
      %p546 = pneg %p245
      %p547 = pneg %p269
      %p548 = pneg %p266
      %p549 = pneg %p290
      %p550 = pneg %p287
      %p551 = pneg %p318
      %p552 = pneg %p315
      %s553 = smul.u32 16, %s25
      %p554 = scmp.lt.s32.totalorder %s24, 1
      %s555 = scalar_select %p554, %s24, 1
      %p556 = scmp.lt.s32.totalorder %s553, 15
      %s557 = scalar_select %p556, %s553, 15
      %s558 = smul.addr %s557, 2
      %s559 = smul.addr %s555, 32
      %s560 = sadd.s32 %s558, %s559
      %s561 = smul.addr %s560, 4
      %s562 = scalar_lea.vmem %s9, %s561
      %s563 = smul.u32 16, %s25
      %p564 = scmp.lt.s32.totalorder %s24, 1
      %s565 = scalar_select %p564, %s24, 1
      %p566 = scmp.lt.s32.totalorder %s563, 15
      %s567 = scalar_select %p566, %s563, 15
      %s568 = smul.addr %s567, 2
      %s569 = smul.addr %s565, 32
      %s570 = sadd.s32 %s568, %s569
      %s571 = smul.addr %s570, 4
      %s572 = scalar_lea.vmem %s0, %s571
      %s573 = smul.u32 16, %s25
      %s574 = smul.u32 %s25, 16
      %s575 = ssub.s32 %s574, 1
      %p576 = scmp.gt.s32.totalorder %s575, 0
      %s577 = scalar_select %p576, %s575, 0
      %p578 = scmp.lt.s32.totalorder %s24, 1
      %s579 = scalar_select %p578, %s24, 1
      %p580 = scmp.lt.s32.totalorder %s577, 15
      %s581 = scalar_select %p580, %s577, 15
      %s582 = smul.addr %s581, 2
      %s583 = smul.addr %s579, 32
      %s584 = sadd.s32 %s582, %s583
      %s585 = smul.addr %s584, 4
      %s586 = scalar_lea.vmem %s1, %s585
      %s587 = smul.u32 %s25, 16
      %s588 = ssub.s32 %s587, 1
      %p589 = scmp.gt.s32.totalorder %s588, 0
      %s590 = scalar_select %p589, %s588, 0
      %s591 = sadd.s32 %s25, 1
      %s592 = smul.u32 %s591, 16
      %p593 = scmp.lt.s32.totalorder %s592, 15
      %s594 = scalar_select %p593, %s592, 15
      %p595 = scmp.lt.s32.totalorder %s24, 1
      %s596 = scalar_select %p595, %s24, 1
      %p597 = scmp.lt.s32.totalorder %s594, 15
      %s598 = scalar_select %p597, %s594, 15
      %s599 = smul.addr %s598, 2
      %s600 = smul.addr %s596, 32
      %s601 = sadd.s32 %s599, %s600
      %s602 = smul.addr %s601, 4
      %s603 = scalar_lea.vmem %s2, %s602
      %s604 = sadd.s32 %s25, 1
      %s605 = smul.u32 %s604, 16
      %p606 = scmp.lt.s32.totalorder %s605, 15
      %s607 = scalar_select %p606, %s605, 15
      %s608 = smul.u32 16, %s25
      %p609 = scmp.lt.s32.totalorder %s24, 1
      %s610 = scalar_select %p609, %s24, 1
      %p611 = scmp.lt.s32.totalorder %s608, 15
      %s612 = scalar_select %p611, %s608, 15
      %s613 = smul.addr %s612, 2
      %s614 = smul.addr %s610, 32
      %s615 = sadd.s32 %s613, %s614
      %s616 = smul.addr %s615, 8
      %s617 = scalar_lea.vmem %s3, %s616
      %s618 = smul.u32 16, %s25
      %s619 = smul.u32 %s25, 16
      %s620 = ssub.s32 %s619, 1
      %p621 = scmp.gt.s32.totalorder %s620, 0
      %s622 = scalar_select %p621, %s620, 0
      %p623 = scmp.lt.s32.totalorder %s24, 1
      %s624 = scalar_select %p623, %s24, 1
      %p625 = scmp.lt.s32.totalorder %s622, 15
      %s626 = scalar_select %p625, %s622, 15
      %s627 = smul.addr %s626, 2
      %s628 = smul.addr %s624, 32
      %s629 = sadd.s32 %s627, %s628
      %s630 = smul.addr %s629, 8
      %s631 = scalar_lea.vmem %s4, %s630
      %s632 = smul.u32 %s25, 16
      %s633 = ssub.s32 %s632, 1
      %p634 = scmp.gt.s32.totalorder %s633, 0
      %s635 = scalar_select %p634, %s633, 0
      %s636 = sadd.s32 %s25, 1
      %s637 = smul.u32 %s636, 16
      %p638 = scmp.lt.s32.totalorder %s637, 15
      %s639 = scalar_select %p638, %s637, 15
      %p640 = scmp.lt.s32.totalorder %s24, 1
      %s641 = scalar_select %p640, %s24, 1
      %p642 = scmp.lt.s32.totalorder %s639, 15
      %s643 = scalar_select %p642, %s639, 15
      %s644 = smul.addr %s643, 2
      %s645 = smul.addr %s641, 32
      %s646 = sadd.s32 %s644, %s645
      %s647 = smul.addr %s646, 8
      %s648 = scalar_lea.vmem %s5, %s647
      %s649 = sadd.s32 %s25, 1
      %s650 = smul.u32 %s649, 16
      %p651 = scmp.lt.s32.totalorder %s650, 15
      %s652 = scalar_select %p651, %s650, 15
      %s653 = smul.u32 16, %s25
      %p654 = scmp.lt.s32.totalorder %s24, 1
      %s655 = scalar_select %p654, %s24, 1
      %p656 = scmp.lt.s32.totalorder %s653, 15
      %s657 = scalar_select %p656, %s653, 15
      %s658 = smul.addr %s657, 2
      %s659 = smul.addr %s655, 32
      %s660 = sadd.s32 %s658, %s659
      %s661 = smul.addr %s660, 4
      %s662 = scalar_lea.vmem %s9, %s661
      %s663 = smul.u32 16, %s25
      %p665 = scmp.gt.s32.totalorder %s25, 0
      %s666 = scalar_select %p665, 1.0, 0.0
      %p668 = scmp.ne.f32.partialorder %s666, %s666
      %s669 = sshrl.u32 %s666, 16
      %s670 = sand.u32 %s669, 1
      %s671 = sadd.s32 32767, %s670
      %s672 = sadd.s32 %s666, %s671
      %s673 = sand.u32 %s672, 4294901760
      %s674 = scalar_select %p668, 2143289344, %s673
      %s676 = sshrl.u32 %s674, 16
      %p677 = scmp.lt.s32.totalorder %s25, 0
      %s678 = scalar_select %p677, 1.0, 0.0
      %p680 = scmp.ne.f32.partialorder %s678, %s678
      %s681 = sshrl.u32 %s678, 16
      %s682 = sand.u32 %s681, 1
      %s683 = sadd.s32 32767, %s682
      %s684 = sadd.s32 %s678, %s683
      %s685 = sand.u32 %s684, 4294901760
      %s686 = scalar_select %p680, 2143289344, %s685
      %s688 = sshrl.u32 %s686, 16
      %v689 = vld [vmem:[%s586] sm:$0xf]
      %v690 = vld [vmem:[%s586 + $0x4] sm:$0xf]
      %s691 = sshll.u32 %s676, 16
      %s692 = sor.u32 %s676, %s691
      %v693 = vstv %s692
      %v695 = vunpack.c.l.bf16 %v689
      %v696 = vunpack.c.l.bf16 %v690
      %v697 = vunpack.c.l.bf16 %v693
      %v698 = vmul.f32 %v695, %v697
      %v699 = vmul.f32 %v696, %v697
      %v700 = vpack.c.bf16 %v698, %v698
      %v701 = vpack.c.bf16 %v699, %v699
      %v702 = vld [vmem:[%s603] sm:$0xf]
      %v703 = vld [vmem:[%s603 + $0x4] sm:$0xf]
      %s704 = sshll.u32 %s688, 16
      %s705 = sor.u32 %s688, %s704
      %v706 = vstv %s705
      %v708 = vunpack.c.l.bf16 %v702
      %v709 = vunpack.c.l.bf16 %v703
      %v710 = vunpack.c.l.bf16 %v706
      %v711 = vmul.f32 %v708, %v710
      %v712 = vmul.f32 %v709, %v710
      %v713 = vpack.c.bf16 %v711, %v711
      %v714 = vpack.c.bf16 %v712, %v712
      %v715 = vld [vmem:[%s572] sm:$0xf]
      %v716 = vld [vmem:[%s572 + $0x4] sm:$0xf]
      %v717 = vld [vmem:[%s572 + $0x8] sm:$0xf]
      %v718 = vld [vmem:[%s572 + $0xc] sm:$0xf]
      %v719 = vld [vmem:[%s572 + $0x10] sm:$0xf]
      %v720 = vld [vmem:[%s572 + $0x14] sm:$0xf]
      %v721 = vld [vmem:[%s572 + $0x18] sm:$0xf]
      %v722 = vld [vmem:[%s572 + $0x1c] sm:$0xf]
      %v723 = vld [vmem:[%s572 + $0x20] sm:$0xf]
      %v724 = vld [vmem:[%s572 + $0x24] sm:$0xf]
      %v725 = vld [vmem:[%s572 + $0x28] sm:$0xf]
      %v726 = vld [vmem:[%s572 + $0x2c] sm:$0xf]
      %v727 = vld [vmem:[%s572 + $0x30] sm:$0xf]
      %v728 = vld [vmem:[%s572 + $0x34] sm:$0xf]
      %v729 = vld [vmem:[%s572 + $0x38] sm:$0xf]
      %v730 = vld [vmem:[%s572 + $0x3c] sm:$0xf]
      %v731 = vld [vmem:[%s572 + $0x40] sm:$0xf]
      %v732 = vld [vmem:[%s572 + $0x44] sm:$0xf]
      %v733 = vld [vmem:[%s572 + $0x48] sm:$0xf]
      %v734 = vld [vmem:[%s572 + $0x4c] sm:$0xf]
      %v735 = vld [vmem:[%s572 + $0x50] sm:$0xf]
      %v736 = vld [vmem:[%s572 + $0x54] sm:$0xf]
      %v737 = vld [vmem:[%s572 + $0x58] sm:$0xf]
      %v738 = vld [vmem:[%s572 + $0x5c] sm:$0xf]
      %v739 = vld [vmem:[%s572 + $0x60] sm:$0xf]
      %v740 = vld [vmem:[%s572 + $0x64] sm:$0xf]
      %v741 = vld [vmem:[%s572 + $0x68] sm:$0xf]
      %v742 = vld [vmem:[%s572 + $0x6c] sm:$0xf]
      %v743 = vld [vmem:[%s572 + $0x70] sm:$0xf]
      %v744 = vld [vmem:[%s572 + $0x74] sm:$0xf]
      %v745 = vld [vmem:[%s572 + $0x78] sm:$0xf]
      %v746 = vld [vmem:[%s572 + $0x7c] sm:$0xf]
      %s747 = scalar_lea.vmem %s572, 8
      %v748 = vld [vmem:[%s747] sm:$0xf]
      %v749 = vld [vmem:[%s747 + $0x4] sm:$0xf]
      %v750 = vld [vmem:[%s747 + $0x8] sm:$0xf]
      %v751 = vld [vmem:[%s747 + $0xc] sm:$0xf]
      %v752 = vld [vmem:[%s747 + $0x10] sm:$0xf]
      %v753 = vld [vmem:[%s747 + $0x14] sm:$0xf]
      %v754 = vld [vmem:[%s747 + $0x18] sm:$0xf]
      %v755 = vld [vmem:[%s747 + $0x1c] sm:$0xf]
      %v756 = vld [vmem:[%s747 + $0x20] sm:$0xf]
      %v757 = vld [vmem:[%s747 + $0x24] sm:$0xf]
      %v758 = vld [vmem:[%s747 + $0x28] sm:$0xf]
      %v759 = vld [vmem:[%s747 + $0x2c] sm:$0xf]
      %v760 = vld [vmem:[%s747 + $0x30] sm:$0xf]
      %v761 = vld [vmem:[%s747 + $0x34] sm:$0xf]
      %v762 = vld [vmem:[%s747 + $0x38] sm:$0xf]
      %v763 = vld [vmem:[%s747 + $0x3c] sm:$0xf]
      %v764 = vld [vmem:[%s747 + $0x40] sm:$0xf]
      %v765 = vld [vmem:[%s747 + $0x44] sm:$0xf]
      %v766 = vld [vmem:[%s747 + $0x48] sm:$0xf]
      %v767 = vld [vmem:[%s747 + $0x4c] sm:$0xf]
      %v768 = vld [vmem:[%s747 + $0x50] sm:$0xf]
      %v769 = vld [vmem:[%s747 + $0x54] sm:$0xf]
      %v770 = vld [vmem:[%s747 + $0x58] sm:$0xf]
      %v771 = vld [vmem:[%s747 + $0x5c] sm:$0xf]
      %v772 = vld [vmem:[%s747 + $0x60] sm:$0xf]
      %v773 = vld [vmem:[%s747 + $0x64] sm:$0xf]
      %v774 = vld [vmem:[%s747 + $0x68] sm:$0xf]
      %v775 = vld [vmem:[%s747 + $0x6c] sm:$0xf]
      %v776 = vld [vmem:[%s747 + $0x70] sm:$0xf]
      %v777 = vld [vmem:[%s747 + $0x74] sm:$0xf]
      %v810 = vunpack.c.l.b16 %v700
      %v811 = vunpack.c.l.b16 %v701
      %v812 = vunpack.c.l.b16 %v715
      %v813 = vunpack.c.l.b16 %v716
      %v814 = vunpack.c.l.b16 %v717
      %v815 = vunpack.c.l.b16 %v718
      %v816 = vunpack.c.l.b16 %v719
      %v817 = vunpack.c.l.b16 %v720
      %v818 = vunpack.c.l.b16 %v721
      %v819 = vunpack.c.l.b16 %v722
      %v820 = vunpack.c.l.b16 %v723
      %v821 = vunpack.c.l.b16 %v724
      %v822 = vunpack.c.l.b16 %v725
      %v823 = vunpack.c.l.b16 %v726
      %v824 = vunpack.c.l.b16 %v727
      %v825 = vunpack.c.l.b16 %v728
      %v826 = vunpack.c.l.b16 %v729
      %v827 = vunpack.c.l.b16 %v730
      %v828 = vunpack.c.l.b16 %v731
      %v829 = vunpack.c.l.b16 %v732
      %v830 = vunpack.c.l.b16 %v733
      %v831 = vunpack.c.l.b16 %v734
      %v832 = vunpack.c.l.b16 %v735
      %v833 = vunpack.c.l.b16 %v736
      %v834 = vunpack.c.l.b16 %v737
      %v835 = vunpack.c.l.b16 %v738
      %v836 = vunpack.c.l.b16 %v739
      %v837 = vunpack.c.l.b16 %v740
      %v838 = vunpack.c.l.b16 %v741
      %v839 = vunpack.c.l.b16 %v742
      %v840 = vunpack.c.l.b16 %v743
      %v841 = vunpack.c.l.b16 %v744
      %v842 = vpack.c.b16 %v811, %v810
      %v843 = vpack.c.b16 %v813, %v812
      %v844 = vpack.c.b16 %v815, %v814
      %v845 = vpack.c.b16 %v817, %v816
      %v846 = vpack.c.b16 %v819, %v818
      %v847 = vpack.c.b16 %v821, %v820
      %v848 = vpack.c.b16 %v823, %v822
      %v849 = vpack.c.b16 %v825, %v824
      %v850 = vpack.c.b16 %v827, %v826
      %v851 = vpack.c.b16 %v829, %v828
      %v852 = vpack.c.b16 %v831, %v830
      %v853 = vpack.c.b16 %v833, %v832
      %v854 = vpack.c.b16 %v835, %v834
      %v855 = vpack.c.b16 %v837, %v836
      %v856 = vpack.c.b16 %v839, %v838
      %v857 = vpack.c.b16 %v841, %v840
      %v860 = vunpack.c.l.b16 %v745
      %v861 = vunpack.c.l.b16 %v746
      %v862 = vpack.c.b16 %v861, %v860
      %863 = vrot.lane.b32.xlu0 %v843, 4
      %v864 = vpop.permute.xlu0 %863
      %865 = vrot.lane.b32.xlu0 %v844, 4
      %v866 = vpop.permute.xlu0 %865
      %867 = vrot.lane.b32.xlu0 %v845, 4
      %v868 = vpop.permute.xlu0 %867
      %869 = vrot.lane.b32.xlu0 %v846, 4
      %v870 = vpop.permute.xlu0 %869
      %871 = vrot.lane.b32.xlu0 %v847, 4
      %v872 = vpop.permute.xlu0 %871
      %873 = vrot.lane.b32.xlu0 %v848, 4
      %v874 = vpop.permute.xlu0 %873
      %875 = vrot.lane.b32.xlu0 %v849, 4
      %v876 = vpop.permute.xlu0 %875
      %877 = vrot.lane.b32.xlu0 %v850, 4
      %v878 = vpop.permute.xlu0 %877
      %879 = vrot.lane.b32.xlu0 %v851, 4
      %v880 = vpop.permute.xlu0 %879
      %881 = vrot.lane.b32.xlu0 %v852, 4
      %v882 = vpop.permute.xlu0 %881
      %883 = vrot.lane.b32.xlu0 %v853, 4
      %v884 = vpop.permute.xlu0 %883
      %885 = vrot.lane.b32.xlu0 %v854, 4
      %v886 = vpop.permute.xlu0 %885
      %887 = vrot.lane.b32.xlu0 %v855, 4
      %v888 = vpop.permute.xlu0 %887
      %889 = vrot.lane.b32.xlu0 %v856, 4
      %v890 = vpop.permute.xlu0 %889
      %891 = vrot.lane.b32.xlu0 %v857, 4
      %v892 = vpop.permute.xlu0 %891
      %893 = vrot.lane.b32.xlu0 %v862, 4
      %v894 = vpop.permute.xlu0 %893
      %v927 = vunpack.c.l.b16 %v748
      %v928 = vunpack.c.l.b16 %v749
      %v929 = vunpack.c.l.b16 %v750
      %v930 = vunpack.c.l.b16 %v751
      %v931 = vunpack.c.l.b16 %v752
      %v932 = vunpack.c.l.b16 %v753
      %v933 = vunpack.c.l.b16 %v754
      %v934 = vunpack.c.l.b16 %v755
      %v935 = vunpack.c.l.b16 %v756
      %v936 = vunpack.c.l.b16 %v757
      %v937 = vunpack.c.l.b16 %v758
      %v938 = vunpack.c.l.b16 %v759
      %v939 = vunpack.c.l.b16 %v760
      %v940 = vunpack.c.l.b16 %v761
      %v941 = vunpack.c.l.b16 %v762
      %v942 = vunpack.c.l.b16 %v763
      %v943 = vunpack.c.l.b16 %v764
      %v944 = vunpack.c.l.b16 %v765
      %v945 = vunpack.c.l.b16 %v766
      %v946 = vunpack.c.l.b16 %v767
      %v947 = vunpack.c.l.b16 %v768
      %v948 = vunpack.c.l.b16 %v769
      %v949 = vunpack.c.l.b16 %v770
      %v950 = vunpack.c.l.b16 %v771
      %v951 = vunpack.c.l.b16 %v772
      %v952 = vunpack.c.l.b16 %v773
      %v953 = vunpack.c.l.b16 %v774
      %v954 = vunpack.c.l.b16 %v775
      %v955 = vunpack.c.l.b16 %v776
      %v956 = vunpack.c.l.b16 %v777
      %v957 = vunpack.c.l.b16 %v713
      %v958 = vunpack.c.l.b16 %v714
      %v959 = vpack.c.b16 %v928, %v927
      %v960 = vpack.c.b16 %v930, %v929
      %v961 = vpack.c.b16 %v932, %v931
      %v962 = vpack.c.b16 %v934, %v933
      %v963 = vpack.c.b16 %v936, %v935
      %v964 = vpack.c.b16 %v938, %v937
      %v965 = vpack.c.b16 %v940, %v939
      %v966 = vpack.c.b16 %v942, %v941
      %v967 = vpack.c.b16 %v944, %v943
      %v968 = vpack.c.b16 %v946, %v945
      %v969 = vpack.c.b16 %v948, %v947
      %v970 = vpack.c.b16 %v950, %v949
      %v971 = vpack.c.b16 %v952, %v951
      %v972 = vpack.c.b16 %v954, %v953
      %v973 = vpack.c.b16 %v956, %v955
      %v974 = vpack.c.b16 %v958, %v957
      %975 = vrot.lane.b32.xlu0 %v959, 8
      %v976 = vpop.permute.xlu0 %975
      %977 = vrot.lane.b32.xlu0 %v960, 8
      %v978 = vpop.permute.xlu0 %977
      %979 = vrot.lane.b32.xlu0 %v961, 8
      %v980 = vpop.permute.xlu0 %979
      %981 = vrot.lane.b32.xlu0 %v962, 8
      %v982 = vpop.permute.xlu0 %981
      %983 = vrot.lane.b32.xlu0 %v963, 8
      %v984 = vpop.permute.xlu0 %983
      %985 = vrot.lane.b32.xlu0 %v964, 8
      %v986 = vpop.permute.xlu0 %985
      %987 = vrot.lane.b32.xlu0 %v965, 8
      %v988 = vpop.permute.xlu0 %987
      %989 = vrot.lane.b32.xlu0 %v966, 8
      %v990 = vpop.permute.xlu0 %989
      %991 = vrot.lane.b32.xlu0 %v967, 8
      %v992 = vpop.permute.xlu0 %991
      %993 = vrot.lane.b32.xlu0 %v968, 8
      %v994 = vpop.permute.xlu0 %993
      %995 = vrot.lane.b32.xlu0 %v969, 8
      %v996 = vpop.permute.xlu0 %995
      %997 = vrot.lane.b32.xlu0 %v970, 8
      %v998 = vpop.permute.xlu0 %997
      %999 = vrot.lane.b32.xlu0 %v971, 8
      %v1000 = vpop.permute.xlu0 %999
      %1001 = vrot.lane.b32.xlu0 %v972, 8
      %v1002 = vpop.permute.xlu0 %1001
      %1003 = vrot.lane.b32.xlu0 %v973, 8
      %v1004 = vpop.permute.xlu0 %1003
      %1005 = vrot.lane.b32.xlu0 %v974, 8
      %v1006 = vpop.permute.xlu0 %1005
      %vm1007 = vcmask 31744
      %v1010 = vsel %vm1007, %v842, %v864
      %v1013 = vsel %vm1007, %v843, %v866
      %v1016 = vsel %vm1007, %v844, %v868
      %v1019 = vsel %vm1007, %v845, %v870
      %v1022 = vsel %vm1007, %v846, %v872
      %v1025 = vsel %vm1007, %v847, %v874
      %v1028 = vsel %vm1007, %v848, %v876
      %v1031 = vsel %vm1007, %v849, %v878
      %v1034 = vsel %vm1007, %v850, %v880
      %v1037 = vsel %vm1007, %v851, %v882
      %v1040 = vsel %vm1007, %v852, %v884
      %v1043 = vsel %vm1007, %v853, %v886
      %v1046 = vsel %vm1007, %v854, %v888
      %v1049 = vsel %vm1007, %v855, %v890
      %v1052 = vsel %vm1007, %v856, %v892
      %v1055 = vsel %vm1007, %v857, %v894
      %vm1056 = vcmask 64512
      %v1058 = vsel %vm1056, %v1010, %v976
      %v1060 = vsel %vm1056, %v1013, %v978
      %v1062 = vsel %vm1056, %v1016, %v980
      %v1064 = vsel %vm1056, %v1019, %v982
      %v1066 = vsel %vm1056, %v1022, %v984
      %v1068 = vsel %vm1056, %v1025, %v986
      %v1070 = vsel %vm1056, %v1028, %v988
      %v1072 = vsel %vm1056, %v1031, %v990
      %v1074 = vsel %vm1056, %v1034, %v992
      %v1076 = vsel %vm1056, %v1037, %v994
      %v1078 = vsel %vm1056, %v1040, %v996
      %v1080 = vsel %vm1056, %v1043, %v998
      %v1082 = vsel %vm1056, %v1046, %v1000
      %v1084 = vsel %vm1056, %v1049, %v1002
      %v1086 = vsel %vm1056, %v1052, %v1004
      %v1088 = vsel %vm1056, %v1055, %v1006
      %v1089 = vld [vmem:[%s631] sm:$0xff]
      %v1090 = vld [vmem:[%s631 + $0x8] sm:$0xff]
      %v1091 = vpack.c.bf16 %v1089, %v1089
      %v1092 = vpack.c.bf16 %v1090, %v1090
      %v1093 = vunpack.c.l.bf16 %v1091
      %v1094 = vunpack.c.l.bf16 %v1092
      %v1095 = vmul.f32 %v1093, %v697
      %v1096 = vmul.f32 %v1094, %v697
      %v1097 = vpack.c.bf16 %v1095, %v1095
      %v1098 = vpack.c.bf16 %v1096, %v1096
      %v1099 = vld [vmem:[%s648] sm:$0xff]
      %v1100 = vld [vmem:[%s648 + $0x8] sm:$0xff]
      %v1101 = vpack.c.bf16 %v1099, %v1099
      %v1102 = vpack.c.bf16 %v1100, %v1100
      %v1103 = vunpack.c.l.bf16 %v1101
      %v1104 = vunpack.c.l.bf16 %v1102
      %v1105 = vmul.f32 %v1103, %v710
      %v1106 = vmul.f32 %v1104, %v710
      %v1107 = vpack.c.bf16 %v1105, %v1105
      %v1108 = vpack.c.bf16 %v1106, %v1106
      %v1109 = vld [vmem:[%s617] sm:$0xff]
      %v1110 = vld [vmem:[%s617 + $0x8] sm:$0xff]
      %v1111 = vld [vmem:[%s617 + $0x10] sm:$0xff]
      %v1112 = vld [vmem:[%s617 + $0x18] sm:$0xff]
      %v1113 = vld [vmem:[%s617 + $0x20] sm:$0xff]
      %v1114 = vld [vmem:[%s617 + $0x28] sm:$0xff]
      %v1115 = vld [vmem:[%s617 + $0x30] sm:$0xff]
      %v1116 = vld [vmem:[%s617 + $0x38] sm:$0xff]
      %v1117 = vld [vmem:[%s617 + $0x40] sm:$0xff]
      %v1118 = vld [vmem:[%s617 + $0x48] sm:$0xff]
      %v1119 = vld [vmem:[%s617 + $0x50] sm:$0xff]
      %v1120 = vld [vmem:[%s617 + $0x58] sm:$0xff]
      %v1121 = vld [vmem:[%s617 + $0x60] sm:$0xff]
      %v1122 = vld [vmem:[%s617 + $0x68] sm:$0xff]
      %v1123 = vld [vmem:[%s617 + $0x70] sm:$0xff]
      %v1124 = vld [vmem:[%s617 + $0x78] sm:$0xff]
      %v1125 = vld [vmem:[%s617 + $0x80] sm:$0xff]
      %v1126 = vld [vmem:[%s617 + $0x88] sm:$0xff]
      %v1127 = vld [vmem:[%s617 + $0x90] sm:$0xff]
      %v1128 = vld [vmem:[%s617 + $0x98] sm:$0xff]
      %v1129 = vld [vmem:[%s617 + $0xa0] sm:$0xff]
      %v1130 = vld [vmem:[%s617 + $0xa8] sm:$0xff]
      %v1131 = vld [vmem:[%s617 + $0xb0] sm:$0xff]
      %v1132 = vld [vmem:[%s617 + $0xb8] sm:$0xff]
      %v1133 = vld [vmem:[%s617 + $0xc0] sm:$0xff]
      %v1134 = vld [vmem:[%s617 + $0xc8] sm:$0xff]
      %v1135 = vld [vmem:[%s617 + $0xd0] sm:$0xff]
      %v1136 = vld [vmem:[%s617 + $0xd8] sm:$0xff]
      %v1137 = vld [vmem:[%s617 + $0xe0] sm:$0xff]
      %v1138 = vld [vmem:[%s617 + $0xe8] sm:$0xff]
      %v1139 = vpack.c.bf16 %v1109, %v1109
      %v1140 = vpack.c.bf16 %v1110, %v1110
      %v1141 = vpack.c.bf16 %v1111, %v1111
      %v1142 = vpack.c.bf16 %v1112, %v1112
      %v1143 = vpack.c.bf16 %v1113, %v1113
      %v1144 = vpack.c.bf16 %v1114, %v1114
      %v1145 = vpack.c.bf16 %v1115, %v1115
      %v1146 = vpack.c.bf16 %v1116, %v1116
      %v1147 = vpack.c.bf16 %v1117, %v1117
      %v1148 = vpack.c.bf16 %v1118, %v1118
      %v1149 = vpack.c.bf16 %v1119, %v1119
      %v1150 = vpack.c.bf16 %v1120, %v1120
      %v1151 = vpack.c.bf16 %v1121, %v1121
      %v1152 = vpack.c.bf16 %v1122, %v1122
      %v1153 = vpack.c.bf16 %v1123, %v1123
      %v1154 = vpack.c.bf16 %v1124, %v1124
      %v1155 = vpack.c.bf16 %v1125, %v1125
      %v1156 = vpack.c.bf16 %v1126, %v1126
      %v1157 = vpack.c.bf16 %v1127, %v1127
      %v1158 = vpack.c.bf16 %v1128, %v1128
      %v1159 = vpack.c.bf16 %v1129, %v1129
      %v1160 = vpack.c.bf16 %v1130, %v1130
      %v1161 = vpack.c.bf16 %v1131, %v1131
      %v1162 = vpack.c.bf16 %v1132, %v1132
      %v1163 = vpack.c.bf16 %v1133, %v1133
      %v1164 = vpack.c.bf16 %v1134, %v1134
      %v1165 = vpack.c.bf16 %v1135, %v1135
      %v1166 = vpack.c.bf16 %v1136, %v1136
      %v1167 = vpack.c.bf16 %v1137, %v1137
      %v1168 = vpack.c.bf16 %v1138, %v1138
      %v1169 = vld [vmem:[%s617 + $0xf0] sm:$0xff]
      %v1170 = vld [vmem:[%s617 + $0xf8] sm:$0xff]
      %v1171 = vpack.c.bf16 %v1169, %v1169
      %v1172 = vpack.c.bf16 %v1170, %v1170
      %s1173 = scalar_lea.vmem %s617, 16
      %v1174 = vld [vmem:[%s1173] sm:$0xff]
      %v1175 = vld [vmem:[%s1173 + $0x8] sm:$0xff]
      %v1176 = vld [vmem:[%s1173 + $0x10] sm:$0xff]
      %v1177 = vld [vmem:[%s1173 + $0x18] sm:$0xff]
      %v1178 = vld [vmem:[%s1173 + $0x20] sm:$0xff]
      %v1179 = vld [vmem:[%s1173 + $0x28] sm:$0xff]
      %v1180 = vld [vmem:[%s1173 + $0x30] sm:$0xff]
      %v1181 = vld [vmem:[%s1173 + $0x38] sm:$0xff]
      %v1182 = vld [vmem:[%s1173 + $0x40] sm:$0xff]
      %v1183 = vld [vmem:[%s1173 + $0x48] sm:$0xff]
      %v1184 = vld [vmem:[%s1173 + $0x50] sm:$0xff]
      %v1185 = vld [vmem:[%s1173 + $0x58] sm:$0xff]
      %v1186 = vld [vmem:[%s1173 + $0x60] sm:$0xff]
      %v1187 = vld [vmem:[%s1173 + $0x68] sm:$0xff]
      %v1188 = vld [vmem:[%s1173 + $0x70] sm:$0xff]
      %v1189 = vld [vmem:[%s1173 + $0x78] sm:$0xff]
      %v1190 = vld [vmem:[%s1173 + $0x80] sm:$0xff]
      %v1191 = vld [vmem:[%s1173 + $0x88] sm:$0xff]
      %v1192 = vld [vmem:[%s1173 + $0x90] sm:$0xff]
      %v1193 = vld [vmem:[%s1173 + $0x98] sm:$0xff]
      %v1194 = vld [vmem:[%s1173 + $0xa0] sm:$0xff]
      %v1195 = vld [vmem:[%s1173 + $0xa8] sm:$0xff]
      %v1196 = vld [vmem:[%s1173 + $0xb0] sm:$0xff]
      %v1197 = vld [vmem:[%s1173 + $0xb8] sm:$0xff]
      %v1198 = vld [vmem:[%s1173 + $0xc0] sm:$0xff]
      %v1199 = vld [vmem:[%s1173 + $0xc8] sm:$0xff]
      %v1200 = vld [vmem:[%s1173 + $0xd0] sm:$0xff]
      %v1201 = vld [vmem:[%s1173 + $0xd8] sm:$0xff]
      %v1202 = vld [vmem:[%s1173 + $0xe0] sm:$0xff]
      %v1203 = vld [vmem:[%s1173 + $0xe8] sm:$0xff]
      %v1204 = vpack.c.bf16 %v1174, %v1174
      %v1205 = vpack.c.bf16 %v1175, %v1175
      %v1206 = vpack.c.bf16 %v1176, %v1176
      %v1207 = vpack.c.bf16 %v1177, %v1177
      %v1208 = vpack.c.bf16 %v1178, %v1178
      %v1209 = vpack.c.bf16 %v1179, %v1179
      %v1210 = vpack.c.bf16 %v1180, %v1180
      %v1211 = vpack.c.bf16 %v1181, %v1181
      %v1212 = vpack.c.bf16 %v1182, %v1182
      %v1213 = vpack.c.bf16 %v1183, %v1183
      %v1214 = vpack.c.bf16 %v1184, %v1184
      %v1215 = vpack.c.bf16 %v1185, %v1185
      %v1216 = vpack.c.bf16 %v1186, %v1186
      %v1217 = vpack.c.bf16 %v1187, %v1187
      %v1218 = vpack.c.bf16 %v1188, %v1188
      %v1219 = vpack.c.bf16 %v1189, %v1189
      %v1220 = vpack.c.bf16 %v1190, %v1190
      %v1221 = vpack.c.bf16 %v1191, %v1191
      %v1222 = vpack.c.bf16 %v1192, %v1192
      %v1223 = vpack.c.bf16 %v1193, %v1193
      %v1224 = vpack.c.bf16 %v1194, %v1194
      %v1225 = vpack.c.bf16 %v1195, %v1195
      %v1226 = vpack.c.bf16 %v1196, %v1196
      %v1227 = vpack.c.bf16 %v1197, %v1197
      %v1228 = vpack.c.bf16 %v1198, %v1198
      %v1229 = vpack.c.bf16 %v1199, %v1199
      %v1230 = vpack.c.bf16 %v1200, %v1200
      %v1231 = vpack.c.bf16 %v1201, %v1201
      %v1232 = vpack.c.bf16 %v1202, %v1202
      %v1233 = vpack.c.bf16 %v1203, %v1203
      %v1266 = vunpack.c.l.b16 %v1097
      %v1267 = vunpack.c.l.b16 %v1098
      %v1268 = vunpack.c.l.b16 %v1139
      %v1269 = vunpack.c.l.b16 %v1140
      %v1270 = vunpack.c.l.b16 %v1141
      %v1271 = vunpack.c.l.b16 %v1142
      %v1272 = vunpack.c.l.b16 %v1143
      %v1273 = vunpack.c.l.b16 %v1144
      %v1274 = vunpack.c.l.b16 %v1145
      %v1275 = vunpack.c.l.b16 %v1146
      %v1276 = vunpack.c.l.b16 %v1147
      %v1277 = vunpack.c.l.b16 %v1148
      %v1278 = vunpack.c.l.b16 %v1149
      %v1279 = vunpack.c.l.b16 %v1150
      %v1280 = vunpack.c.l.b16 %v1151
      %v1281 = vunpack.c.l.b16 %v1152
      %v1282 = vunpack.c.l.b16 %v1153
      %v1283 = vunpack.c.l.b16 %v1154
      %v1284 = vunpack.c.l.b16 %v1155
      %v1285 = vunpack.c.l.b16 %v1156
      %v1286 = vunpack.c.l.b16 %v1157
      %v1287 = vunpack.c.l.b16 %v1158
      %v1288 = vunpack.c.l.b16 %v1159
      %v1289 = vunpack.c.l.b16 %v1160
      %v1290 = vunpack.c.l.b16 %v1161
      %v1291 = vunpack.c.l.b16 %v1162
      %v1292 = vunpack.c.l.b16 %v1163
      %v1293 = vunpack.c.l.b16 %v1164
      %v1294 = vunpack.c.l.b16 %v1165
      %v1295 = vunpack.c.l.b16 %v1166
      %v1296 = vunpack.c.l.b16 %v1167
      %v1297 = vunpack.c.l.b16 %v1168
      %v1298 = vpack.c.b16 %v1267, %v1266
      %v1299 = vpack.c.b16 %v1269, %v1268
      %v1300 = vpack.c.b16 %v1271, %v1270
      %v1301 = vpack.c.b16 %v1273, %v1272
      %v1302 = vpack.c.b16 %v1275, %v1274
      %v1303 = vpack.c.b16 %v1277, %v1276
      %v1304 = vpack.c.b16 %v1279, %v1278
      %v1305 = vpack.c.b16 %v1281, %v1280
      %v1306 = vpack.c.b16 %v1283, %v1282
      %v1307 = vpack.c.b16 %v1285, %v1284
      %v1308 = vpack.c.b16 %v1287, %v1286
      %v1309 = vpack.c.b16 %v1289, %v1288
      %v1310 = vpack.c.b16 %v1291, %v1290
      %v1311 = vpack.c.b16 %v1293, %v1292
      %v1312 = vpack.c.b16 %v1295, %v1294
      %v1313 = vpack.c.b16 %v1297, %v1296
      %v1316 = vunpack.c.l.b16 %v1171
      %v1317 = vunpack.c.l.b16 %v1172
      %v1318 = vpack.c.b16 %v1317, %v1316
      %1319 = vrot.lane.b32.xlu0 %v1299, 4
      %v1320 = vpop.permute.xlu0 %1319
      %1321 = vrot.lane.b32.xlu0 %v1300, 4
      %v1322 = vpop.permute.xlu0 %1321
      %1323 = vrot.lane.b32.xlu0 %v1301, 4
      %v1324 = vpop.permute.xlu0 %1323
      %1325 = vrot.lane.b32.xlu0 %v1302, 4
      %v1326 = vpop.permute.xlu0 %1325
      %1327 = vrot.lane.b32.xlu0 %v1303, 4
      %v1328 = vpop.permute.xlu0 %1327
      %1329 = vrot.lane.b32.xlu0 %v1304, 4
      %v1330 = vpop.permute.xlu0 %1329
      %1331 = vrot.lane.b32.xlu0 %v1305, 4
      %v1332 = vpop.permute.xlu0 %1331
      %1333 = vrot.lane.b32.xlu0 %v1306, 4
      %v1334 = vpop.permute.xlu0 %1333
      %1335 = vrot.lane.b32.xlu0 %v1307, 4
      %v1336 = vpop.permute.xlu0 %1335
      %1337 = vrot.lane.b32.xlu0 %v1308, 4
      %v1338 = vpop.permute.xlu0 %1337
      %1339 = vrot.lane.b32.xlu0 %v1309, 4
      %v1340 = vpop.permute.xlu0 %1339
      %1341 = vrot.lane.b32.xlu0 %v1310, 4
      %v1342 = vpop.permute.xlu0 %1341
      %1343 = vrot.lane.b32.xlu0 %v1311, 4
      %v1344 = vpop.permute.xlu0 %1343
      %1345 = vrot.lane.b32.xlu0 %v1312, 4
      %v1346 = vpop.permute.xlu0 %1345
      %1347 = vrot.lane.b32.xlu0 %v1313, 4
      %v1348 = vpop.permute.xlu0 %1347
      %1349 = vrot.lane.b32.xlu0 %v1318, 4
      %v1350 = vpop.permute.xlu0 %1349
      %v1383 = vunpack.c.l.b16 %v1204
      %v1384 = vunpack.c.l.b16 %v1205
      %v1385 = vunpack.c.l.b16 %v1206
      %v1386 = vunpack.c.l.b16 %v1207
      %v1387 = vunpack.c.l.b16 %v1208
      %v1388 = vunpack.c.l.b16 %v1209
      %v1389 = vunpack.c.l.b16 %v1210
      %v1390 = vunpack.c.l.b16 %v1211
      %v1391 = vunpack.c.l.b16 %v1212
      %v1392 = vunpack.c.l.b16 %v1213
      %v1393 = vunpack.c.l.b16 %v1214
      %v1394 = vunpack.c.l.b16 %v1215
      %v1395 = vunpack.c.l.b16 %v1216
      %v1396 = vunpack.c.l.b16 %v1217
      %v1397 = vunpack.c.l.b16 %v1218
      %v1398 = vunpack.c.l.b16 %v1219
      %v1399 = vunpack.c.l.b16 %v1220
      %v1400 = vunpack.c.l.b16 %v1221
      %v1401 = vunpack.c.l.b16 %v1222
      %v1402 = vunpack.c.l.b16 %v1223
      %v1403 = vunpack.c.l.b16 %v1224
      %v1404 = vunpack.c.l.b16 %v1225
      %v1405 = vunpack.c.l.b16 %v1226
      %v1406 = vunpack.c.l.b16 %v1227
      %v1407 = vunpack.c.l.b16 %v1228
      %v1408 = vunpack.c.l.b16 %v1229
      %v1409 = vunpack.c.l.b16 %v1230
      %v1410 = vunpack.c.l.b16 %v1231
      %v1411 = vunpack.c.l.b16 %v1232
      %v1412 = vunpack.c.l.b16 %v1233
      %v1413 = vunpack.c.l.b16 %v1107
      %v1414 = vunpack.c.l.b16 %v1108
      %v1415 = vpack.c.b16 %v1384, %v1383
      %v1416 = vpack.c.b16 %v1386, %v1385
      %v1417 = vpack.c.b16 %v1388, %v1387
      %v1418 = vpack.c.b16 %v1390, %v1389
      %v1419 = vpack.c.b16 %v1392, %v1391
      %v1420 = vpack.c.b16 %v1394, %v1393
      %v1421 = vpack.c.b16 %v1396, %v1395
      %v1422 = vpack.c.b16 %v1398, %v1397
      %v1423 = vpack.c.b16 %v1400, %v1399
      %v1424 = vpack.c.b16 %v1402, %v1401
      %v1425 = vpack.c.b16 %v1404, %v1403
      %v1426 = vpack.c.b16 %v1406, %v1405
      %v1427 = vpack.c.b16 %v1408, %v1407
      %v1428 = vpack.c.b16 %v1410, %v1409
      %v1429 = vpack.c.b16 %v1412, %v1411
      %v1430 = vpack.c.b16 %v1414, %v1413
      %1431 = vrot.lane.b32.xlu0 %v1415, 8
      %v1432 = vpop.permute.xlu0 %1431
      %1433 = vrot.lane.b32.xlu0 %v1416, 8
      %v1434 = vpop.permute.xlu0 %1433
      %1435 = vrot.lane.b32.xlu0 %v1417, 8
      %v1436 = vpop.permute.xlu0 %1435
      %1437 = vrot.lane.b32.xlu0 %v1418, 8
      %v1438 = vpop.permute.xlu0 %1437
      %1439 = vrot.lane.b32.xlu0 %v1419, 8
      %v1440 = vpop.permute.xlu0 %1439
      %1441 = vrot.lane.b32.xlu0 %v1420, 8
      %v1442 = vpop.permute.xlu0 %1441
      %1443 = vrot.lane.b32.xlu0 %v1421, 8
      %v1444 = vpop.permute.xlu0 %1443
      %1445 = vrot.lane.b32.xlu0 %v1422, 8
      %v1446 = vpop.permute.xlu0 %1445
      %1447 = vrot.lane.b32.xlu0 %v1423, 8
      %v1448 = vpop.permute.xlu0 %1447
      %1449 = vrot.lane.b32.xlu0 %v1424, 8
      %v1450 = vpop.permute.xlu0 %1449
      %1451 = vrot.lane.b32.xlu0 %v1425, 8
      %v1452 = vpop.permute.xlu0 %1451
      %1453 = vrot.lane.b32.xlu0 %v1426, 8
      %v1454 = vpop.permute.xlu0 %1453
      %1455 = vrot.lane.b32.xlu0 %v1427, 8
      %v1456 = vpop.permute.xlu0 %1455
      %1457 = vrot.lane.b32.xlu0 %v1428, 8
      %v1458 = vpop.permute.xlu0 %1457
      %1459 = vrot.lane.b32.xlu0 %v1429, 8
      %v1460 = vpop.permute.xlu0 %1459
      %1461 = vrot.lane.b32.xlu0 %v1430, 8
      %v1462 = vpop.permute.xlu0 %1461
      %v1465 = vsel %vm1007, %v1298, %v1320
      %v1468 = vsel %vm1007, %v1299, %v1322
      %v1471 = vsel %vm1007, %v1300, %v1324
      %v1474 = vsel %vm1007, %v1301, %v1326
      %v1477 = vsel %vm1007, %v1302, %v1328
      %v1480 = vsel %vm1007, %v1303, %v1330
      %v1483 = vsel %vm1007, %v1304, %v1332
      %v1486 = vsel %vm1007, %v1305, %v1334
      %v1489 = vsel %vm1007, %v1306, %v1336
      %v1492 = vsel %vm1007, %v1307, %v1338
      %v1495 = vsel %vm1007, %v1308, %v1340
      %v1498 = vsel %vm1007, %v1309, %v1342
      %v1501 = vsel %vm1007, %v1310, %v1344
      %v1504 = vsel %vm1007, %v1311, %v1346
      %v1507 = vsel %vm1007, %v1312, %v1348
      %v1510 = vsel %vm1007, %v1313, %v1350
      %v1512 = vsel %vm1056, %v1465, %v1432
      %v1514 = vsel %vm1056, %v1468, %v1434
      %v1516 = vsel %vm1056, %v1471, %v1436
      %v1518 = vsel %vm1056, %v1474, %v1438
      %v1520 = vsel %vm1056, %v1477, %v1440
      %v1522 = vsel %vm1056, %v1480, %v1442
      %v1524 = vsel %vm1056, %v1483, %v1444
      %v1526 = vsel %vm1056, %v1486, %v1446
      %v1528 = vsel %vm1056, %v1489, %v1448
      %v1530 = vsel %vm1056, %v1492, %v1450
      %v1532 = vsel %vm1056, %v1495, %v1452
      %v1534 = vsel %vm1056, %v1498, %v1454
      %v1536 = vsel %vm1056, %v1501, %v1456
      %v1538 = vsel %vm1056, %v1504, %v1458
      %v1540 = vsel %vm1056, %v1507, %v1460
      %v1542 = vsel %vm1056, %v1510, %v1462
      %1559 = vrot.lane.b32.xlu0 %v1512, 12
      %v1560 = vpop.permute.xlu0 %1559
      %1561 = vrot.lane.b32.xlu0 %v1514, 12
      %v1562 = vpop.permute.xlu0 %1561
      %1563 = vrot.lane.b32.xlu0 %v1516, 12
      %v1564 = vpop.permute.xlu0 %1563
      %1565 = vrot.lane.b32.xlu0 %v1518, 12
      %v1566 = vpop.permute.xlu0 %1565
      %1567 = vrot.lane.b32.xlu0 %v1520, 12
      %v1568 = vpop.permute.xlu0 %1567
      %1569 = vrot.lane.b32.xlu0 %v1522, 12
      %v1570 = vpop.permute.xlu0 %1569
      %1571 = vrot.lane.b32.xlu0 %v1524, 12
      %v1572 = vpop.permute.xlu0 %1571
      %1573 = vrot.lane.b32.xlu0 %v1526, 12
      %v1574 = vpop.permute.xlu0 %1573
      %1575 = vrot.lane.b32.xlu0 %v1528, 12
      %v1576 = vpop.permute.xlu0 %1575
      %1577 = vrot.lane.b32.xlu0 %v1530, 12
      %v1578 = vpop.permute.xlu0 %1577
      %1579 = vrot.lane.b32.xlu0 %v1532, 12
      %v1580 = vpop.permute.xlu0 %1579
      %1581 = vrot.lane.b32.xlu0 %v1534, 12
      %v1582 = vpop.permute.xlu0 %1581
      %1583 = vrot.lane.b32.xlu0 %v1536, 12
      %v1584 = vpop.permute.xlu0 %1583
      %1585 = vrot.lane.b32.xlu0 %v1538, 12
      %v1586 = vpop.permute.xlu0 %1585
      %1587 = vrot.lane.b32.xlu0 %v1540, 12
      %v1588 = vpop.permute.xlu0 %1587
      %1589 = vrot.lane.b32.xlu0 %v1542, 12
      %v1590 = vpop.permute.xlu0 %1589
      %vm1591 = vcmask 97280
      %v1593 = vsel %vm1591, %v1058, %v1560
      %v1595 = vsel %vm1591, %v1060, %v1562
      %v1597 = vsel %vm1591, %v1062, %v1564
      %v1599 = vsel %vm1591, %v1064, %v1566
      %v1601 = vsel %vm1591, %v1066, %v1568
      %v1603 = vsel %vm1591, %v1068, %v1570
      %v1605 = vsel %vm1591, %v1070, %v1572
      %v1607 = vsel %vm1591, %v1072, %v1574
      %v1609 = vsel %vm1591, %v1074, %v1576
      %v1611 = vsel %vm1591, %v1076, %v1578
      %v1613 = vsel %vm1591, %v1078, %v1580
      %v1615 = vsel %vm1591, %v1080, %v1582
      %v1617 = vsel %vm1591, %v1082, %v1584
      %v1619 = vsel %vm1591, %v1084, %v1586
      %v1621 = vsel %vm1591, %v1086, %v1588
      %v1623 = vsel %vm1591, %v1088, %v1590
      %1624 = vst.msk [vmem:[#allocation2] sm:$0xff] %vm1007, 0.0
      %1625 = vst.msk [vmem:[#allocation2 + $0x8] sm:$0xff] %vm1007, 0.0
      %vm1626 = vcmask 25600
      %1627 = vst.msk [vmem:[#allocation2 + $0x10] sm:$0x3] %vm1626, 0.0
      %1628 = vst.msk [vmem:[#allocation2 + $0x18] sm:$0xff] %vm1007, 0.0
      %1629 = vst.msk [vmem:[#allocation2 + $0x20] sm:$0xff] %vm1007, 0.0
      %1630 = vst.msk [vmem:[#allocation2 + $0x28] sm:$0x3] %vm1626, 0.0
      %1631 = vst.msk [vmem:[#allocation2 + $0x30] sm:$0xff] %vm1007, 0.0
      %1632 = vst.msk [vmem:[#allocation2 + $0x38] sm:$0xff] %vm1007, 0.0
      %1633 = vst.msk [vmem:[#allocation2 + $0x40] sm:$0x3] %vm1626, 0.0
      %1634 = vst.msk [vmem:[#allocation2 + $0x48] sm:$0xff] %vm1007, 0.0
      %1635 = vst.msk [vmem:[#allocation2 + $0x50] sm:$0xff] %vm1007, 0.0
      %1636 = vst.msk [vmem:[#allocation2 + $0x58] sm:$0x3] %vm1626, 0.0
      %1637 = vst.msk [vmem:[#allocation2 + $0x60] sm:$0xff] %vm1007, 0.0
      %1638 = vst.msk [vmem:[#allocation2 + $0x68] sm:$0xff] %vm1007, 0.0
      %1639 = vst.msk [vmem:[#allocation2 + $0x70] sm:$0x3] %vm1626, 0.0
      %1640 = vst.msk [vmem:[#allocation2 + $0x78] sm:$0xff] %vm1007, 0.0
      %1641 = vst.msk [vmem:[#allocation2 + $0x80] sm:$0xff] %vm1007, 0.0
      %1642 = vst.msk [vmem:[#allocation2 + $0x88] sm:$0x3] %vm1626, 0.0
      %1643 = vst.msk [vmem:[#allocation2 + $0x90] sm:$0xff] %vm1007, 0.0
      %1644 = vst.msk [vmem:[#allocation2 + $0x98] sm:$0xff] %vm1007, 0.0
      %1645 = vst.msk [vmem:[#allocation2 + $0xa0] sm:$0x3] %vm1626, 0.0
      %1646 = vst.msk [vmem:[#allocation2 + $0xa8] sm:$0xff] %vm1007, 0.0
      %1647 = vst.msk [vmem:[#allocation2 + $0xb0] sm:$0xff] %vm1007, 0.0
      %1648 = vst.msk [vmem:[#allocation2 + $0xb8] sm:$0x3] %vm1626, 0.0
      %1649 = vst.msk [vmem:[#allocation2 + $0xc0] sm:$0xff] %vm1007, 0.0
      %1650 = vst.msk [vmem:[#allocation2 + $0xc8] sm:$0xff] %vm1007, 0.0
      %1651 = vst.msk [vmem:[#allocation2 + $0xd0] sm:$0x3] %vm1626, 0.0
      %1652 = vst.msk [vmem:[#allocation2 + $0xd8] sm:$0xff] %vm1007, 0.0
      %1653 = vst.msk [vmem:[#allocation2 + $0xe0] sm:$0xff] %vm1007, 0.0
      %1654 = vst.msk [vmem:[#allocation2 + $0xe8] sm:$0x3] %vm1626, 0.0
      %1655 = vst.msk [vmem:[#allocation2 + $0xf0] sm:$0xff] %vm1007, 0.0
      %1656 = vst.msk [vmem:[#allocation2 + $0xf8] sm:$0xff] %vm1007, 0.0
      %1657 = vst.msk [vmem:[#allocation2 + $0x100] sm:$0x3] %vm1626, 0.0
      %1658 = vst.msk [vmem:[#allocation2 + $0x108] sm:$0xff] %vm1007, 0.0
      %1659 = vst.msk [vmem:[#allocation2 + $0x110] sm:$0xff] %vm1007, 0.0
      %1660 = vst.msk [vmem:[#allocation2 + $0x118] sm:$0x3] %vm1626, 0.0
      %1661 = vst.msk [vmem:[#allocation2 + $0x120] sm:$0xff] %vm1007, 0.0
      %1662 = vst.msk [vmem:[#allocation2 + $0x128] sm:$0xff] %vm1007, 0.0
      %1663 = vst.msk [vmem:[#allocation2 + $0x130] sm:$0x3] %vm1626, 0.0
      %1664 = vst.msk [vmem:[#allocation2 + $0x138] sm:$0xff] %vm1007, 0.0
      %1665 = vst.msk [vmem:[#allocation2 + $0x140] sm:$0xff] %vm1007, 0.0
      %1666 = vst.msk [vmem:[#allocation2 + $0x148] sm:$0x3] %vm1626, 0.0
      %1667 = vst.msk [vmem:[#allocation2 + $0x150] sm:$0xff] %vm1007, 0.0
      %1668 = vst.msk [vmem:[#allocation2 + $0x158] sm:$0xff] %vm1007, 0.0
      %1669 = vst.msk [vmem:[#allocation2 + $0x160] sm:$0x3] %vm1626, 0.0
      %1670 = vst.msk [vmem:[#allocation2 + $0x168] sm:$0xff] %vm1007, 0.0
      %1671 = vst.msk [vmem:[#allocation2 + $0x170] sm:$0xff] %vm1007, 0.0
      %1672 = vst.msk [vmem:[#allocation2 + $0x178] sm:$0x3] %vm1626, 0.0
      %v1673 = vld [vmem:[%s6] sm:$0xf]
      %v1674 = vld [vmem:[%s6 + $0x4] sm:$0xf]
      %v1675 = vld [vmem:[%s6 + $0x8] sm:$0xf]
      %v1679 = vunpack.c.l.b16 %v1673
      %v1680 = vunpack.c.l.b16 %v1674
      %v1681 = vunpack.c.l.b16 %v1675
      %v1682 = vpack.c.b16 %v1680, %v1679
      %v1683 = vpack.c.b16 %v1681, %v1681
      %vm1685 = vcmask 195584
      %v1686 = vsel %vm1685, %v1593, 0
      %v1688 = vsel %vm1685, %v1595, 0
      %v1690 = vsel %vm1685, %v1597, 0
      %v1692 = vsel %vm1685, %v1599, 0
      %v1694 = vsel %vm1685, %v1601, 0
      %v1696 = vsel %vm1685, %v1603, 0
      %v1698 = vsel %vm1685, %v1605, 0
      %v1700 = vsel %vm1685, %v1607, 0
      %v1702 = vsel %vm1685, %v1609, 0
      %v1704 = vsel %vm1685, %v1611, 0
      %v1706 = vsel %vm1685, %v1613, 0
      %v1708 = vsel %vm1685, %v1615, 0
      %v1710 = vsel %vm1685, %v1617, 0
      %v1712 = vsel %vm1685, %v1619, 0
      %v1714 = vsel %vm1685, %v1621, 0
      %v1716 = vsel %vm1685, %v1623, 0
      %vm1718 = vcmask 1043456
      %v1720 = vsel %vm1718, %v1683, 0
      %1722 = vmatpush.bf16.msra.mxu0 0
      %1723 = vmatpush.bf16.msra.mxu0 0
      %1724 = vmatpush.bf16.msra.mxu0 0
      %1725 = vmatpush.bf16.msra.mxu0 0
      %1726 = vmatpush.bf16.msra.mxu0 0
      %1727 = vmatpush.bf16.msra.mxu0 0
      %1728 = vmatpush.bf16.msra.mxu0 %v1720
      %1729 = vmatpush.bf16.msra.mxu0 %v1682
      %1730 = vmatmul.bf16.gmra.mxu0 %v1686
      %v1731 = vpop.f32.mrf.mxu0
      %v1732 = vadd.f32 0.0, %v1731
      %v1733 = vpop.f32.mrf.mxu0
      %v1734 = vadd.f32 0.0, %v1733
      %1735 = vmatmul.bf16.gmra.mxu0 %v1688
      %v1736 = vpop.f32.mrf.mxu0
      %v1737 = vadd.f32 0.0, %v1736
      %v1738 = vpop.f32.mrf.mxu0
      %v1739 = vadd.f32 0.0, %v1738
      %1740 = vmatmul.bf16.gmra.mxu0 %v1690
      %v1741 = vpop.f32.mrf.mxu0
      %v1742 = vadd.f32 0.0, %v1741
      %v1743 = vpop.f32.mrf.mxu0
      %v1744 = vadd.f32 0.0, %v1743
      %1745 = vmatmul.bf16.gmra.mxu0 %v1692
      %v1746 = vpop.f32.mrf.mxu0
      %v1747 = vadd.f32 0.0, %v1746
      %v1748 = vpop.f32.mrf.mxu0
      %v1749 = vadd.f32 0.0, %v1748
      %1750 = vmatmul.bf16.gmra.mxu0 %v1694
      %v1751 = vpop.f32.mrf.mxu0
      %v1752 = vadd.f32 0.0, %v1751
      %v1753 = vpop.f32.mrf.mxu0
      %v1754 = vadd.f32 0.0, %v1753
      %1755 = vmatmul.bf16.gmra.mxu0 %v1696
      %v1756 = vpop.f32.mrf.mxu0
      %v1757 = vadd.f32 0.0, %v1756
      %v1758 = vpop.f32.mrf.mxu0
      %v1759 = vadd.f32 0.0, %v1758
      %1760 = vmatmul.bf16.gmra.mxu0 %v1698
      %v1761 = vpop.f32.mrf.mxu0
      %v1762 = vadd.f32 0.0, %v1761
      %v1763 = vpop.f32.mrf.mxu0
      %v1764 = vadd.f32 0.0, %v1763
      %1765 = vmatmul.bf16.gmra.mxu0 %v1700
      %v1766 = vpop.f32.mrf.mxu0
      %v1767 = vadd.f32 0.0, %v1766
      %v1768 = vpop.f32.mrf.mxu0
      %v1769 = vadd.f32 0.0, %v1768
      %1770 = vmatmul.bf16.gmra.mxu0 %v1702
      %v1771 = vpop.f32.mrf.mxu0
      %v1772 = vadd.f32 0.0, %v1771
      %v1773 = vpop.f32.mrf.mxu0
      %v1774 = vadd.f32 0.0, %v1773
      %1775 = vmatmul.bf16.gmra.mxu0 %v1704
      %v1776 = vpop.f32.mrf.mxu0
      %v1777 = vadd.f32 0.0, %v1776
      %v1778 = vpop.f32.mrf.mxu0
      %v1779 = vadd.f32 0.0, %v1778
      %1780 = vmatmul.bf16.gmra.mxu0 %v1706
      %v1781 = vpop.f32.mrf.mxu0
      %v1782 = vadd.f32 0.0, %v1781
      %v1783 = vpop.f32.mrf.mxu0
      %v1784 = vadd.f32 0.0, %v1783
      %1785 = vmatmul.bf16.gmra.mxu0 %v1708
      %v1786 = vpop.f32.mrf.mxu0
      %v1787 = vadd.f32 0.0, %v1786
      %v1788 = vpop.f32.mrf.mxu0
      %v1789 = vadd.f32 0.0, %v1788
      %1790 = vmatmul.bf16.gmra.mxu0 %v1710
      %v1791 = vpop.f32.mrf.mxu0
      %v1792 = vadd.f32 0.0, %v1791
      %v1793 = vpop.f32.mrf.mxu0
      %v1794 = vadd.f32 0.0, %v1793
      %1795 = vmatmul.bf16.gmra.mxu0 %v1712
      %v1796 = vpop.f32.mrf.mxu0
      %v1797 = vadd.f32 0.0, %v1796
      %v1798 = vpop.f32.mrf.mxu0
      %v1799 = vadd.f32 0.0, %v1798
      %1800 = vmatmul.bf16.gmra.mxu0 %v1714
      %v1801 = vpop.f32.mrf.mxu0
      %v1802 = vadd.f32 0.0, %v1801
      %v1803 = vpop.f32.mrf.mxu0
      %v1804 = vadd.f32 0.0, %v1803
      %1805 = vmatmul.bf16.gmra.mxu0 %v1716
      %v1806 = vpop.f32.mrf.mxu0
      %v1807 = vadd.f32 0.0, %v1806
      %v1808 = vpop.f32.mrf.mxu0
      %v1809 = vadd.f32 0.0, %v1808
      %1810 = vdwg.mxu0
      %v1811 = vld [vmem:[#allocation2 + $0x2] sm:$0xff]
      %v1812 = vld [vmem:[#allocation2 + $0xa] sm:$0xff]
      %v1813 = vld [vmem:[#allocation2 + $0x1a] sm:$0xff]
      %v1814 = vld [vmem:[#allocation2 + $0x22] sm:$0xff]
      %v1815 = vld [vmem:[#allocation2 + $0x32] sm:$0xff]
      %v1816 = vld [vmem:[#allocation2 + $0x3a] sm:$0xff]
      %v1817 = vld [vmem:[#allocation2 + $0x4a] sm:$0xff]
      %v1818 = vld [vmem:[#allocation2 + $0x52] sm:$0xff]
      %v1819 = vld [vmem:[#allocation2 + $0x62] sm:$0xff]
      %v1820 = vld [vmem:[#allocation2 + $0x6a] sm:$0xff]
      %v1821 = vld [vmem:[#allocation2 + $0x7a] sm:$0xff]
      %v1822 = vld [vmem:[#allocation2 + $0x82] sm:$0xff]
      %v1823 = vld [vmem:[#allocation2 + $0x92] sm:$0xff]
      %v1824 = vld [vmem:[#allocation2 + $0x9a] sm:$0xff]
      %v1825 = vld [vmem:[#allocation2 + $0xaa] sm:$0xff]
      %v1826 = vld [vmem:[#allocation2 + $0xb2] sm:$0xff]
      %v1827 = vld [vmem:[#allocation2 + $0xc2] sm:$0xff]
      %v1828 = vld [vmem:[#allocation2 + $0xca] sm:$0xff]
      %v1829 = vld [vmem:[#allocation2 + $0xda] sm:$0xff]
      %v1830 = vld [vmem:[#allocation2 + $0xe2] sm:$0xff]
      %v1831 = vld [vmem:[#allocation2 + $0xf2] sm:$0xff]
      %v1832 = vld [vmem:[#allocation2 + $0xfa] sm:$0xff]
      %v1833 = vld [vmem:[#allocation2 + $0x10a] sm:$0xff]
      %v1834 = vld [vmem:[#allocation2 + $0x112] sm:$0xff]
      %v1835 = vld [vmem:[#allocation2 + $0x122] sm:$0xff]
      %v1836 = vld [vmem:[#allocation2 + $0x12a] sm:$0xff]
      %v1837 = vld [vmem:[#allocation2 + $0x13a] sm:$0xff]
      %v1838 = vld [vmem:[#allocation2 + $0x142] sm:$0xff]
      %v1839 = vld [vmem:[#allocation2 + $0x152] sm:$0xff]
      %v1840 = vld [vmem:[#allocation2 + $0x15a] sm:$0xff]
      %v1841 = vld [vmem:[#allocation2 + $0x16a] sm:$0xff]
      %v1842 = vld [vmem:[#allocation2 + $0x172] sm:$0xff]
      %v1843 = vadd.f32 %v1811, %v1732
      %v1844 = vadd.f32 %v1812, %v1734
      %v1845 = vadd.f32 %v1813, %v1737
      %v1846 = vadd.f32 %v1814, %v1739
      %v1847 = vadd.f32 %v1815, %v1742
      %v1848 = vadd.f32 %v1816, %v1744
      %v1849 = vadd.f32 %v1817, %v1747
      %v1850 = vadd.f32 %v1818, %v1749
      %v1851 = vadd.f32 %v1819, %v1752
      %v1852 = vadd.f32 %v1820, %v1754
      %v1853 = vadd.f32 %v1821, %v1757
      %v1854 = vadd.f32 %v1822, %v1759
      %v1855 = vadd.f32 %v1823, %v1762
      %v1856 = vadd.f32 %v1824, %v1764
      %v1857 = vadd.f32 %v1825, %v1767
      %v1858 = vadd.f32 %v1826, %v1769
      %v1859 = vadd.f32 %v1827, %v1772
      %v1860 = vadd.f32 %v1828, %v1774
      %v1861 = vadd.f32 %v1829, %v1777
      %v1862 = vadd.f32 %v1830, %v1779
      %v1863 = vadd.f32 %v1831, %v1782
      %v1864 = vadd.f32 %v1832, %v1784
      %v1865 = vadd.f32 %v1833, %v1787
      %v1866 = vadd.f32 %v1834, %v1789
      %v1867 = vadd.f32 %v1835, %v1792
      %v1868 = vadd.f32 %v1836, %v1794
      %v1869 = vadd.f32 %v1837, %v1797
      %v1870 = vadd.f32 %v1838, %v1799
      %v1871 = vadd.f32 %v1839, %v1802
      %v1872 = vadd.f32 %v1840, %v1804
      %v1873 = vadd.f32 %v1841, %v1807
      %v1874 = vadd.f32 %v1842, %v1809
      %1875 = vst.msk [vmem:[#allocation2 + $0x2] sm:$0xff] %vm1007, %v1843
      %1876 = vst.msk [vmem:[#allocation2 + $0xa] sm:$0xff] %vm1007, %v1844
      %1877 = vst.msk [vmem:[#allocation2 + $0x1a] sm:$0xff] %vm1007, %v1845
      %1878 = vst.msk [vmem:[#allocation2 + $0x22] sm:$0xff] %vm1007, %v1846
      %1879 = vst.msk [vmem:[#allocation2 + $0x32] sm:$0xff] %vm1007, %v1847
      %1880 = vst.msk [vmem:[#allocation2 + $0x3a] sm:$0xff] %vm1007, %v1848
      %1881 = vst.msk [vmem:[#allocation2 + $0x4a] sm:$0xff] %vm1007, %v1849
      %1882 = vst.msk [vmem:[#allocation2 + $0x52] sm:$0xff] %vm1007, %v1850
      %1883 = vst.msk [vmem:[#allocation2 + $0x62] sm:$0xff] %vm1007, %v1851
      %1884 = vst.msk [vmem:[#allocation2 + $0x6a] sm:$0xff] %vm1007, %v1852
      %1885 = vst.msk [vmem:[#allocation2 + $0x7a] sm:$0xff] %vm1007, %v1853
      %1886 = vst.msk [vmem:[#allocation2 + $0x82] sm:$0xff] %vm1007, %v1854
      %1887 = vst.msk [vmem:[#allocation2 + $0x92] sm:$0xff] %vm1007, %v1855
      %1888 = vst.msk [vmem:[#allocation2 + $0x9a] sm:$0xff] %vm1007, %v1856
      %1889 = vst.msk [vmem:[#allocation2 + $0xaa] sm:$0xff] %vm1007, %v1857
      %1890 = vst.msk [vmem:[#allocation2 + $0xb2] sm:$0xff] %vm1007, %v1858
      %1891 = vst.msk [vmem:[#allocation2 + $0xc2] sm:$0xff] %vm1007, %v1859
      %1892 = vst.msk [vmem:[#allocation2 + $0xca] sm:$0xff] %vm1007, %v1860
      %1893 = vst.msk [vmem:[#allocation2 + $0xda] sm:$0xff] %vm1007, %v1861
      %1894 = vst.msk [vmem:[#allocation2 + $0xe2] sm:$0xff] %vm1007, %v1862
      %1895 = vst.msk [vmem:[#allocation2 + $0xf2] sm:$0xff] %vm1007, %v1863
      %1896 = vst.msk [vmem:[#allocation2 + $0xfa] sm:$0xff] %vm1007, %v1864
      %1897 = vst.msk [vmem:[#allocation2 + $0x10a] sm:$0xff] %vm1007, %v1865
      %1898 = vst.msk [vmem:[#allocation2 + $0x112] sm:$0xff] %vm1007, %v1866
      %1899 = vst.msk [vmem:[#allocation2 + $0x122] sm:$0xff] %vm1007, %v1867
      %1900 = vst.msk [vmem:[#allocation2 + $0x12a] sm:$0xff] %vm1007, %v1868
      %1901 = vst.msk [vmem:[#allocation2 + $0x13a] sm:$0xff] %vm1007, %v1869
      %1902 = vst.msk [vmem:[#allocation2 + $0x142] sm:$0xff] %vm1007, %v1870
      %1903 = vst.msk [vmem:[#allocation2 + $0x152] sm:$0xff] %vm1007, %v1871
      %1904 = vst.msk [vmem:[#allocation2 + $0x15a] sm:$0xff] %vm1007, %v1872
      %1905 = vst.msk [vmem:[#allocation2 + $0x16a] sm:$0xff] %vm1007, %v1873
      %1906 = vst.msk [vmem:[#allocation2 + $0x172] sm:$0xff] %vm1007, %v1874
      %s1907 = scalar_lea.vmem %s6, 12
      %v1908 = vld [vmem:[%s1907] sm:$0xf]
      %v1909 = vld [vmem:[%s1907 + $0x4] sm:$0xf]
      %v1910 = vld [vmem:[%s1907 + $0x8] sm:$0xf]
      %v1914 = vunpack.c.l.b16 %v1908
      %v1915 = vunpack.c.l.b16 %v1909
      %v1916 = vunpack.c.l.b16 %v1910
      %v1917 = vpack.c.b16 %v1915, %v1914
      %v1918 = vpack.c.b16 %v1916, %v1916
      %v1921 = vsel %vm1718, %v1918, 0
      %1923 = vmatpush.bf16.msra.mxu0 0
      %1924 = vmatpush.bf16.msra.mxu0 0
      %1925 = vmatpush.bf16.msra.mxu0 0
      %1926 = vmatpush.bf16.msra.mxu0 0
      %1927 = vmatpush.bf16.msra.mxu0 0
      %1928 = vmatpush.bf16.msra.mxu0 0
      %1929 = vmatpush.bf16.msra.mxu0 %v1921
      %1930 = vmatpush.bf16.msra.mxu0 %v1917
      %1931 = vmatmul.bf16.gmra.mxu0 %v1686
      %v1932 = vpop.f32.mrf.mxu0
      %v1933 = vadd.f32 0.0, %v1932
      %v1934 = vpop.f32.mrf.mxu0
      %v1935 = vadd.f32 0.0, %v1934
      %1936 = vmatmul.bf16.gmra.mxu0 %v1688
      %v1937 = vpop.f32.mrf.mxu0
      %v1938 = vadd.f32 0.0, %v1937
      %v1939 = vpop.f32.mrf.mxu0
      %v1940 = vadd.f32 0.0, %v1939
      %1941 = vmatmul.bf16.gmra.mxu0 %v1690
      %v1942 = vpop.f32.mrf.mxu0
      %v1943 = vadd.f32 0.0, %v1942
      %v1944 = vpop.f32.mrf.mxu0
      %v1945 = vadd.f32 0.0, %v1944
      %1946 = vmatmul.bf16.gmra.mxu0 %v1692
      %v1947 = vpop.f32.mrf.mxu0
      %v1948 = vadd.f32 0.0, %v1947
      %v1949 = vpop.f32.mrf.mxu0
      %v1950 = vadd.f32 0.0, %v1949
      %1951 = vmatmul.bf16.gmra.mxu0 %v1694
      %v1952 = vpop.f32.mrf.mxu0
      %v1953 = vadd.f32 0.0, %v1952
      %v1954 = vpop.f32.mrf.mxu0
      %v1955 = vadd.f32 0.0, %v1954
      %1956 = vmatmul.bf16.gmra.mxu0 %v1696
      %v1957 = vpop.f32.mrf.mxu0
      %v1958 = vadd.f32 0.0, %v1957
      %v1959 = vpop.f32.mrf.mxu0
      %v1960 = vadd.f32 0.0, %v1959
      %1961 = vmatmul.bf16.gmra.mxu0 %v1698
      %v1962 = vpop.f32.mrf.mxu0
      %v1963 = vadd.f32 0.0, %v1962
      %v1964 = vpop.f32.mrf.mxu0
      %v1965 = vadd.f32 0.0, %v1964
      %1966 = vmatmul.bf16.gmra.mxu0 %v1700
      %v1967 = vpop.f32.mrf.mxu0
      %v1968 = vadd.f32 0.0, %v1967
      %v1969 = vpop.f32.mrf.mxu0
      %v1970 = vadd.f32 0.0, %v1969
      %1971 = vmatmul.bf16.gmra.mxu0 %v1702
      %v1972 = vpop.f32.mrf.mxu0
      %v1973 = vadd.f32 0.0, %v1972
      %v1974 = vpop.f32.mrf.mxu0
      %v1975 = vadd.f32 0.0, %v1974
      %1976 = vmatmul.bf16.gmra.mxu0 %v1704
      %v1977 = vpop.f32.mrf.mxu0
      %v1978 = vadd.f32 0.0, %v1977
      %v1979 = vpop.f32.mrf.mxu0
      %v1980 = vadd.f32 0.0, %v1979
      %1981 = vmatmul.bf16.gmra.mxu0 %v1706
      %v1982 = vpop.f32.mrf.mxu0
      %v1983 = vadd.f32 0.0, %v1982
      %v1984 = vpop.f32.mrf.mxu0
      %v1985 = vadd.f32 0.0, %v1984
      %1986 = vmatmul.bf16.gmra.mxu0 %v1708
      %v1987 = vpop.f32.mrf.mxu0
      %v1988 = vadd.f32 0.0, %v1987
      %v1989 = vpop.f32.mrf.mxu0
      %v1990 = vadd.f32 0.0, %v1989
      %1991 = vmatmul.bf16.gmra.mxu0 %v1710
      %v1992 = vpop.f32.mrf.mxu0
      %v1993 = vadd.f32 0.0, %v1992
      %v1994 = vpop.f32.mrf.mxu0
      %v1995 = vadd.f32 0.0, %v1994
      %1996 = vmatmul.bf16.gmra.mxu0 %v1712
      %v1997 = vpop.f32.mrf.mxu0
      %v1998 = vadd.f32 0.0, %v1997
      %v1999 = vpop.f32.mrf.mxu0
      %v2000 = vadd.f32 0.0, %v1999
      %2001 = vmatmul.bf16.gmra.mxu0 %v1714
      %v2002 = vpop.f32.mrf.mxu0
      %v2003 = vadd.f32 0.0, %v2002
      %v2004 = vpop.f32.mrf.mxu0
      %v2005 = vadd.f32 0.0, %v2004
      %2006 = vmatmul.bf16.gmra.mxu0 %v1716
      %v2007 = vpop.f32.mrf.mxu0
      %v2008 = vadd.f32 0.0, %v2007
      %v2009 = vpop.f32.mrf.mxu0
      %v2010 = vadd.f32 0.0, %v2009
      %2011 = vdwg.mxu0
      %v2012 = vld [vmem:[#allocation2 + $0x1] sm:$0xff]
      %v2013 = vld [vmem:[#allocation2 + $0x9] sm:$0xff]
      %v2014 = vld [vmem:[#allocation2 + $0x19] sm:$0xff]
      %v2015 = vld [vmem:[#allocation2 + $0x21] sm:$0xff]
      %v2016 = vld [vmem:[#allocation2 + $0x31] sm:$0xff]
      %v2017 = vld [vmem:[#allocation2 + $0x39] sm:$0xff]
      %v2018 = vld [vmem:[#allocation2 + $0x49] sm:$0xff]
      %v2019 = vld [vmem:[#allocation2 + $0x51] sm:$0xff]
      %v2020 = vld [vmem:[#allocation2 + $0x61] sm:$0xff]
      %v2021 = vld [vmem:[#allocation2 + $0x69] sm:$0xff]
      %v2022 = vld [vmem:[#allocation2 + $0x79] sm:$0xff]
      %v2023 = vld [vmem:[#allocation2 + $0x81] sm:$0xff]
      %v2024 = vld [vmem:[#allocation2 + $0x91] sm:$0xff]
      %v2025 = vld [vmem:[#allocation2 + $0x99] sm:$0xff]
      %v2026 = vld [vmem:[#allocation2 + $0xa9] sm:$0xff]
      %v2027 = vld [vmem:[#allocation2 + $0xb1] sm:$0xff]
      %v2028 = vld [vmem:[#allocation2 + $0xc1] sm:$0xff]
      %v2029 = vld [vmem:[#allocation2 + $0xc9] sm:$0xff]
      %v2030 = vld [vmem:[#allocation2 + $0xd9] sm:$0xff]
      %v2031 = vld [vmem:[#allocation2 + $0xe1] sm:$0xff]
      %v2032 = vld [vmem:[#allocation2 + $0xf1] sm:$0xff]
      %v2033 = vld [vmem:[#allocation2 + $0xf9] sm:$0xff]
      %v2034 = vld [vmem:[#allocation2 + $0x109] sm:$0xff]
      %v2035 = vld [vmem:[#allocation2 + $0x111] sm:$0xff]
      %v2036 = vld [vmem:[#allocation2 + $0x121] sm:$0xff]
      %v2037 = vld [vmem:[#allocation2 + $0x129] sm:$0xff]
      %v2038 = vld [vmem:[#allocation2 + $0x139] sm:$0xff]
      %v2039 = vld [vmem:[#allocation2 + $0x141] sm:$0xff]
      %v2040 = vld [vmem:[#allocation2 + $0x151] sm:$0xff]
      %v2041 = vld [vmem:[#allocation2 + $0x159] sm:$0xff]
      %v2042 = vld [vmem:[#allocation2 + $0x169] sm:$0xff]
      %v2043 = vld [vmem:[#allocation2 + $0x171] sm:$0xff]
      %v2044 = vadd.f32 %v2012, %v1933
      %v2045 = vadd.f32 %v2013, %v1935
      %v2046 = vadd.f32 %v2014, %v1938
      %v2047 = vadd.f32 %v2015, %v1940
      %v2048 = vadd.f32 %v2016, %v1943
      %v2049 = vadd.f32 %v2017, %v1945
      %v2050 = vadd.f32 %v2018, %v1948
      %v2051 = vadd.f32 %v2019, %v1950
      %v2052 = vadd.f32 %v2020, %v1953
      %v2053 = vadd.f32 %v2021, %v1955
      %v2054 = vadd.f32 %v2022, %v1958
      %v2055 = vadd.f32 %v2023, %v1960
      %v2056 = vadd.f32 %v2024, %v1963
      %v2057 = vadd.f32 %v2025, %v1965
      %v2058 = vadd.f32 %v2026, %v1968
      %v2059 = vadd.f32 %v2027, %v1970
      %v2060 = vadd.f32 %v2028, %v1973
      %v2061 = vadd.f32 %v2029, %v1975
      %v2062 = vadd.f32 %v2030, %v1978
      %v2063 = vadd.f32 %v2031, %v1980
      %v2064 = vadd.f32 %v2032, %v1983
      %v2065 = vadd.f32 %v2033, %v1985
      %v2066 = vadd.f32 %v2034, %v1988
      %v2067 = vadd.f32 %v2035, %v1990
      %v2068 = vadd.f32 %v2036, %v1993
      %v2069 = vadd.f32 %v2037, %v1995
      %v2070 = vadd.f32 %v2038, %v1998
      %v2071 = vadd.f32 %v2039, %v2000
      %v2072 = vadd.f32 %v2040, %v2003
      %v2073 = vadd.f32 %v2041, %v2005
      %v2074 = vadd.f32 %v2042, %v2008
      %v2075 = vadd.f32 %v2043, %v2010
      %2076 = vst.msk [vmem:[#allocation2 + $0x1] sm:$0xff] %vm1007, %v2044
      %2077 = vst.msk [vmem:[#allocation2 + $0x9] sm:$0xff] %vm1007, %v2045
      %2078 = vst.msk [vmem:[#allocation2 + $0x19] sm:$0xff] %vm1007, %v2046
      %2079 = vst.msk [vmem:[#allocation2 + $0x21] sm:$0xff] %vm1007, %v2047
      %2080 = vst.msk [vmem:[#allocation2 + $0x31] sm:$0xff] %vm1007, %v2048
      %2081 = vst.msk [vmem:[#allocation2 + $0x39] sm:$0xff] %vm1007, %v2049
      %2082 = vst.msk [vmem:[#allocation2 + $0x49] sm:$0xff] %vm1007, %v2050
      %2083 = vst.msk [vmem:[#allocation2 + $0x51] sm:$0xff] %vm1007, %v2051
      %2084 = vst.msk [vmem:[#allocation2 + $0x61] sm:$0xff] %vm1007, %v2052
      %2085 = vst.msk [vmem:[#allocation2 + $0x69] sm:$0xff] %vm1007, %v2053
      %2086 = vst.msk [vmem:[#allocation2 + $0x79] sm:$0xff] %vm1007, %v2054
      %2087 = vst.msk [vmem:[#allocation2 + $0x81] sm:$0xff] %vm1007, %v2055
      %2088 = vst.msk [vmem:[#allocation2 + $0x91] sm:$0xff] %vm1007, %v2056
      %2089 = vst.msk [vmem:[#allocation2 + $0x99] sm:$0xff] %vm1007, %v2057
      %2090 = vst.msk [vmem:[#allocation2 + $0xa9] sm:$0xff] %vm1007, %v2058
      %2091 = vst.msk [vmem:[#allocation2 + $0xb1] sm:$0xff] %vm1007, %v2059
      %2092 = vst.msk [vmem:[#allocation2 + $0xc1] sm:$0xff] %vm1007, %v2060
      %2093 = vst.msk [vmem:[#allocation2 + $0xc9] sm:$0xff] %vm1007, %v2061
      %2094 = vst.msk [vmem:[#allocation2 + $0xd9] sm:$0xff] %vm1007, %v2062
      %2095 = vst.msk [vmem:[#allocation2 + $0xe1] sm:$0xff] %vm1007, %v2063
      %2096 = vst.msk [vmem:[#allocation2 + $0xf1] sm:$0xff] %vm1007, %v2064
      %2097 = vst.msk [vmem:[#allocation2 + $0xf9] sm:$0xff] %vm1007, %v2065
      %2098 = vst.msk [vmem:[#allocation2 + $0x109] sm:$0xff] %vm1007, %v2066
      %2099 = vst.msk [vmem:[#allocation2 + $0x111] sm:$0xff] %vm1007, %v2067
      %2100 = vst.msk [vmem:[#allocation2 + $0x121] sm:$0xff] %vm1007, %v2068
      %2101 = vst.msk [vmem:[#allocation2 + $0x129] sm:$0xff] %vm1007, %v2069
      %2102 = vst.msk [vmem:[#allocation2 + $0x139] sm:$0xff] %vm1007, %v2070
      %2103 = vst.msk [vmem:[#allocation2 + $0x141] sm:$0xff] %vm1007, %v2071
      %2104 = vst.msk [vmem:[#allocation2 + $0x151] sm:$0xff] %vm1007, %v2072
      %2105 = vst.msk [vmem:[#allocation2 + $0x159] sm:$0xff] %vm1007, %v2073
      %2106 = vst.msk [vmem:[#allocation2 + $0x169] sm:$0xff] %vm1007, %v2074
      %2107 = vst.msk [vmem:[#allocation2 + $0x171] sm:$0xff] %vm1007, %v2075
      %s2108 = scalar_lea.vmem %s6, 24
      %v2109 = vld [vmem:[%s2108] sm:$0xf]
      %v2110 = vld [vmem:[%s2108 + $0x4] sm:$0xf]
      %v2111 = vld [vmem:[%s2108 + $0x8] sm:$0xf]
      %v2115 = vunpack.c.l.b16 %v2109
      %v2116 = vunpack.c.l.b16 %v2110
      %v2117 = vunpack.c.l.b16 %v2111
      %v2118 = vpack.c.b16 %v2116, %v2115
      %v2119 = vpack.c.b16 %v2117, %v2117
      %v2122 = vsel %vm1718, %v2119, 0
      %2124 = vmatpush.bf16.msra.mxu0 0
      %2125 = vmatpush.bf16.msra.mxu0 0
      %2126 = vmatpush.bf16.msra.mxu0 0
      %2127 = vmatpush.bf16.msra.mxu0 0
      %2128 = vmatpush.bf16.msra.mxu0 0
      %2129 = vmatpush.bf16.msra.mxu0 0
      %2130 = vmatpush.bf16.msra.mxu0 %v2122
      %2131 = vmatpush.bf16.msra.mxu0 %v2118
      %2132 = vmatmul.bf16.gmra.mxu0 %v1686
      %v2133 = vpop.f32.mrf.mxu0
      %v2134 = vadd.f32 0.0, %v2133
      %v2135 = vpop.f32.mrf.mxu0
      %v2136 = vadd.f32 0.0, %v2135
      %2137 = vmatmul.bf16.gmra.mxu0 %v1688
      %v2138 = vpop.f32.mrf.mxu0
      %v2139 = vadd.f32 0.0, %v2138
      %v2140 = vpop.f32.mrf.mxu0
      %v2141 = vadd.f32 0.0, %v2140
      %2142 = vmatmul.bf16.gmra.mxu0 %v1690
      %v2143 = vpop.f32.mrf.mxu0
      %v2144 = vadd.f32 0.0, %v2143
      %v2145 = vpop.f32.mrf.mxu0
      %v2146 = vadd.f32 0.0, %v2145
      %2147 = vmatmul.bf16.gmra.mxu0 %v1692
      %v2148 = vpop.f32.mrf.mxu0
      %v2149 = vadd.f32 0.0, %v2148
      %v2150 = vpop.f32.mrf.mxu0
      %v2151 = vadd.f32 0.0, %v2150
      %2152 = vmatmul.bf16.gmra.mxu0 %v1694
      %v2153 = vpop.f32.mrf.mxu0
      %v2154 = vadd.f32 0.0, %v2153
      %v2155 = vpop.f32.mrf.mxu0
      %v2156 = vadd.f32 0.0, %v2155
      %2157 = vmatmul.bf16.gmra.mxu0 %v1696
      %v2158 = vpop.f32.mrf.mxu0
      %v2159 = vadd.f32 0.0, %v2158
      %v2160 = vpop.f32.mrf.mxu0
      %v2161 = vadd.f32 0.0, %v2160
      %2162 = vmatmul.bf16.gmra.mxu0 %v1698
      %v2163 = vpop.f32.mrf.mxu0
      %v2164 = vadd.f32 0.0, %v2163
      %v2165 = vpop.f32.mrf.mxu0
      %v2166 = vadd.f32 0.0, %v2165
      %2167 = vmatmul.bf16.gmra.mxu0 %v1700
      %v2168 = vpop.f32.mrf.mxu0
      %v2169 = vadd.f32 0.0, %v2168
      %v2170 = vpop.f32.mrf.mxu0
      %v2171 = vadd.f32 0.0, %v2170
      %2172 = vmatmul.bf16.gmra.mxu0 %v1702
      %v2173 = vpop.f32.mrf.mxu0
      %v2174 = vadd.f32 0.0, %v2173
      %v2175 = vpop.f32.mrf.mxu0
      %v2176 = vadd.f32 0.0, %v2175
      %2177 = vmatmul.bf16.gmra.mxu0 %v1704
      %v2178 = vpop.f32.mrf.mxu0
      %v2179 = vadd.f32 0.0, %v2178
      %v2180 = vpop.f32.mrf.mxu0
      %v2181 = vadd.f32 0.0, %v2180
      %2182 = vmatmul.bf16.gmra.mxu0 %v1706
      %v2183 = vpop.f32.mrf.mxu0
      %v2184 = vadd.f32 0.0, %v2183
      %v2185 = vpop.f32.mrf.mxu0
      %v2186 = vadd.f32 0.0, %v2185
      %2187 = vmatmul.bf16.gmra.mxu0 %v1708
      %v2188 = vpop.f32.mrf.mxu0
      %v2189 = vadd.f32 0.0, %v2188
      %v2190 = vpop.f32.mrf.mxu0
      %v2191 = vadd.f32 0.0, %v2190
      %2192 = vmatmul.bf16.gmra.mxu0 %v1710
      %v2193 = vpop.f32.mrf.mxu0
      %v2194 = vadd.f32 0.0, %v2193
      %v2195 = vpop.f32.mrf.mxu0
      %v2196 = vadd.f32 0.0, %v2195
      %2197 = vmatmul.bf16.gmra.mxu0 %v1712
      %v2198 = vpop.f32.mrf.mxu0
      %v2199 = vadd.f32 0.0, %v2198
      %v2200 = vpop.f32.mrf.mxu0
      %v2201 = vadd.f32 0.0, %v2200
      %2202 = vmatmul.bf16.gmra.mxu0 %v1714
      %v2203 = vpop.f32.mrf.mxu0
      %v2204 = vadd.f32 0.0, %v2203
      %v2205 = vpop.f32.mrf.mxu0
      %v2206 = vadd.f32 0.0, %v2205
      %2207 = vmatmul.bf16.gmra.mxu0 %v1716
      %v2208 = vpop.f32.mrf.mxu0
      %v2209 = vadd.f32 0.0, %v2208
      %v2210 = vpop.f32.mrf.mxu0
      %v2211 = vadd.f32 0.0, %v2210
      %2212 = vdwg.mxu0
      %v2213 = vld [vmem:[#allocation2] sm:$0xff]
      %v2214 = vld [vmem:[#allocation2 + $0x8] sm:$0xff]
      %v2215 = vld [vmem:[#allocation2 + $0x18] sm:$0xff]
      %v2216 = vld [vmem:[#allocation2 + $0x20] sm:$0xff]
      %v2217 = vld [vmem:[#allocation2 + $0x30] sm:$0xff]
      %v2218 = vld [vmem:[#allocation2 + $0x38] sm:$0xff]
      %v2219 = vld [vmem:[#allocation2 + $0x48] sm:$0xff]
      %v2220 = vld [vmem:[#allocation2 + $0x50] sm:$0xff]
      %v2221 = vld [vmem:[#allocation2 + $0x60] sm:$0xff]
      %v2222 = vld [vmem:[#allocation2 + $0x68] sm:$0xff]
      %v2223 = vld [vmem:[#allocation2 + $0x78] sm:$0xff]
      %v2224 = vld [vmem:[#allocation2 + $0x80] sm:$0xff]
      %v2225 = vld [vmem:[#allocation2 + $0x90] sm:$0xff]
      %v2226 = vld [vmem:[#allocation2 + $0x98] sm:$0xff]
      %v2227 = vld [vmem:[#allocation2 + $0xa8] sm:$0xff]
      %v2228 = vld [vmem:[#allocation2 + $0xb0] sm:$0xff]
      %v2229 = vld [vmem:[#allocation2 + $0xc0] sm:$0xff]
      %v2230 = vld [vmem:[#allocation2 + $0xc8] sm:$0xff]
      %v2231 = vld [vmem:[#allocation2 + $0xd8] sm:$0xff]
      %v2232 = vld [vmem:[#allocation2 + $0xe0] sm:$0xff]
      %v2233 = vld [vmem:[#allocation2 + $0xf0] sm:$0xff]
      %v2234 = vld [vmem:[#allocation2 + $0xf8] sm:$0xff]
      %v2235 = vld [vmem:[#allocation2 + $0x108] sm:$0xff]
      %v2236 = vld [vmem:[#allocation2 + $0x110] sm:$0xff]
      %v2237 = vld [vmem:[#allocation2 + $0x120] sm:$0xff]
      %v2238 = vld [vmem:[#allocation2 + $0x128] sm:$0xff]
      %v2239 = vld [vmem:[#allocation2 + $0x138] sm:$0xff]
      %v2240 = vld [vmem:[#allocation2 + $0x140] sm:$0xff]
      %v2241 = vld [vmem:[#allocation2 + $0x150] sm:$0xff]
      %v2242 = vld [vmem:[#allocation2 + $0x158] sm:$0xff]
      %v2243 = vld [vmem:[#allocation2 + $0x168] sm:$0xff]
      %v2244 = vld [vmem:[#allocation2 + $0x170] sm:$0xff]
      %v2245 = vadd.f32 %v2213, %v2134
      %v2246 = vadd.f32 %v2214, %v2136
      %v2247 = vadd.f32 %v2215, %v2139
      %v2248 = vadd.f32 %v2216, %v2141
      %v2249 = vadd.f32 %v2217, %v2144
      %v2250 = vadd.f32 %v2218, %v2146
      %v2251 = vadd.f32 %v2219, %v2149
      %v2252 = vadd.f32 %v2220, %v2151
      %v2253 = vadd.f32 %v2221, %v2154
      %v2254 = vadd.f32 %v2222, %v2156
      %v2255 = vadd.f32 %v2223, %v2159
      %v2256 = vadd.f32 %v2224, %v2161
      %v2257 = vadd.f32 %v2225, %v2164
      %v2258 = vadd.f32 %v2226, %v2166
      %v2259 = vadd.f32 %v2227, %v2169
      %v2260 = vadd.f32 %v2228, %v2171
      %v2261 = vadd.f32 %v2229, %v2174
      %v2262 = vadd.f32 %v2230, %v2176
      %v2263 = vadd.f32 %v2231, %v2179
      %v2264 = vadd.f32 %v2232, %v2181
      %v2265 = vadd.f32 %v2233, %v2184
      %v2266 = vadd.f32 %v2234, %v2186
      %v2267 = vadd.f32 %v2235, %v2189
      %v2268 = vadd.f32 %v2236, %v2191
      %v2269 = vadd.f32 %v2237, %v2194
      %v2270 = vadd.f32 %v2238, %v2196
      %v2271 = vadd.f32 %v2239, %v2199
      %v2272 = vadd.f32 %v2240, %v2201
      %v2273 = vadd.f32 %v2241, %v2204
      %v2274 = vadd.f32 %v2242, %v2206
      %v2275 = vadd.f32 %v2243, %v2209
      %v2276 = vadd.f32 %v2244, %v2211
      %2277 = vst.msk [vmem:[#allocation2] sm:$0xff] %vm1007, %v2245
      %2278 = vst.msk [vmem:[#allocation2 + $0x8] sm:$0xff] %vm1007, %v2246
      %2279 = vst.msk [vmem:[#allocation2 + $0x18] sm:$0xff] %vm1007, %v2247
      %2280 = vst.msk [vmem:[#allocation2 + $0x20] sm:$0xff] %vm1007, %v2248
      %2281 = vst.msk [vmem:[#allocation2 + $0x30] sm:$0xff] %vm1007, %v2249
      %2282 = vst.msk [vmem:[#allocation2 + $0x38] sm:$0xff] %vm1007, %v2250
      %2283 = vst.msk [vmem:[#allocation2 + $0x48] sm:$0xff] %vm1007, %v2251
      %2284 = vst.msk [vmem:[#allocation2 + $0x50] sm:$0xff] %vm1007, %v2252
      %2285 = vst.msk [vmem:[#allocation2 + $0x60] sm:$0xff] %vm1007, %v2253
      %2286 = vst.msk [vmem:[#allocation2 + $0x68] sm:$0xff] %vm1007, %v2254
      %2287 = vst.msk [vmem:[#allocation2 + $0x78] sm:$0xff] %vm1007, %v2255
      %2288 = vst.msk [vmem:[#allocation2 + $0x80] sm:$0xff] %vm1007, %v2256
      %2289 = vst.msk [vmem:[#allocation2 + $0x90] sm:$0xff] %vm1007, %v2257
      %2290 = vst.msk [vmem:[#allocation2 + $0x98] sm:$0xff] %vm1007, %v2258
      %2291 = vst.msk [vmem:[#allocation2 + $0xa8] sm:$0xff] %vm1007, %v2259
      %2292 = vst.msk [vmem:[#allocation2 + $0xb0] sm:$0xff] %vm1007, %v2260
      %2293 = vst.msk [vmem:[#allocation2 + $0xc0] sm:$0xff] %vm1007, %v2261
      %2294 = vst.msk [vmem:[#allocation2 + $0xc8] sm:$0xff] %vm1007, %v2262
      %2295 = vst.msk [vmem:[#allocation2 + $0xd8] sm:$0xff] %vm1007, %v2263
      %2296 = vst.msk [vmem:[#allocation2 + $0xe0] sm:$0xff] %vm1007, %v2264
      %2297 = vst.msk [vmem:[#allocation2 + $0xf0] sm:$0xff] %vm1007, %v2265
      %2298 = vst.msk [vmem:[#allocation2 + $0xf8] sm:$0xff] %vm1007, %v2266
      %2299 = vst.msk [vmem:[#allocation2 + $0x108] sm:$0xff] %vm1007, %v2267
      %2300 = vst.msk [vmem:[#allocation2 + $0x110] sm:$0xff] %vm1007, %v2268
      %2301 = vst.msk [vmem:[#allocation2 + $0x120] sm:$0xff] %vm1007, %v2269
      %2302 = vst.msk [vmem:[#allocation2 + $0x128] sm:$0xff] %vm1007, %v2270
      %2303 = vst.msk [vmem:[#allocation2 + $0x138] sm:$0xff] %vm1007, %v2271
      %2304 = vst.msk [vmem:[#allocation2 + $0x140] sm:$0xff] %vm1007, %v2272
      %2305 = vst.msk [vmem:[#allocation2 + $0x150] sm:$0xff] %vm1007, %v2273
      %2306 = vst.msk [vmem:[#allocation2 + $0x158] sm:$0xff] %vm1007, %v2274
      %2307 = vst.msk [vmem:[#allocation2 + $0x168] sm:$0xff] %vm1007, %v2275
      %2308 = vst.msk [vmem:[#allocation2 + $0x170] sm:$0xff] %vm1007, %v2276
      %v2309 = vld [vmem:[#allocation2 + $0x1] sm:$0xff]
      %v2310 = vld [vmem:[#allocation2 + $0x9] sm:$0xff]
      %v2311 = vld [vmem:[#allocation2 + $0x19] sm:$0xff]
      %v2312 = vld [vmem:[#allocation2 + $0x21] sm:$0xff]
      %v2313 = vld [vmem:[#allocation2 + $0x31] sm:$0xff]
      %v2314 = vld [vmem:[#allocation2 + $0x39] sm:$0xff]
      %v2315 = vld [vmem:[#allocation2 + $0x49] sm:$0xff]
      %v2316 = vld [vmem:[#allocation2 + $0x51] sm:$0xff]
      %v2317 = vld [vmem:[#allocation2 + $0x61] sm:$0xff]
      %v2318 = vld [vmem:[#allocation2 + $0x69] sm:$0xff]
      %v2319 = vld [vmem:[#allocation2 + $0x79] sm:$0xff]
      %v2320 = vld [vmem:[#allocation2 + $0x81] sm:$0xff]
      %v2321 = vld [vmem:[#allocation2 + $0x91] sm:$0xff]
      %v2322 = vld [vmem:[#allocation2 + $0x99] sm:$0xff]
      %v2323 = vld [vmem:[#allocation2 + $0xa9] sm:$0xff]
      %v2324 = vld [vmem:[#allocation2 + $0xb1] sm:$0xff]
      %v2325 = vld [vmem:[#allocation2 + $0xc1] sm:$0xff]
      %v2326 = vld [vmem:[#allocation2 + $0xc9] sm:$0xff]
      %v2327 = vld [vmem:[#allocation2 + $0xd9] sm:$0xff]
      %v2328 = vld [vmem:[#allocation2 + $0xe1] sm:$0xff]
      %v2329 = vld [vmem:[#allocation2 + $0xf1] sm:$0xff]
      %v2330 = vld [vmem:[#allocation2 + $0xf9] sm:$0xff]
      %v2331 = vld [vmem:[#allocation2 + $0x109] sm:$0xff]
      %v2332 = vld [vmem:[#allocation2 + $0x111] sm:$0xff]
      %v2333 = vld [vmem:[#allocation2 + $0x121] sm:$0xff]
      %v2334 = vld [vmem:[#allocation2 + $0x129] sm:$0xff]
      %v2335 = vld [vmem:[#allocation2 + $0x139] sm:$0xff]
      %v2336 = vld [vmem:[#allocation2 + $0x141] sm:$0xff]
      %v2337 = vld [vmem:[#allocation2 + $0x151] sm:$0xff]
      %v2338 = vld [vmem:[#allocation2 + $0x159] sm:$0xff]
      %v2339 = vld [vmem:[#allocation2 + $0x169] sm:$0xff]
      %v2340 = vld [vmem:[#allocation2 + $0x171] sm:$0xff]
      %v2341 = vld [vmem:[%s7] sm:$0x1]
      %v2343 = vperm.slane %v2341, 0
      %v2345 = vmul.f32 %v2309, %v2343
      %v2346 = vmul.f32 %v2310, %v2343
      %v2347 = vmul.f32 %v2311, %v2343
      %v2348 = vmul.f32 %v2312, %v2343
      %v2349 = vmul.f32 %v2313, %v2343
      %v2350 = vmul.f32 %v2314, %v2343
      %v2351 = vmul.f32 %v2315, %v2343
      %v2352 = vmul.f32 %v2316, %v2343
      %v2353 = vmul.f32 %v2317, %v2343
      %v2354 = vmul.f32 %v2318, %v2343
      %v2355 = vmul.f32 %v2319, %v2343
      %v2356 = vmul.f32 %v2320, %v2343
      %v2357 = vmul.f32 %v2321, %v2343
      %v2358 = vmul.f32 %v2322, %v2343
      %v2359 = vmul.f32 %v2323, %v2343
      %v2360 = vmul.f32 %v2324, %v2343
      %v2361 = vmul.f32 %v2325, %v2343
      %v2362 = vmul.f32 %v2326, %v2343
      %v2363 = vmul.f32 %v2327, %v2343
      %v2364 = vmul.f32 %v2328, %v2343
      %v2365 = vmul.f32 %v2329, %v2343
      %v2366 = vmul.f32 %v2330, %v2343
      %v2367 = vmul.f32 %v2331, %v2343
      %v2368 = vmul.f32 %v2332, %v2343
      %v2369 = vmul.f32 %v2333, %v2343
      %v2370 = vmul.f32 %v2334, %v2343
      %v2371 = vmul.f32 %v2335, %v2343
      %v2372 = vmul.f32 %v2336, %v2343
      %v2373 = vmul.f32 %v2337, %v2343
      %v2374 = vmul.f32 %v2338, %v2343
      %v2375 = vmul.f32 %v2339, %v2343
      %v2376 = vmul.f32 %v2340, %v2343
      %v2377 = vld [vmem:[%s8] sm:$0x1]
      %v2379 = vperm.slane %v2377, 0
      %v2381 = vadd.f32 %v2345, %v2379
      %v2382 = vadd.f32 %v2346, %v2379
      %v2383 = vadd.f32 %v2347, %v2379
      %v2384 = vadd.f32 %v2348, %v2379
      %v2385 = vadd.f32 %v2349, %v2379
      %v2386 = vadd.f32 %v2350, %v2379
      %v2387 = vadd.f32 %v2351, %v2379
      %v2388 = vadd.f32 %v2352, %v2379
      %v2389 = vadd.f32 %v2353, %v2379
      %v2390 = vadd.f32 %v2354, %v2379
      %v2391 = vadd.f32 %v2355, %v2379
      %v2392 = vadd.f32 %v2356, %v2379
      %v2393 = vadd.f32 %v2357, %v2379
      %v2394 = vadd.f32 %v2358, %v2379
      %v2395 = vadd.f32 %v2359, %v2379
      %v2396 = vadd.f32 %v2360, %v2379
      %v2397 = vadd.f32 %v2361, %v2379
      %v2398 = vadd.f32 %v2362, %v2379
      %v2399 = vadd.f32 %v2363, %v2379
      %v2400 = vadd.f32 %v2364, %v2379
      %v2401 = vadd.f32 %v2365, %v2379
      %v2402 = vadd.f32 %v2366, %v2379
      %v2403 = vadd.f32 %v2367, %v2379
      %v2404 = vadd.f32 %v2368, %v2379
      %v2405 = vadd.f32 %v2369, %v2379
      %v2406 = vadd.f32 %v2370, %v2379
      %v2407 = vadd.f32 %v2371, %v2379
      %v2408 = vadd.f32 %v2372, %v2379
      %v2409 = vadd.f32 %v2373, %v2379
      %v2410 = vadd.f32 %v2374, %v2379
      %v2411 = vadd.f32 %v2375, %v2379
      %v2412 = vadd.f32 %v2376, %v2379
      %v2413 = vmax.f32 %v2381, 0.0
      %v2414 = vmax.f32 %v2382, 0.0
      %v2415 = vmax.f32 %v2383, 0.0
      %v2416 = vmax.f32 %v2384, 0.0
      %v2417 = vmax.f32 %v2385, 0.0
      %v2418 = vmax.f32 %v2386, 0.0
      %v2419 = vmax.f32 %v2387, 0.0
      %v2420 = vmax.f32 %v2388, 0.0
      %v2421 = vmax.f32 %v2389, 0.0
      %v2422 = vmax.f32 %v2390, 0.0
      %v2423 = vmax.f32 %v2391, 0.0
      %v2424 = vmax.f32 %v2392, 0.0
      %v2425 = vmax.f32 %v2393, 0.0
      %v2426 = vmax.f32 %v2394, 0.0
      %v2427 = vmax.f32 %v2395, 0.0
      %v2428 = vmax.f32 %v2396, 0.0
      %v2429 = vmax.f32 %v2397, 0.0
      %v2430 = vmax.f32 %v2398, 0.0
      %v2431 = vmax.f32 %v2399, 0.0
      %v2432 = vmax.f32 %v2400, 0.0
      %v2433 = vmax.f32 %v2401, 0.0
      %v2434 = vmax.f32 %v2402, 0.0
      %v2435 = vmax.f32 %v2403, 0.0
      %v2436 = vmax.f32 %v2404, 0.0
      %v2437 = vmax.f32 %v2405, 0.0
      %v2438 = vmax.f32 %v2406, 0.0
      %v2439 = vmax.f32 %v2407, 0.0
      %v2440 = vmax.f32 %v2408, 0.0
      %v2441 = vmax.f32 %v2409, 0.0
      %v2442 = vmax.f32 %v2410, 0.0
      %v2443 = vmax.f32 %v2411, 0.0
      %v2444 = vmax.f32 %v2412, 0.0
      %v2445 = vpack.c.bf16 %v2413, %v2413
      %v2446 = vpack.c.bf16 %v2414, %v2414
      %v2447 = vpack.c.bf16 %v2415, %v2415
      %v2448 = vpack.c.bf16 %v2416, %v2416
      %v2449 = vpack.c.bf16 %v2417, %v2417
      %v2450 = vpack.c.bf16 %v2418, %v2418
      %v2451 = vpack.c.bf16 %v2419, %v2419
      %v2452 = vpack.c.bf16 %v2420, %v2420
      %v2453 = vpack.c.bf16 %v2421, %v2421
      %v2454 = vpack.c.bf16 %v2422, %v2422
      %v2455 = vpack.c.bf16 %v2423, %v2423
      %v2456 = vpack.c.bf16 %v2424, %v2424
      %v2457 = vpack.c.bf16 %v2425, %v2425
      %v2458 = vpack.c.bf16 %v2426, %v2426
      %v2459 = vpack.c.bf16 %v2427, %v2427
      %v2460 = vpack.c.bf16 %v2428, %v2428
      %v2461 = vpack.c.bf16 %v2429, %v2429
      %v2462 = vpack.c.bf16 %v2430, %v2430
      %v2463 = vpack.c.bf16 %v2431, %v2431
      %v2464 = vpack.c.bf16 %v2432, %v2432
      %v2465 = vpack.c.bf16 %v2433, %v2433
      %v2466 = vpack.c.bf16 %v2434, %v2434
      %v2467 = vpack.c.bf16 %v2435, %v2435
      %v2468 = vpack.c.bf16 %v2436, %v2436
      %v2469 = vpack.c.bf16 %v2437, %v2437
      %v2470 = vpack.c.bf16 %v2438, %v2438
      %v2471 = vpack.c.bf16 %v2439, %v2439
      %v2472 = vpack.c.bf16 %v2440, %v2440
      %v2473 = vpack.c.bf16 %v2441, %v2441
      %v2474 = vpack.c.bf16 %v2442, %v2442
      %v2475 = vpack.c.bf16 %v2443, %v2443
      %v2476 = vpack.c.bf16 %v2444, %v2444
      %vm2477 = vcmask 27648
      %2478 = vst.msk [vmem:[%s662] sm:$0xf] %vm2477, %v2445
      %2479 = vst.msk [vmem:[%s662 + $0x4] sm:$0xf] %vm2477, %v2446
      %2480 = vst.msk [vmem:[%s662 + $0x8] sm:$0xf] %vm2477, %v2447
      %2481 = vst.msk [vmem:[%s662 + $0xc] sm:$0xf] %vm2477, %v2448
      %2482 = vst.msk [vmem:[%s662 + $0x10] sm:$0xf] %vm2477, %v2449
      %2483 = vst.msk [vmem:[%s662 + $0x14] sm:$0xf] %vm2477, %v2450
      %2484 = vst.msk [vmem:[%s662 + $0x18] sm:$0xf] %vm2477, %v2451
      %2485 = vst.msk [vmem:[%s662 + $0x1c] sm:$0xf] %vm2477, %v2452
      %2486 = vst.msk [vmem:[%s662 + $0x20] sm:$0xf] %vm2477, %v2453
      %2487 = vst.msk [vmem:[%s662 + $0x24] sm:$0xf] %vm2477, %v2454
      %2488 = vst.msk [vmem:[%s662 + $0x28] sm:$0xf] %vm2477, %v2455
      %2489 = vst.msk [vmem:[%s662 + $0x2c] sm:$0xf] %vm2477, %v2456
      %2490 = vst.msk [vmem:[%s662 + $0x30] sm:$0xf] %vm2477, %v2457
      %2491 = vst.msk [vmem:[%s662 + $0x34] sm:$0xf] %vm2477, %v2458
      %2492 = vst.msk [vmem:[%s662 + $0x38] sm:$0xf] %vm2477, %v2459
      %2493 = vst.msk [vmem:[%s662 + $0x3c] sm:$0xf] %vm2477, %v2460
      %2494 = vst.msk [vmem:[%s662 + $0x40] sm:$0xf] %vm2477, %v2461
      %2495 = vst.msk [vmem:[%s662 + $0x44] sm:$0xf] %vm2477, %v2462
      %2496 = vst.msk [vmem:[%s662 + $0x48] sm:$0xf] %vm2477, %v2463
      %2497 = vst.msk [vmem:[%s662 + $0x4c] sm:$0xf] %vm2477, %v2464
      %2498 = vst.msk [vmem:[%s662 + $0x50] sm:$0xf] %vm2477, %v2465
      %2499 = vst.msk [vmem:[%s662 + $0x54] sm:$0xf] %vm2477, %v2466
      %2500 = vst.msk [vmem:[%s662 + $0x58] sm:$0xf] %vm2477, %v2467
      %2501 = vst.msk [vmem:[%s662 + $0x5c] sm:$0xf] %vm2477, %v2468
      %2502 = vst.msk [vmem:[%s662 + $0x60] sm:$0xf] %vm2477, %v2469
      %2503 = vst.msk [vmem:[%s662 + $0x64] sm:$0xf] %vm2477, %v2470
      %2504 = vst.msk [vmem:[%s662 + $0x68] sm:$0xf] %vm2477, %v2471
      %2505 = vst.msk [vmem:[%s662 + $0x6c] sm:$0xf] %vm2477, %v2472
      %2506 = vst.msk [vmem:[%s662 + $0x70] sm:$0xf] %vm2477, %v2473
      %2507 = vst.msk [vmem:[%s662 + $0x74] sm:$0xf] %vm2477, %v2474
      %2508 = vst.msk [vmem:[%s662 + $0x78] sm:$0xf] %vm2477, %v2475
      %2509 = vst.msk [vmem:[%s662 + $0x7c] sm:$0xf] %vm2477, %v2476
      %s2510 = smul.u32 16, %s25
      %p2511 = scmp.lt.s32.totalorder %s24, 1
      %s2512 = scalar_select %p2511, %s24, 1
      %p2513 = scmp.lt.s32.totalorder %s2510, 15
      %s2514 = scalar_select %p2513, %s2510, 15
      %s2515 = smul.addr %s2514, 2
      %s2516 = smul.addr %s2512, 32
      %s2517 = sadd.s32 %s2515, %s2516
      %s2518 = smul.addr %s2517, 4
      %s2519 = scalar_lea.vmem %s9, %s2518
      // Predicated region
      $region57: #{upconv_forward.4} parent=55 // pred_check
        %p2520 = pneg %p315
      $region58: #{upconv_forward.4} parent=55 // pred_check_branch
        %2522 = sbr.rel (%p2520) target = $region60
      $region59: #{upconv_forward.4} parent=55 // pred_region
        %s2523 = smul.u32 16, %s25
      $region60: #{upconv_forward.4} parent=55 // pred_fallthru
        _
    $region56: #{upconv_forward.4} parent=5 // pred_fallthru
      _
    %p2524 = scmp.le.s32.totalorder 2, %s15
    // Predicated region
    $region61: #{upconv_forward.4} parent=5 // pred_check
      %p2525 = pneg %p2524
    $region62: #{upconv_forward.4} parent=5 // pred_check_branch
      %2527 = sbr.rel (%p2525) target = $region64
    $region63: #{upconv_forward.4} parent=5 // pred_region
      %s2528 = ssub.s32 %s15, 2
      // Predicated region
      $region65: #{upconv_forward.4} parent=63 // pred_check
        %p2529 = pneg %p321
      $region66: #{upconv_forward.4} parent=63 // pred_check_branch
        %2531 = sbr.rel (%p2529) target = $region68
      $region67: #{upconv_forward.4} parent=63 // pred_region
        %s2532 = smul.u32 16, %s27
        %p2533 = scmp.lt.s32.totalorder %s26, 1
        %s2534 = scalar_select %p2533, %s26, 1
        %p2535 = scmp.lt.s32.totalorder %s2532, 15
        %s2536 = scalar_select %p2535, %s2532, 15
        %s2537 = smul.addr %s2536, 2
        %s2538 = smul.addr %s2534, 32
        %s2539 = sadd.s32 %s2537, %s2538
        %s2540 = smul.addr %s2539, 4
        %s2541 = scalar_lea.vmem %s9, %s2540
      $region68: #{upconv_forward.4} parent=63 // pred_fallthru
        _
    $region64: #{upconv_forward.4} parent=5 // pred_fallthru
      _
  $region6: #{upconv_forward.4} parent=0 // loop_footer
    %s19 = sadd.s32 1, %s15
  $region7: #{upconv_forward.4} parent=0 // loop_footer_branch
    %14 = sbr.rel target = $region3
  $region8: #{upconv_forward.4} parent=0 // loop_exit
    _

</llo_original>
